<compile_context>
chip_gen: v7x
topology: tpu7x:2x2x1
jax: 0.10.0
libtpu: 0.0.40
codegen_flags: <defaults>
</compile_context>

<pallas_src>
import jax
import jax.numpy as jnp
from jax import lax
from jax.experimental import pallas as pl
from jax.experimental.pallas import tpu as pltpu

INPUT_SIZE = 1
HIDDEN_SIZE = 20
NUM_LAYERS = 2

HP = 128              # padded per-gate lane width (one full vreg lane span)
NG = 4                # gates per cell
GW = NG * HP          # packed gate width = 512
# PyTorch gate row order is (i, f, g, o); kernel block order is (i, f, o, g)
# so a single sigmoid covers blocks 0..2 and tanh covers block 3.
_PT_TO_BLK = (0, 1, 3, 2)


def _lstm_kernel(x_ref, wih0_ref, whh0_ref, b0_ref, w1_ref, b1_ref,
                 wfc_ref, bfc_ref, out_ref):
    """2-layer LSTM over time + linear head, fully unrolled over T.

    x_ref : (T, B, I)     time-major input
    wih0  : (I, GW)       layer-0 input->gates, gate-blocked to 128 lanes
    whh0  : (HP, GW)      layer-0 hidden->gates (rows >= H are zero)
    b0    : (1, GW)       layer-0 combined bias (b_ih + b_hh), gate-blocked
    w1    : (2*HP, GW)    layer-1 fused [W_ih1; W_hh1] (rows at 0 / HP offsets)
    b1    : (1, GW)       layer-1 combined bias
    wfc   : (1, HP)       fc weight row (cols >= H are zero), bfc: (1, 1)
    out_ref: (B, 1)
    """
    T, B, I = x_ref.shape

    # --- hoist all weight / bias reads out of the time loop -----------------
    wih0 = wih0_ref[...]
    whh0 = whh0_ref[...]
    w1 = w1_ref[...]
    b0 = jnp.broadcast_to(b0_ref[...], (B, GW))   # broadcast once, reuse
    b1 = jnp.broadcast_to(b1_ref[...], (B, GW))
    wfc = wfc_ref[...]
    bfc = bfc_ref[...]

    # --- precompute layer-0 input projection (+bias) for all steps ----------
    if I == 1:
        # x_t @ W_ih0 with K=1 is an outer product -> plain broadcast multiply
        xg0 = [x_ref[t] * wih0 + b0 for t in range(T)]
    else:
        xg0 = [jnp.dot(x_ref[t], wih0, preferred_element_type=jnp.float32) + b0
               for t in range(T)]

    def gate_update(gates, c):
        # gates: (B, GW); 128-lane-aligned blocks: i | f | o | g
        sfo = jax.nn.sigmoid(gates[:, :3 * HP])    # one EUP region: i, f, o
        i = sfo[:, 0 * HP:1 * HP]
        f = sfo[:, 1 * HP:2 * HP]
        o = sfo[:, 2 * HP:3 * HP]
        g = jnp.tanh(gates[:, 3 * HP:4 * HP])
        c_new = f * c + i * g
        h_new = o * jnp.tanh(c_new)
        # pad lanes (>= H) stay exactly zero: zero weight rows/cols + zero
        # bias pads give sigmoid(0)*0 updates there.
        return h_new, c_new

    # --- recurrence: state lives in vregs, loop fully unrolled ---------------
    zero = jnp.zeros((B, HP), jnp.float32)
    h0, c0, h1, c1 = zero, zero, zero, zero

    for t in range(T):
        # layer 0: input part precomputed -> one matmul on the serial chain
        g0 = xg0[t] + jnp.dot(h0, whh0, preferred_element_type=jnp.float32)
        h0, c0 = gate_update(g0, c0)
        # layer 1: single fused matmul over [h0 | h1] (128-lane aligned concat)
        z = jnp.concatenate([h0, h1], axis=1)                  # (B, 2*HP)
        g1 = jnp.dot(z, w1, preferred_element_type=jnp.float32) + b1
        h1, c1 = gate_update(g1, c1)

    # fc head on last step's top-layer hidden state (pad lanes are exact zeros,
    # so the lane reduction is exact). Output stays (B, 1) per module spec.
    out_ref[...] = jnp.sum(h1 * wfc, axis=1, keepdims=True) + bfc


def lstm_forward(x, kparams):
    """x: (batch, seq, input_size) float32 -> (batch, 1) float32."""
    B, T, I = x.shape
    x_tm = jnp.transpose(x, (1, 0, 2))            # (T, B, I) time-major

    vmem = lambda: pl.BlockSpec(memory_space=pltpu.MemorySpace.VMEM)
    return pl.pallas_call(
        _lstm_kernel,
        out_shape=jax.ShapeDtypeStruct((B, 1), jnp.float32),
        in_specs=[vmem() for _ in range(8)],
        out_specs=vmem(),
    )(x_tm,
      kparams["wih0"], kparams["whh0"], kparams["b0"],
      kparams["w1"], kparams["b1"],
      kparams["wfc"], kparams["bfc"])


# ----------------------------- parameter handling ----------------------------

def init_params(key, input_size=INPUT_SIZE, hidden_size=HIDDEN_SIZE):
    """Deterministic synthetic init mirroring PyTorch LSTM/Linear shapes."""
    H = hidden_size
    scale = 1.0 / jnp.sqrt(jnp.float32(H))
    keys = jax.random.split(key, 10)

    def u(k, shape):
        return jax.random.uniform(k, shape, jnp.float32, -scale, scale)

    return {
        # layer 0
        "w_ih0": u(keys[0], (4 * H, input_size)),
        "w_hh0": u(keys[1], (4 * H, H)),
        "b_ih0": u(keys[2], (4 * H,)),
        "b_hh0": u(keys[3], (4 * H,)),
        # layer 1 (input is hidden of layer 0)
        "w_ih1": u(keys[4], (4 * H, H)),
        "w_hh1": u(keys[5], (4 * H, H)),
        "b_ih1": u(keys[6], (4 * H,)),
        "b_hh1": u(keys[7], (4 * H,)),
        # fc: Linear(H, 1)
        "w_fc": u(keys[8], (1, H)),
        "b_fc": u(keys[9], (1,)),
    }


def _pack_gate_cols(w, rows_pad, row_offset=0):
    """PyTorch (4H, K) gate-major weight -> (rows_pad, GW) packed layout.

    Gate order remapped (i,f,g,o)->(i,f,o,g); each gate occupies its own
    128-lane block; the K weight rows are placed at `row_offset`; everything
    else is zero so padded state lanes contribute nothing."""
    four_h, k = w.shape
    h = four_h // 4
    wt = w.T                                             # (K, 4H)
    out = jnp.zeros((rows_pad, GW), jnp.float32)
    for pt_idx, blk in enumerate(_PT_TO_BLK):
        out = out.at[row_offset:row_offset + k,
                     blk * HP:blk * HP + h].set(wt[:, pt_idx * h:(pt_idx + 1) * h])
    return out


def _pack_gate_bias(b):
    h = b.shape[0] // 4
    out = jnp.zeros((1, GW), jnp.float32)
    for pt_idx, blk in enumerate(_PT_TO_BLK):
        out = out.at[0, blk * HP:blk * HP + h].set(b[pt_idx * h:(pt_idx + 1) * h])
    return out


def pack_params(raw):
    """PyTorch-shaped params -> lane-padded / gate-blocked / fused kernel layout."""
    h = raw["w_hh0"].shape[1]
    i = raw["w_ih0"].shape[1]
    return {
        "wih0": _pack_gate_cols(raw["w_ih0"], i),                         # (I, GW)
        "whh0": _pack_gate_cols(raw["w_hh0"], HP),                        # (HP, GW)
        "b0": _pack_gate_bias(raw["b_ih0"] + raw["b_hh0"]),               # (1, GW)
        # layer 1: [W_ih1; W_hh1] stacked on the contraction dim at 128-row
        # offsets so it matches concat([h0, h1]) inside the kernel.
        "w1": (_pack_gate_cols(raw["w_ih1"], 2 * HP, row_offset=0)
               + _pack_gate_cols(raw["w_hh1"], 2 * HP, row_offset=HP)),   # (2HP, GW)
        "b1": _pack_gate_bias(raw["b_ih1"] + raw["b_hh1"]),               # (1, GW)
        "wfc": jnp.zeros((1, HP), jnp.float32).at[0, :h].set(raw["w_fc"][0]),
        "bfc": raw["b_fc"].reshape(1, 1),
    }


# ------------------------------- pure-JAX reference --------------------------

def lstm_forward_ref(x, raw):
    """Pure-JAX reference (lax.scan) matching PyTorch LSTM semantics."""
    B, T, I = x.shape
    H = raw["w_hh0"].shape[1]

    def cell(x_t, h, c, w_ih, w_hh, b_ih, b_hh):
        g = x_t @ w_ih.T + h @ w_hh.T + b_ih + b_hh
        i = jax.nn.sigmoid(g[:, 0 * H:1 * H])
        f = jax.nn.sigmoid(g[:, 1 * H:2 * H])
        gg = jnp.tanh(g[:, 2 * H:3 * H])
        o = jax.nn.sigmoid(g[:, 3 * H:4 * H])
        c_new = f * c + i * gg
        return o * jnp.tanh(c_new), c_new

    def step(carry, x_t):
        h0, c0, h1, c1 = carry
        h0, c0 = cell(x_t, h0, c0, raw["w_ih0"], raw["w_hh0"],
                      raw["b_ih0"], raw["b_hh0"])
        h1, c1 = cell(h0, h1, c1, raw["w_ih1"], raw["w_hh1"],
                      raw["b_ih1"], raw["b_hh1"])
        return (h0, c0, h1, c1), None

    z = jnp.zeros((B, H), jnp.float32)
    (h0, c0, h1, c1), _ = lax.scan(step, (z, z, z, z),
                                   jnp.transpose(x, (1, 0, 2)))
    return h1 @ raw["w_fc"].T + raw["b_fc"]


if __name__ == "__main__":
    key = jax.random.PRNGKey(0)
    k_param, k_x = jax.random.split(key)

    B, T = 4, 8
    raw = init_params(k_param)
    kparams = pack_params(raw)
    x = jax.random.normal(k_x, (B, T, INPUT_SIZE), jnp.float32)

    out = lstm_forward(x, kparams)
    out = jax.block_until_ready(out)

    ref = lstm_forward_ref(x, raw)
    assert out.shape == (B, 1)
    assert jnp.allclose(out, ref, rtol=1e-4, atol=1e-5), (out, ref)

    print("KERNEL_OK")
</pallas_src>

<mosaic_0001>
module attributes {stable_mosaic.version = 11 : i64} {
  func.func @_lstm_kernel(%arg0: memref<8x4x1xf32, #tpu.memory_space<vmem>>, %arg1: memref<1x512xf32, #tpu.memory_space<vmem>>, %arg2: memref<128x512xf32, #tpu.memory_space<vmem>>, %arg3: memref<1x512xf32, #tpu.memory_space<vmem>>, %arg4: memref<256x512xf32, #tpu.memory_space<vmem>>, %arg5: memref<1x512xf32, #tpu.memory_space<vmem>>, %arg6: memref<1x128xf32, #tpu.memory_space<vmem>>, %arg7: memref<1x1xf32, #tpu.memory_space<vmem>>, %arg8: memref<4x1xf32, #tpu.memory_space<vmem>>) attributes {dimension_semantics = [], scalar_prefetch = 0 : i64, scratch_operands = 0 : i64, tpu.core_type = #tpu.core_type<tc>} {
    %c0 = arith.constant 0 : index
    %c0_0 = arith.constant 0 : index
    %0 = vector.load %arg1[%c0, %c0_0] : memref<1x512xf32, #tpu.memory_space<vmem>>, vector<1x512xf32>
    %c0_1 = arith.constant 0 : index
    %c0_2 = arith.constant 0 : index
    %1 = vector.load %arg2[%c0_1, %c0_2] : memref<128x512xf32, #tpu.memory_space<vmem>>, vector<128x512xf32>
    %c0_3 = arith.constant 0 : index
    %c0_4 = arith.constant 0 : index
    %2 = vector.load %arg4[%c0_3, %c0_4] : memref<256x512xf32, #tpu.memory_space<vmem>>, vector<256x512xf32>
    %c0_5 = arith.constant 0 : index
    %c0_6 = arith.constant 0 : index
    %3 = vector.load %arg3[%c0_5, %c0_6] : memref<1x512xf32, #tpu.memory_space<vmem>>, vector<1x512xf32>
    %4 = vector.shape_cast %3 : vector<1x512xf32> to vector<1x512xf32>
    %5 = vector.broadcast %4 : vector<1x512xf32> to vector<4x512xf32>
    %c0_7 = arith.constant 0 : index
    %c0_8 = arith.constant 0 : index
    %6 = vector.load %arg5[%c0_7, %c0_8] : memref<1x512xf32, #tpu.memory_space<vmem>>, vector<1x512xf32>
    %7 = vector.shape_cast %6 : vector<1x512xf32> to vector<1x512xf32>
    %8 = vector.broadcast %7 : vector<1x512xf32> to vector<4x512xf32>
    %c0_9 = arith.constant 0 : index
    %c0_10 = arith.constant 0 : index
    %9 = vector.load %arg6[%c0_9, %c0_10] : memref<1x128xf32, #tpu.memory_space<vmem>>, vector<1x128xf32>
    %c0_11 = arith.constant 0 : index
    %c0_12 = arith.constant 0 : index
    %10 = vector.load %arg7[%c0_11, %c0_12] : memref<1x1xf32, #tpu.memory_space<vmem>>, vector<1x1xf32>
    %c0_13 = arith.constant 0 : index
    %c0_14 = arith.constant 0 : index
    %c0_15 = arith.constant 0 : index
    %11 = vector.load %arg0[%c0_13, %c0_14, %c0_15] : memref<8x4x1xf32, #tpu.memory_space<vmem>>, vector<1x4x1xf32>
    %12 = vector.shape_cast %11 : vector<1x4x1xf32> to vector<4x1xf32>
    %13 = vector.broadcast %12 : vector<4x1xf32> to vector<4x512xf32>
    %14 = vector.broadcast %0 : vector<1x512xf32> to vector<4x512xf32>
    %15 = arith.mulf %13, %14 : vector<4x512xf32>
    %16 = arith.addf %15, %5 : vector<4x512xf32>
    %c1 = arith.constant 1 : index
    %c0_16 = arith.constant 0 : index
    %c0_17 = arith.constant 0 : index
    %17 = vector.load %arg0[%c1, %c0_16, %c0_17] : memref<8x4x1xf32, #tpu.memory_space<vmem>>, vector<1x4x1xf32>
    %18 = vector.shape_cast %17 : vector<1x4x1xf32> to vector<4x1xf32>
    %19 = vector.broadcast %18 : vector<4x1xf32> to vector<4x512xf32>
    %20 = vector.broadcast %0 : vector<1x512xf32> to vector<4x512xf32>
    %21 = arith.mulf %19, %20 : vector<4x512xf32>
    %22 = arith.addf %21, %5 : vector<4x512xf32>
    %c2 = arith.constant 2 : index
    %c0_18 = arith.constant 0 : index
    %c0_19 = arith.constant 0 : index
    %23 = vector.load %arg0[%c2, %c0_18, %c0_19] : memref<8x4x1xf32, #tpu.memory_space<vmem>>, vector<1x4x1xf32>
    %24 = vector.shape_cast %23 : vector<1x4x1xf32> to vector<4x1xf32>
    %25 = vector.broadcast %24 : vector<4x1xf32> to vector<4x512xf32>
    %26 = vector.broadcast %0 : vector<1x512xf32> to vector<4x512xf32>
    %27 = arith.mulf %25, %26 : vector<4x512xf32>
    %28 = arith.addf %27, %5 : vector<4x512xf32>
    %c3 = arith.constant 3 : index
    %c0_20 = arith.constant 0 : index
    %c0_21 = arith.constant 0 : index
    %29 = vector.load %arg0[%c3, %c0_20, %c0_21] : memref<8x4x1xf32, #tpu.memory_space<vmem>>, vector<1x4x1xf32>
    %30 = vector.shape_cast %29 : vector<1x4x1xf32> to vector<4x1xf32>
    %31 = vector.broadcast %30 : vector<4x1xf32> to vector<4x512xf32>
    %32 = vector.broadcast %0 : vector<1x512xf32> to vector<4x512xf32>
    %33 = arith.mulf %31, %32 : vector<4x512xf32>
    %34 = arith.addf %33, %5 : vector<4x512xf32>
    %c4 = arith.constant 4 : index
    %c0_22 = arith.constant 0 : index
    %c0_23 = arith.constant 0 : index
    %35 = vector.load %arg0[%c4, %c0_22, %c0_23] : memref<8x4x1xf32, #tpu.memory_space<vmem>>, vector<1x4x1xf32>
    %36 = vector.shape_cast %35 : vector<1x4x1xf32> to vector<4x1xf32>
    %37 = vector.broadcast %36 : vector<4x1xf32> to vector<4x512xf32>
    %38 = vector.broadcast %0 : vector<1x512xf32> to vector<4x512xf32>
    %39 = arith.mulf %37, %38 : vector<4x512xf32>
    %40 = arith.addf %39, %5 : vector<4x512xf32>
    %c5 = arith.constant 5 : index
    %c0_24 = arith.constant 0 : index
    %c0_25 = arith.constant 0 : index
    %41 = vector.load %arg0[%c5, %c0_24, %c0_25] : memref<8x4x1xf32, #tpu.memory_space<vmem>>, vector<1x4x1xf32>
    %42 = vector.shape_cast %41 : vector<1x4x1xf32> to vector<4x1xf32>
    %43 = vector.broadcast %42 : vector<4x1xf32> to vector<4x512xf32>
    %44 = vector.broadcast %0 : vector<1x512xf32> to vector<4x512xf32>
    %45 = arith.mulf %43, %44 : vector<4x512xf32>
    %46 = arith.addf %45, %5 : vector<4x512xf32>
    %c6 = arith.constant 6 : index
    %c0_26 = arith.constant 0 : index
    %c0_27 = arith.constant 0 : index
    %47 = vector.load %arg0[%c6, %c0_26, %c0_27] : memref<8x4x1xf32, #tpu.memory_space<vmem>>, vector<1x4x1xf32>
    %48 = vector.shape_cast %47 : vector<1x4x1xf32> to vector<4x1xf32>
    %49 = vector.broadcast %48 : vector<4x1xf32> to vector<4x512xf32>
    %50 = vector.broadcast %0 : vector<1x512xf32> to vector<4x512xf32>
    %51 = arith.mulf %49, %50 : vector<4x512xf32>
    %52 = arith.addf %51, %5 : vector<4x512xf32>
    %c7 = arith.constant 7 : index
    %c0_28 = arith.constant 0 : index
    %c0_29 = arith.constant 0 : index
    %53 = vector.load %arg0[%c7, %c0_28, %c0_29] : memref<8x4x1xf32, #tpu.memory_space<vmem>>, vector<1x4x1xf32>
    %54 = vector.shape_cast %53 : vector<1x4x1xf32> to vector<4x1xf32>
    %55 = vector.broadcast %54 : vector<4x1xf32> to vector<4x512xf32>
    %56 = vector.broadcast %0 : vector<1x512xf32> to vector<4x512xf32>
    %57 = arith.mulf %55, %56 : vector<4x512xf32>
    %58 = arith.addf %57, %5 : vector<4x512xf32>
    %cst = arith.constant 0.000000e+00 : f32
    %59 = vector.broadcast %cst : f32 to vector<4x128xf32>
    %cst_30 = arith.constant dense<0.000000e+00> : vector<4x512xf32>
    %60 = tpu.matmul %59, %1, %cst_30 {dimension_numbers = #tpu.dot_dimension_numbers<[1], [0], [0], [1], [0, 0, 1, 1], [], []>} : vector<4x128xf32>, vector<128x512xf32>, vector<4x512xf32> -> vector<4x512xf32>
    %61 = arith.addf %16, %60 : vector<4x512xf32>
    %62 = vector.extract_strided_slice %61 {offsets = [0, 0], sizes = [4, 384], strides = [1, 1]} : vector<4x512xf32> to vector<4x384xf32>
    %63 = arith.negf %62 : vector<4x384xf32>
    %64 = math.exp %63 : vector<4x384xf32>
    %cst_31 = arith.constant 1.000000e+00 : f32
    %65 = vector.broadcast %cst_31 : f32 to vector<4x384xf32>
    %66 = arith.addf %65, %64 : vector<4x384xf32>
    %67 = arith.divf %65, %66 : vector<4x384xf32>
    %68 = vector.extract_strided_slice %67 {offsets = [0, 0], sizes = [4, 128], strides = [1, 1]} : vector<4x384xf32> to vector<4x128xf32>
    %69 = vector.extract_strided_slice %67 {offsets = [0, 128], sizes = [4, 128], strides = [1, 1]} : vector<4x384xf32> to vector<4x128xf32>
    %70 = vector.extract_strided_slice %67 {offsets = [0, 256], sizes = [4, 128], strides = [1, 1]} : vector<4x384xf32> to vector<4x128xf32>
    %71 = vector.extract_strided_slice %61 {offsets = [0, 384], sizes = [4, 128], strides = [1, 1]} : vector<4x512xf32> to vector<4x128xf32>
    %72 = math.tanh %71 : vector<4x128xf32>
    %73 = arith.mulf %69, %59 : vector<4x128xf32>
    %74 = arith.mulf %68, %72 : vector<4x128xf32>
    %75 = arith.addf %73, %74 : vector<4x128xf32>
    %76 = math.tanh %75 : vector<4x128xf32>
    %77 = arith.mulf %70, %76 : vector<4x128xf32>
    %78 = tpu.concatenate %77, %59 in 1 : vector<4x128xf32>, vector<4x128xf32> -> vector<4x256xf32>
    %cst_32 = arith.constant dense<0.000000e+00> : vector<4x512xf32>
    %79 = tpu.matmul %78, %2, %cst_32 {dimension_numbers = #tpu.dot_dimension_numbers<[1], [0], [0], [1], [0, 0, 1, 1], [], []>} : vector<4x256xf32>, vector<256x512xf32>, vector<4x512xf32> -> vector<4x512xf32>
    %80 = arith.addf %79, %8 : vector<4x512xf32>
    %81 = vector.extract_strided_slice %80 {offsets = [0, 0], sizes = [4, 384], strides = [1, 1]} : vector<4x512xf32> to vector<4x384xf32>
    %82 = arith.negf %81 : vector<4x384xf32>
    %83 = math.exp %82 : vector<4x384xf32>
    %cst_33 = arith.constant 1.000000e+00 : f32
    %84 = vector.broadcast %cst_33 : f32 to vector<4x384xf32>
    %85 = arith.addf %84, %83 : vector<4x384xf32>
    %86 = arith.divf %84, %85 : vector<4x384xf32>
    %87 = vector.extract_strided_slice %86 {offsets = [0, 0], sizes = [4, 128], strides = [1, 1]} : vector<4x384xf32> to vector<4x128xf32>
    %88 = vector.extract_strided_slice %86 {offsets = [0, 128], sizes = [4, 128], strides = [1, 1]} : vector<4x384xf32> to vector<4x128xf32>
    %89 = vector.extract_strided_slice %86 {offsets = [0, 256], sizes = [4, 128], strides = [1, 1]} : vector<4x384xf32> to vector<4x128xf32>
    %90 = vector.extract_strided_slice %80 {offsets = [0, 384], sizes = [4, 128], strides = [1, 1]} : vector<4x512xf32> to vector<4x128xf32>
    %91 = math.tanh %90 : vector<4x128xf32>
    %92 = arith.mulf %88, %59 : vector<4x128xf32>
    %93 = arith.mulf %87, %91 : vector<4x128xf32>
    %94 = arith.addf %92, %93 : vector<4x128xf32>
    %95 = math.tanh %94 : vector<4x128xf32>
    %96 = arith.mulf %89, %95 : vector<4x128xf32>
    %cst_34 = arith.constant dense<0.000000e+00> : vector<4x512xf32>
    %97 = tpu.matmul %77, %1, %cst_34 {dimension_numbers = #tpu.dot_dimension_numbers<[1], [0], [0], [1], [0, 0, 1, 1], [], []>} : vector<4x128xf32>, vector<128x512xf32>, vector<4x512xf32> -> vector<4x512xf32>
    %98 = arith.addf %22, %97 : vector<4x512xf32>
    %99 = vector.extract_strided_slice %98 {offsets = [0, 0], sizes = [4, 384], strides = [1, 1]} : vector<4x512xf32> to vector<4x384xf32>
    %100 = arith.negf %99 : vector<4x384xf32>
    %101 = math.exp %100 : vector<4x384xf32>
    %cst_35 = arith.constant 1.000000e+00 : f32
    %102 = vector.broadcast %cst_35 : f32 to vector<4x384xf32>
    %103 = arith.addf %102, %101 : vector<4x384xf32>
    %104 = arith.divf %102, %103 : vector<4x384xf32>
    %105 = vector.extract_strided_slice %104 {offsets = [0, 0], sizes = [4, 128], strides = [1, 1]} : vector<4x384xf32> to vector<4x128xf32>
    %106 = vector.extract_strided_slice %104 {offsets = [0, 128], sizes = [4, 128], strides = [1, 1]} : vector<4x384xf32> to vector<4x128xf32>
    %107 = vector.extract_strided_slice %104 {offsets = [0, 256], sizes = [4, 128], strides = [1, 1]} : vector<4x384xf32> to vector<4x128xf32>
    %108 = vector.extract_strided_slice %98 {offsets = [0, 384], sizes = [4, 128], strides = [1, 1]} : vector<4x512xf32> to vector<4x128xf32>
    %109 = math.tanh %108 : vector<4x128xf32>
    %110 = arith.mulf %106, %75 : vector<4x128xf32>
    %111 = arith.mulf %105, %109 : vector<4x128xf32>
    %112 = arith.addf %110, %111 : vector<4x128xf32>
    %113 = math.tanh %112 : vector<4x128xf32>
    %114 = arith.mulf %107, %113 : vector<4x128xf32>
    %115 = tpu.concatenate %114, %96 in 1 : vector<4x128xf32>, vector<4x128xf32> -> vector<4x256xf32>
    %cst_36 = arith.constant dense<0.000000e+00> : vector<4x512xf32>
    %116 = tpu.matmul %115, %2, %cst_36 {dimension_numbers = #tpu.dot_dimension_numbers<[1], [0], [0], [1], [0, 0, 1, 1], [], []>} : vector<4x256xf32>, vector<256x512xf32>, vector<4x512xf32> -> vector<4x512xf32>
    %117 = arith.addf %116, %8 : vector<4x512xf32>
    %118 = vector.extract_strided_slice %117 {offsets = [0, 0], sizes = [4, 384], strides = [1, 1]} : vector<4x512xf32> to vector<4x384xf32>
    %119 = arith.negf %118 : vector<4x384xf32>
    %120 = math.exp %119 : vector<4x384xf32>
    %cst_37 = arith.constant 1.000000e+00 : f32
    %121 = vector.broadcast %cst_37 : f32 to vector<4x384xf32>
    %122 = arith.addf %121, %120 : vector<4x384xf32>
    %123 = arith.divf %121, %122 : vector<4x384xf32>
    %124 = vector.extract_strided_slice %123 {offsets = [0, 0], sizes = [4, 128], strides = [1, 1]} : vector<4x384xf32> to vector<4x128xf32>
    %125 = vector.extract_strided_slice %123 {offsets = [0, 128], sizes = [4, 128], strides = [1, 1]} : vector<4x384xf32> to vector<4x128xf32>
    %126 = vector.extract_strided_slice %123 {offsets = [0, 256], sizes = [4, 128], strides = [1, 1]} : vector<4x384xf32> to vector<4x128xf32>
    %127 = vector.extract_strided_slice %117 {offsets = [0, 384], sizes = [4, 128], strides = [1, 1]} : vector<4x512xf32> to vector<4x128xf32>
    %128 = math.tanh %127 : vector<4x128xf32>
    %129 = arith.mulf %125, %94 : vector<4x128xf32>
    %130 = arith.mulf %124, %128 : vector<4x128xf32>
    %131 = arith.addf %129, %130 : vector<4x128xf32>
    %132 = math.tanh %131 : vector<4x128xf32>
    %133 = arith.mulf %126, %132 : vector<4x128xf32>
    %cst_38 = arith.constant dense<0.000000e+00> : vector<4x512xf32>
    %134 = tpu.matmul %114, %1, %cst_38 {dimension_numbers = #tpu.dot_dimension_numbers<[1], [0], [0], [1], [0, 0, 1, 1], [], []>} : vector<4x128xf32>, vector<128x512xf32>, vector<4x512xf32> -> vector<4x512xf32>
    %135 = arith.addf %28, %134 : vector<4x512xf32>
    %136 = vector.extract_strided_slice %135 {offsets = [0, 0], sizes = [4, 384], strides = [1, 1]} : vector<4x512xf32> to vector<4x384xf32>
    %137 = arith.negf %136 : vector<4x384xf32>
    %138 = math.exp %137 : vector<4x384xf32>
    %cst_39 = arith.constant 1.000000e+00 : f32
    %139 = vector.broadcast %cst_39 : f32 to vector<4x384xf32>
    %140 = arith.addf %139, %138 : vector<4x384xf32>
    %141 = arith.divf %139, %140 : vector<4x384xf32>
    %142 = vector.extract_strided_slice %141 {offsets = [0, 0], sizes = [4, 128], strides = [1, 1]} : vector<4x384xf32> to vector<4x128xf32>
    %143 = vector.extract_strided_slice %141 {offsets = [0, 128], sizes = [4, 128], strides = [1, 1]} : vector<4x384xf32> to vector<4x128xf32>
    %144 = vector.extract_strided_slice %141 {offsets = [0, 256], sizes = [4, 128], strides = [1, 1]} : vector<4x384xf32> to vector<4x128xf32>
    %145 = vector.extract_strided_slice %135 {offsets = [0, 384], sizes = [4, 128], strides = [1, 1]} : vector<4x512xf32> to vector<4x128xf32>
    %146 = math.tanh %145 : vector<4x128xf32>
    %147 = arith.mulf %143, %112 : vector<4x128xf32>
    %148 = arith.mulf %142, %146 : vector<4x128xf32>
    %149 = arith.addf %147, %148 : vector<4x128xf32>
    %150 = math.tanh %149 : vector<4x128xf32>
    %151 = arith.mulf %144, %150 : vector<4x128xf32>
    %152 = tpu.concatenate %151, %133 in 1 : vector<4x128xf32>, vector<4x128xf32> -> vector<4x256xf32>
    %cst_40 = arith.constant dense<0.000000e+00> : vector<4x512xf32>
    %153 = tpu.matmul %152, %2, %cst_40 {dimension_numbers = #tpu.dot_dimension_numbers<[1], [0], [0], [1], [0, 0, 1, 1], [], []>} : vector<4x256xf32>, vector<256x512xf32>, vector<4x512xf32> -> vector<4x512xf32>
    %154 = arith.addf %153, %8 : vector<4x512xf32>
    %155 = vector.extract_strided_slice %154 {offsets = [0, 0], sizes = [4, 384], strides = [1, 1]} : vector<4x512xf32> to vector<4x384xf32>
    %156 = arith.negf %155 : vector<4x384xf32>
    %157 = math.exp %156 : vector<4x384xf32>
    %cst_41 = arith.constant 1.000000e+00 : f32
    %158 = vector.broadcast %cst_41 : f32 to vector<4x384xf32>
    %159 = arith.addf %158, %157 : vector<4x384xf32>
    %160 = arith.divf %158, %159 : vector<4x384xf32>
    %161 = vector.extract_strided_slice %160 {offsets = [0, 0], sizes = [4, 128], strides = [1, 1]} : vector<4x384xf32> to vector<4x128xf32>
    %162 = vector.extract_strided_slice %160 {offsets = [0, 128], sizes = [4, 128], strides = [1, 1]} : vector<4x384xf32> to vector<4x128xf32>
    %163 = vector.extract_strided_slice %160 {offsets = [0, 256], sizes = [4, 128], strides = [1, 1]} : vector<4x384xf32> to vector<4x128xf32>
    %164 = vector.extract_strided_slice %154 {offsets = [0, 384], sizes = [4, 128], strides = [1, 1]} : vector<4x512xf32> to vector<4x128xf32>
    %165 = math.tanh %164 : vector<4x128xf32>
    %166 = arith.mulf %162, %131 : vector<4x128xf32>
    %167 = arith.mulf %161, %165 : vector<4x128xf32>
    %168 = arith.addf %166, %167 : vector<4x128xf32>
    %169 = math.tanh %168 : vector<4x128xf32>
    %170 = arith.mulf %163, %169 : vector<4x128xf32>
    %cst_42 = arith.constant dense<0.000000e+00> : vector<4x512xf32>
    %171 = tpu.matmul %151, %1, %cst_42 {dimension_numbers = #tpu.dot_dimension_numbers<[1], [0], [0], [1], [0, 0, 1, 1], [], []>} : vector<4x128xf32>, vector<128x512xf32>, vector<4x512xf32> -> vector<4x512xf32>
    %172 = arith.addf %34, %171 : vector<4x512xf32>
    %173 = vector.extract_strided_slice %172 {offsets = [0, 0], sizes = [4, 384], strides = [1, 1]} : vector<4x512xf32> to vector<4x384xf32>
    %174 = arith.negf %173 : vector<4x384xf32>
    %175 = math.exp %174 : vector<4x384xf32>
    %cst_43 = arith.constant 1.000000e+00 : f32
    %176 = vector.broadcast %cst_43 : f32 to vector<4x384xf32>
    %177 = arith.addf %176, %175 : vector<4x384xf32>
    %178 = arith.divf %176, %177 : vector<4x384xf32>
    %179 = vector.extract_strided_slice %178 {offsets = [0, 0], sizes = [4, 128], strides = [1, 1]} : vector<4x384xf32> to vector<4x128xf32>
    %180 = vector.extract_strided_slice %178 {offsets = [0, 128], sizes = [4, 128], strides = [1, 1]} : vector<4x384xf32> to vector<4x128xf32>
    %181 = vector.extract_strided_slice %178 {offsets = [0, 256], sizes = [4, 128], strides = [1, 1]} : vector<4x384xf32> to vector<4x128xf32>
    %182 = vector.extract_strided_slice %172 {offsets = [0, 384], sizes = [4, 128], strides = [1, 1]} : vector<4x512xf32> to vector<4x128xf32>
    %183 = math.tanh %182 : vector<4x128xf32>
    %184 = arith.mulf %180, %149 : vector<4x128xf32>
    %185 = arith.mulf %179, %183 : vector<4x128xf32>
    %186 = arith.addf %184, %185 : vector<4x128xf32>
    %187 = math.tanh %186 : vector<4x128xf32>
    %188 = arith.mulf %181, %187 : vector<4x128xf32>
    %189 = tpu.concatenate %188, %170 in 1 : vector<4x128xf32>, vector<4x128xf32> -> vector<4x256xf32>
    %cst_44 = arith.constant dense<0.000000e+00> : vector<4x512xf32>
    %190 = tpu.matmul %189, %2, %cst_44 {dimension_numbers = #tpu.dot_dimension_numbers<[1], [0], [0], [1], [0, 0, 1, 1], [], []>} : vector<4x256xf32>, vector<256x512xf32>, vector<4x512xf32> -> vector<4x512xf32>
    %191 = arith.addf %190, %8 : vector<4x512xf32>
    %192 = vector.extract_strided_slice %191 {offsets = [0, 0], sizes = [4, 384], strides = [1, 1]} : vector<4x512xf32> to vector<4x384xf32>
    %193 = arith.negf %192 : vector<4x384xf32>
    %194 = math.exp %193 : vector<4x384xf32>
    %cst_45 = arith.constant 1.000000e+00 : f32
    %195 = vector.broadcast %cst_45 : f32 to vector<4x384xf32>
    %196 = arith.addf %195, %194 : vector<4x384xf32>
    %197 = arith.divf %195, %196 : vector<4x384xf32>
    %198 = vector.extract_strided_slice %197 {offsets = [0, 0], sizes = [4, 128], strides = [1, 1]} : vector<4x384xf32> to vector<4x128xf32>
    %199 = vector.extract_strided_slice %197 {offsets = [0, 128], sizes = [4, 128], strides = [1, 1]} : vector<4x384xf32> to vector<4x128xf32>
    %200 = vector.extract_strided_slice %197 {offsets = [0, 256], sizes = [4, 128], strides = [1, 1]} : vector<4x384xf32> to vector<4x128xf32>
    %201 = vector.extract_strided_slice %191 {offsets = [0, 384], sizes = [4, 128], strides = [1, 1]} : vector<4x512xf32> to vector<4x128xf32>
    %202 = math.tanh %201 : vector<4x128xf32>
    %203 = arith.mulf %199, %168 : vector<4x128xf32>
    %204 = arith.mulf %198, %202 : vector<4x128xf32>
    %205 = arith.addf %203, %204 : vector<4x128xf32>
    %206 = math.tanh %205 : vector<4x128xf32>
    %207 = arith.mulf %200, %206 : vector<4x128xf32>
    %cst_46 = arith.constant dense<0.000000e+00> : vector<4x512xf32>
    %208 = tpu.matmul %188, %1, %cst_46 {dimension_numbers = #tpu.dot_dimension_numbers<[1], [0], [0], [1], [0, 0, 1, 1], [], []>} : vector<4x128xf32>, vector<128x512xf32>, vector<4x512xf32> -> vector<4x512xf32>
    %209 = arith.addf %40, %208 : vector<4x512xf32>
    %210 = vector.extract_strided_slice %209 {offsets = [0, 0], sizes = [4, 384], strides = [1, 1]} : vector<4x512xf32> to vector<4x384xf32>
    %211 = arith.negf %210 : vector<4x384xf32>
    %212 = math.exp %211 : vector<4x384xf32>
    %cst_47 = arith.constant 1.000000e+00 : f32
    %213 = vector.broadcast %cst_47 : f32 to vector<4x384xf32>
    %214 = arith.addf %213, %212 : vector<4x384xf32>
    %215 = arith.divf %213, %214 : vector<4x384xf32>
    %216 = vector.extract_strided_slice %215 {offsets = [0, 0], sizes = [4, 128], strides = [1, 1]} : vector<4x384xf32> to vector<4x128xf32>
    %217 = vector.extract_strided_slice %215 {offsets = [0, 128], sizes = [4, 128], strides = [1, 1]} : vector<4x384xf32> to vector<4x128xf32>
    %218 = vector.extract_strided_slice %215 {offsets = [0, 256], sizes = [4, 128], strides = [1, 1]} : vector<4x384xf32> to vector<4x128xf32>
    %219 = vector.extract_strided_slice %209 {offsets = [0, 384], sizes = [4, 128], strides = [1, 1]} : vector<4x512xf32> to vector<4x128xf32>
    %220 = math.tanh %219 : vector<4x128xf32>
    %221 = arith.mulf %217, %186 : vector<4x128xf32>
    %222 = arith.mulf %216, %220 : vector<4x128xf32>
    %223 = arith.addf %221, %222 : vector<4x128xf32>
    %224 = math.tanh %223 : vector<4x128xf32>
    %225 = arith.mulf %218, %224 : vector<4x128xf32>
    %226 = tpu.concatenate %225, %207 in 1 : vector<4x128xf32>, vector<4x128xf32> -> vector<4x256xf32>
    %cst_48 = arith.constant dense<0.000000e+00> : vector<4x512xf32>
    %227 = tpu.matmul %226, %2, %cst_48 {dimension_numbers = #tpu.dot_dimension_numbers<[1], [0], [0], [1], [0, 0, 1, 1], [], []>} : vector<4x256xf32>, vector<256x512xf32>, vector<4x512xf32> -> vector<4x512xf32>
    %228 = arith.addf %227, %8 : vector<4x512xf32>
    %229 = vector.extract_strided_slice %228 {offsets = [0, 0], sizes = [4, 384], strides = [1, 1]} : vector<4x512xf32> to vector<4x384xf32>
    %230 = arith.negf %229 : vector<4x384xf32>
    %231 = math.exp %230 : vector<4x384xf32>
    %cst_49 = arith.constant 1.000000e+00 : f32
    %232 = vector.broadcast %cst_49 : f32 to vector<4x384xf32>
    %233 = arith.addf %232, %231 : vector<4x384xf32>
    %234 = arith.divf %232, %233 : vector<4x384xf32>
    %235 = vector.extract_strided_slice %234 {offsets = [0, 0], sizes = [4, 128], strides = [1, 1]} : vector<4x384xf32> to vector<4x128xf32>
    %236 = vector.extract_strided_slice %234 {offsets = [0, 128], sizes = [4, 128], strides = [1, 1]} : vector<4x384xf32> to vector<4x128xf32>
    %237 = vector.extract_strided_slice %234 {offsets = [0, 256], sizes = [4, 128], strides = [1, 1]} : vector<4x384xf32> to vector<4x128xf32>
    %238 = vector.extract_strided_slice %228 {offsets = [0, 384], sizes = [4, 128], strides = [1, 1]} : vector<4x512xf32> to vector<4x128xf32>
    %239 = math.tanh %238 : vector<4x128xf32>
    %240 = arith.mulf %236, %205 : vector<4x128xf32>
    %241 = arith.mulf %235, %239 : vector<4x128xf32>
    %242 = arith.addf %240, %241 : vector<4x128xf32>
    %243 = math.tanh %242 : vector<4x128xf32>
    %244 = arith.mulf %237, %243 : vector<4x128xf32>
    %cst_50 = arith.constant dense<0.000000e+00> : vector<4x512xf32>
    %245 = tpu.matmul %225, %1, %cst_50 {dimension_numbers = #tpu.dot_dimension_numbers<[1], [0], [0], [1], [0, 0, 1, 1], [], []>} : vector<4x128xf32>, vector<128x512xf32>, vector<4x512xf32> -> vector<4x512xf32>
    %246 = arith.addf %46, %245 : vector<4x512xf32>
    %247 = vector.extract_strided_slice %246 {offsets = [0, 0], sizes = [4, 384], strides = [1, 1]} : vector<4x512xf32> to vector<4x384xf32>
    %248 = arith.negf %247 : vector<4x384xf32>
    %249 = math.exp %248 : vector<4x384xf32>
    %cst_51 = arith.constant 1.000000e+00 : f32
    %250 = vector.broadcast %cst_51 : f32 to vector<4x384xf32>
    %251 = arith.addf %250, %249 : vector<4x384xf32>
    %252 = arith.divf %250, %251 : vector<4x384xf32>
    %253 = vector.extract_strided_slice %252 {offsets = [0, 0], sizes = [4, 128], strides = [1, 1]} : vector<4x384xf32> to vector<4x128xf32>
    %254 = vector.extract_strided_slice %252 {offsets = [0, 128], sizes = [4, 128], strides = [1, 1]} : vector<4x384xf32> to vector<4x128xf32>
    %255 = vector.extract_strided_slice %252 {offsets = [0, 256], sizes = [4, 128], strides = [1, 1]} : vector<4x384xf32> to vector<4x128xf32>
    %256 = vector.extract_strided_slice %246 {offsets = [0, 384], sizes = [4, 128], strides = [1, 1]} : vector<4x512xf32> to vector<4x128xf32>
    %257 = math.tanh %256 : vector<4x128xf32>
    %258 = arith.mulf %254, %223 : vector<4x128xf32>
    %259 = arith.mulf %253, %257 : vector<4x128xf32>
    %260 = arith.addf %258, %259 : vector<4x128xf32>
    %261 = math.tanh %260 : vector<4x128xf32>
    %262 = arith.mulf %255, %261 : vector<4x128xf32>
    %263 = tpu.concatenate %262, %244 in 1 : vector<4x128xf32>, vector<4x128xf32> -> vector<4x256xf32>
    %cst_52 = arith.constant dense<0.000000e+00> : vector<4x512xf32>
    %264 = tpu.matmul %263, %2, %cst_52 {dimension_numbers = #tpu.dot_dimension_numbers<[1], [0], [0], [1], [0, 0, 1, 1], [], []>} : vector<4x256xf32>, vector<256x512xf32>, vector<4x512xf32> -> vector<4x512xf32>
    %265 = arith.addf %264, %8 : vector<4x512xf32>
    %266 = vector.extract_strided_slice %265 {offsets = [0, 0], sizes = [4, 384], strides = [1, 1]} : vector<4x512xf32> to vector<4x384xf32>
    %267 = arith.negf %266 : vector<4x384xf32>
    %268 = math.exp %267 : vector<4x384xf32>
    %cst_53 = arith.constant 1.000000e+00 : f32
    %269 = vector.broadcast %cst_53 : f32 to vector<4x384xf32>
    %270 = arith.addf %269, %268 : vector<4x384xf32>
    %271 = arith.divf %269, %270 : vector<4x384xf32>
    %272 = vector.extract_strided_slice %271 {offsets = [0, 0], sizes = [4, 128], strides = [1, 1]} : vector<4x384xf32> to vector<4x128xf32>
    %273 = vector.extract_strided_slice %271 {offsets = [0, 128], sizes = [4, 128], strides = [1, 1]} : vector<4x384xf32> to vector<4x128xf32>
    %274 = vector.extract_strided_slice %271 {offsets = [0, 256], sizes = [4, 128], strides = [1, 1]} : vector<4x384xf32> to vector<4x128xf32>
    %275 = vector.extract_strided_slice %265 {offsets = [0, 384], sizes = [4, 128], strides = [1, 1]} : vector<4x512xf32> to vector<4x128xf32>
    %276 = math.tanh %275 : vector<4x128xf32>
    %277 = arith.mulf %273, %242 : vector<4x128xf32>
    %278 = arith.mulf %272, %276 : vector<4x128xf32>
    %279 = arith.addf %277, %278 : vector<4x128xf32>
    %280 = math.tanh %279 : vector<4x128xf32>
    %281 = arith.mulf %274, %280 : vector<4x128xf32>
    %cst_54 = arith.constant dense<0.000000e+00> : vector<4x512xf32>
    %282 = tpu.matmul %262, %1, %cst_54 {dimension_numbers = #tpu.dot_dimension_numbers<[1], [0], [0], [1], [0, 0, 1, 1], [], []>} : vector<4x128xf32>, vector<128x512xf32>, vector<4x512xf32> -> vector<4x512xf32>
    %283 = arith.addf %52, %282 : vector<4x512xf32>
    %284 = vector.extract_strided_slice %283 {offsets = [0, 0], sizes = [4, 384], strides = [1, 1]} : vector<4x512xf32> to vector<4x384xf32>
    %285 = arith.negf %284 : vector<4x384xf32>
    %286 = math.exp %285 : vector<4x384xf32>
    %cst_55 = arith.constant 1.000000e+00 : f32
    %287 = vector.broadcast %cst_55 : f32 to vector<4x384xf32>
    %288 = arith.addf %287, %286 : vector<4x384xf32>
    %289 = arith.divf %287, %288 : vector<4x384xf32>
    %290 = vector.extract_strided_slice %289 {offsets = [0, 0], sizes = [4, 128], strides = [1, 1]} : vector<4x384xf32> to vector<4x128xf32>
    %291 = vector.extract_strided_slice %289 {offsets = [0, 128], sizes = [4, 128], strides = [1, 1]} : vector<4x384xf32> to vector<4x128xf32>
    %292 = vector.extract_strided_slice %289 {offsets = [0, 256], sizes = [4, 128], strides = [1, 1]} : vector<4x384xf32> to vector<4x128xf32>
    %293 = vector.extract_strided_slice %283 {offsets = [0, 384], sizes = [4, 128], strides = [1, 1]} : vector<4x512xf32> to vector<4x128xf32>
    %294 = math.tanh %293 : vector<4x128xf32>
    %295 = arith.mulf %291, %260 : vector<4x128xf32>
    %296 = arith.mulf %290, %294 : vector<4x128xf32>
    %297 = arith.addf %295, %296 : vector<4x128xf32>
    %298 = math.tanh %297 : vector<4x128xf32>
    %299 = arith.mulf %292, %298 : vector<4x128xf32>
    %300 = tpu.concatenate %299, %281 in 1 : vector<4x128xf32>, vector<4x128xf32> -> vector<4x256xf32>
    %cst_56 = arith.constant dense<0.000000e+00> : vector<4x512xf32>
    %301 = tpu.matmul %300, %2, %cst_56 {dimension_numbers = #tpu.dot_dimension_numbers<[1], [0], [0], [1], [0, 0, 1, 1], [], []>} : vector<4x256xf32>, vector<256x512xf32>, vector<4x512xf32> -> vector<4x512xf32>
    %302 = arith.addf %301, %8 : vector<4x512xf32>
    %303 = vector.extract_strided_slice %302 {offsets = [0, 0], sizes = [4, 384], strides = [1, 1]} : vector<4x512xf32> to vector<4x384xf32>
    %304 = arith.negf %303 : vector<4x384xf32>
    %305 = math.exp %304 : vector<4x384xf32>
    %cst_57 = arith.constant 1.000000e+00 : f32
    %306 = vector.broadcast %cst_57 : f32 to vector<4x384xf32>
    %307 = arith.addf %306, %305 : vector<4x384xf32>
    %308 = arith.divf %306, %307 : vector<4x384xf32>
    %309 = vector.extract_strided_slice %308 {offsets = [0, 0], sizes = [4, 128], strides = [1, 1]} : vector<4x384xf32> to vector<4x128xf32>
    %310 = vector.extract_strided_slice %308 {offsets = [0, 128], sizes = [4, 128], strides = [1, 1]} : vector<4x384xf32> to vector<4x128xf32>
    %311 = vector.extract_strided_slice %308 {offsets = [0, 256], sizes = [4, 128], strides = [1, 1]} : vector<4x384xf32> to vector<4x128xf32>
    %312 = vector.extract_strided_slice %302 {offsets = [0, 384], sizes = [4, 128], strides = [1, 1]} : vector<4x512xf32> to vector<4x128xf32>
    %313 = math.tanh %312 : vector<4x128xf32>
    %314 = arith.mulf %310, %279 : vector<4x128xf32>
    %315 = arith.mulf %309, %313 : vector<4x128xf32>
    %316 = arith.addf %314, %315 : vector<4x128xf32>
    %317 = math.tanh %316 : vector<4x128xf32>
    %318 = arith.mulf %311, %317 : vector<4x128xf32>
    %cst_58 = arith.constant dense<0.000000e+00> : vector<4x512xf32>
    %319 = tpu.matmul %299, %1, %cst_58 {dimension_numbers = #tpu.dot_dimension_numbers<[1], [0], [0], [1], [0, 0, 1, 1], [], []>} : vector<4x128xf32>, vector<128x512xf32>, vector<4x512xf32> -> vector<4x512xf32>
    %320 = arith.addf %58, %319 : vector<4x512xf32>
    %321 = vector.extract_strided_slice %320 {offsets = [0, 0], sizes = [4, 384], strides = [1, 1]} : vector<4x512xf32> to vector<4x384xf32>
    %322 = arith.negf %321 : vector<4x384xf32>
    %323 = math.exp %322 : vector<4x384xf32>
    %cst_59 = arith.constant 1.000000e+00 : f32
    %324 = vector.broadcast %cst_59 : f32 to vector<4x384xf32>
    %325 = arith.addf %324, %323 : vector<4x384xf32>
    %326 = arith.divf %324, %325 : vector<4x384xf32>
    %327 = vector.extract_strided_slice %326 {offsets = [0, 0], sizes = [4, 128], strides = [1, 1]} : vector<4x384xf32> to vector<4x128xf32>
    %328 = vector.extract_strided_slice %326 {offsets = [0, 128], sizes = [4, 128], strides = [1, 1]} : vector<4x384xf32> to vector<4x128xf32>
    %329 = vector.extract_strided_slice %326 {offsets = [0, 256], sizes = [4, 128], strides = [1, 1]} : vector<4x384xf32> to vector<4x128xf32>
    %330 = vector.extract_strided_slice %320 {offsets = [0, 384], sizes = [4, 128], strides = [1, 1]} : vector<4x512xf32> to vector<4x128xf32>
    %331 = math.tanh %330 : vector<4x128xf32>
    %332 = arith.mulf %328, %297 : vector<4x128xf32>
    %333 = arith.mulf %327, %331 : vector<4x128xf32>
    %334 = arith.addf %332, %333 : vector<4x128xf32>
    %335 = math.tanh %334 : vector<4x128xf32>
    %336 = arith.mulf %329, %335 : vector<4x128xf32>
    %337 = tpu.concatenate %336, %318 in 1 : vector<4x128xf32>, vector<4x128xf32> -> vector<4x256xf32>
    %cst_60 = arith.constant dense<0.000000e+00> : vector<4x512xf32>
    %338 = tpu.matmul %337, %2, %cst_60 {dimension_numbers = #tpu.dot_dimension_numbers<[1], [0], [0], [1], [0, 0, 1, 1], [], []>} : vector<4x256xf32>, vector<256x512xf32>, vector<4x512xf32> -> vector<4x512xf32>
    %339 = arith.addf %338, %8 : vector<4x512xf32>
    %340 = vector.extract_strided_slice %339 {offsets = [0, 0], sizes = [4, 384], strides = [1, 1]} : vector<4x512xf32> to vector<4x384xf32>
    %341 = arith.negf %340 : vector<4x384xf32>
    %342 = math.exp %341 : vector<4x384xf32>
    %cst_61 = arith.constant 1.000000e+00 : f32
    %343 = vector.broadcast %cst_61 : f32 to vector<4x384xf32>
    %344 = arith.addf %343, %342 : vector<4x384xf32>
    %345 = arith.divf %343, %344 : vector<4x384xf32>
    %346 = vector.extract_strided_slice %345 {offsets = [0, 0], sizes = [4, 128], strides = [1, 1]} : vector<4x384xf32> to vector<4x128xf32>
    %347 = vector.extract_strided_slice %345 {offsets = [0, 128], sizes = [4, 128], strides = [1, 1]} : vector<4x384xf32> to vector<4x128xf32>
    %348 = vector.extract_strided_slice %345 {offsets = [0, 256], sizes = [4, 128], strides = [1, 1]} : vector<4x384xf32> to vector<4x128xf32>
    %349 = vector.extract_strided_slice %339 {offsets = [0, 384], sizes = [4, 128], strides = [1, 1]} : vector<4x512xf32> to vector<4x128xf32>
    %350 = math.tanh %349 : vector<4x128xf32>
    %351 = arith.mulf %347, %316 : vector<4x128xf32>
    %352 = arith.mulf %346, %350 : vector<4x128xf32>
    %353 = arith.addf %351, %352 : vector<4x128xf32>
    %354 = math.tanh %353 : vector<4x128xf32>
    %355 = arith.mulf %348, %354 : vector<4x128xf32>
    %356 = vector.broadcast %9 : vector<1x128xf32> to vector<4x128xf32>
    %357 = arith.mulf %355, %356 : vector<4x128xf32>
    %cst_62 = arith.constant dense<0.000000e+00> : vector<4xf32>
    %358 = vector.multi_reduction <add>, %357, %cst_62 [1] : vector<4x128xf32> to vector<4xf32>
    %359 = vector.shape_cast %358 : vector<4xf32> to vector<4x1xf32>
    %360 = vector.broadcast %10 : vector<1x1xf32> to vector<4x1xf32>
    %361 = arith.addf %359, %360 : vector<4x1xf32>
    %c0_63 = arith.constant 0 : index
    %c0_64 = arith.constant 0 : index
    %362 = vector.load %arg8[%c0_63, %c0_64] : memref<4x1xf32, #tpu.memory_space<vmem>>, vector<4x1xf32>
    tpu.vector_store %arg8[%c0_63, %c0_64], %361 {strides = array<i32>} : memref<4x1xf32, #tpu.memory_space<vmem>>, vector<4x1xf32>,
    return
  }
}

</mosaic_0001>

<llo_original>
// kernel: tpu_custom_call.1
$region0: #{tpu_custom_call.1}
  #allocation0 [shape = 'u32[]', space=smem, size = 0x4, offset = 0x4, fixed_abs, tag = 'smem constant byte address 0x4 - core index']
  #allocation1 [shape = 'u32[144,128]{1,0:T(1,128)}', space=vmem, size = 0x12000, scoped, tag = 'internal scratch']
  #allocation2 [shape = 'f32[1,1]{1,0:T(1,128)S(1)}', space=vmem, size = 0x200, scoped, tag = 'scoped memory for tpu_custom_call.1']
  %s0 = inlined_call_operand.vmem [shape: f32[8,4,1], index: 0, kind: input, shape index: {}]
  %s1 = inlined_call_operand.vmem [shape: f32[1,512], index: 1, kind: input, shape index: {}]
  %s2 = inlined_call_operand.hbm [shape: f32[128,512], index: 2, kind: input, shape index: {}]
  %s3 = inlined_call_operand.vmem [shape: f32[1,512], index: 3, kind: input, shape index: {}]
  %s4 = inlined_call_operand.hbm [shape: f32[256,512], index: 4, kind: input, shape index: {}]
  %s5 = inlined_call_operand.vmem [shape: f32[1,512], index: 5, kind: input, shape index: {}]
  %s6 = inlined_call_operand.vmem [shape: f32[1,128], index: 6, kind: input, shape index: {}]
  %s7 = inlined_call_operand.<no memory space> [shape: f32[1,1], index: 7, kind: input, shape index: {}]
  %s8 = inlined_call_operand.vmem [shape: f32[4,1], index: 8, kind: output, shape index: {}]
  %s9 = sld [smem:[#allocation0]]
  $region50: #{tpu_custom_call.1} parent=0
    _
  %s11 = ssub.s32 1, %s9
  %s12 = scalar_select 0, %s11, %s9
  %v13 = vstv %s7
  %14 = vst [vmem:[#allocation2] sm:$0x1] %v13
  $region1: #{tpu_custom_call.1} parent=0
    #allocation3 [shape = 'u8[262144]{0}', space=vmem, size = 0x40000, scoped, tag = 'input window, operand 2, single buffered']
    #allocation4 [shape = 's32[1]{0}', space=sflag, size = 0x4, scoped, tag = 'scoped memory for tpu_custom_call.1']
    #allocation5 [shape = 'u8[524288]{0}', space=vmem, size = 0x80000, scoped, tag = 'input window, operand 4, single buffered']
    #allocation6 [shape = 's32[1]{0}', space=sflag, size = 0x4, scoped, tag = 'scoped memory for tpu_custom_call.1']
    %15 = vsyncpa [#allocation4], 0
    %16 = vsyncpa [#allocation6], 0
    // Predicated region
    $region2: #{tpu_custom_call.1} parent=1 // pred_check
      _
    $region3: #{tpu_custom_call.1} parent=1 // pred_check_branch
      %18 = sbr.rel (0) target = $region5
    $region4: #{tpu_custom_call.1} parent=1 // pred_region
      _
    $region5: #{tpu_custom_call.1} parent=1 // pred_fallthru
      _
    // Predicated region
    $region6: #{tpu_custom_call.1} parent=1 // pred_check
      _
    $region7: #{tpu_custom_call.1} parent=1 // pred_check_branch
      %20 = sbr.rel (0) target = $region9
    $region8: #{tpu_custom_call.1} parent=1 // pred_region
      _
    $region9: #{tpu_custom_call.1} parent=1 // pred_fallthru
      _
    // Predicated region
    $region10: #{tpu_custom_call.1} parent=1 // pred_check
      _
    $region11: #{tpu_custom_call.1} parent=1 // pred_check_branch
      %22 = sbr.rel (0) target = $region13
    $region12: #{tpu_custom_call.1} parent=1 // pred_region
      %s24 = ssub.s32 8192, 8192
      %25 = vsyncadd [#allocation4], %s24
      %s26 = sshll.u32 [#allocation3], 4
      %s27 = int_to_ptr.vmem [resolvable:$true] %s26
      %32 = dma.hbm_to_vmem [thread:$0]  %s2, 8192, %s27, [#allocation4], 512, 512, 32
    $region13: #{tpu_custom_call.1} parent=1 // pred_fallthru
      _
    // Predicated region
    $region14: #{tpu_custom_call.1} parent=1 // pred_check
      _
    $region15: #{tpu_custom_call.1} parent=1 // pred_check_branch
      %34 = sbr.rel (0) target = $region17
    $region16: #{tpu_custom_call.1} parent=1 // pred_region
      _
    $region17: #{tpu_custom_call.1} parent=1 // pred_fallthru
      _
    // Predicated region
    $region18: #{tpu_custom_call.1} parent=1 // pred_check
      _
    $region19: #{tpu_custom_call.1} parent=1 // pred_check_branch
      %36 = sbr.rel (0) target = $region21
    $region20: #{tpu_custom_call.1} parent=1 // pred_region
      %s38 = ssub.s32 16384, 16384
      %39 = vsyncadd [#allocation6], %s38
      %s40 = sshll.u32 [#allocation5], 4
      %s41 = int_to_ptr.vmem [resolvable:$true] %s40
      %46 = dma.hbm_to_vmem [thread:$0]  %s4, 16384, %s41, [#allocation6], 512, 512, 32
    $region21: #{tpu_custom_call.1} parent=1 // pred_fallthru
      _
    // Predicated region
    $region22: #{tpu_custom_call.1} parent=1 // pred_check
      _
    $region23: #{tpu_custom_call.1} parent=1 // pred_check_branch
      %48 = sbr.rel (0) target = $region25
    $region24: #{tpu_custom_call.1} parent=1 // pred_region
      _
    $region25: #{tpu_custom_call.1} parent=1 // pred_fallthru
      _
    // Predicated region
    $region26: #{tpu_custom_call.1} parent=1 // pred_check
      _
    $region27: #{tpu_custom_call.1} parent=1 // pred_check_branch
      %50 = sbr.rel (0) target = $region29
    $region28: #{tpu_custom_call.1} parent=1 // pred_region
      _
    $region29: #{tpu_custom_call.1} parent=1 // pred_fallthru
      _
    // Predicated region
    $region30: #{tpu_custom_call.1} parent=1 // pred_check
      _
    $region31: #{tpu_custom_call.1} parent=1 // pred_check_branch
      %52 = sbr.rel (0) target = $region33
    $region32: #{tpu_custom_call.1} parent=1 // pred_region
      _
    $region33: #{tpu_custom_call.1} parent=1 // pred_fallthru
      _
    // Predicated region
    $region34: #{tpu_custom_call.1} parent=1 // pred_check
      _
    $region35: #{tpu_custom_call.1} parent=1 // pred_check_branch
      %54 = sbr.rel (0) target = $region37
    $region36: #{tpu_custom_call.1} parent=1 // pred_region
      %55 = dma.done [#allocation4], 8192
    $region37: #{tpu_custom_call.1} parent=1 // pred_fallthru
      _
    // Predicated region
    $region38: #{tpu_custom_call.1} parent=1 // pred_check
      _
    $region39: #{tpu_custom_call.1} parent=1 // pred_check_branch
      %57 = sbr.rel (0) target = $region41
    $region40: #{tpu_custom_call.1} parent=1 // pred_region
      %58 = dma.done [#allocation6], 16384
    $region41: #{tpu_custom_call.1} parent=1 // pred_fallthru
      _
    %v59 = vld [vmem:[%s1] sm:$0xf]
    %v60 = vld [vmem:[#allocation3] sm:$0xff]
    %v61 = vld [vmem:[#allocation3 + $0x8] sm:$0xff]
    %v62 = vld [vmem:[#allocation3 + $0x10] sm:$0xff]
    %v63 = vld [vmem:[#allocation3 + $0x18] sm:$0xff]
    %v64 = vld [vmem:[#allocation3 + $0x20] sm:$0xff]
    %v65 = vld [vmem:[#allocation3 + $0x28] sm:$0xff]
    %v66 = vld [vmem:[#allocation3 + $0x30] sm:$0xff]
    %v67 = vld [vmem:[#allocation3 + $0x38] sm:$0xff]
    %v68 = vld [vmem:[#allocation3 + $0x40] sm:$0xff]
    %v69 = vld [vmem:[#allocation3 + $0x48] sm:$0xff]
    %v70 = vld [vmem:[#allocation3 + $0x50] sm:$0xff]
    %v71 = vld [vmem:[#allocation3 + $0x58] sm:$0xff]
    %v72 = vld [vmem:[#allocation3 + $0x60] sm:$0xff]
    %v73 = vld [vmem:[#allocation3 + $0x68] sm:$0xff]
    %v74 = vld [vmem:[#allocation3 + $0x70] sm:$0xff]
    %v75 = vld [vmem:[#allocation3 + $0x78] sm:$0xff]
    %v76 = vld [vmem:[#allocation3 + $0x80] sm:$0xff]
    %v77 = vld [vmem:[#allocation3 + $0x88] sm:$0xff]
    %v78 = vld [vmem:[#allocation3 + $0x90] sm:$0xff]
    %v79 = vld [vmem:[#allocation3 + $0x98] sm:$0xff]
    %v80 = vld [vmem:[#allocation3 + $0xa0] sm:$0xff]
    %v81 = vld [vmem:[#allocation3 + $0xa8] sm:$0xff]
    %v82 = vld [vmem:[#allocation3 + $0xb0] sm:$0xff]
    %v83 = vld [vmem:[#allocation3 + $0xb8] sm:$0xff]
    %v84 = vld [vmem:[#allocation3 + $0xc0] sm:$0xff]
    %v85 = vld [vmem:[#allocation3 + $0xc8] sm:$0xff]
    %v86 = vld [vmem:[#allocation3 + $0xd0] sm:$0xff]
    %v87 = vld [vmem:[#allocation3 + $0xd8] sm:$0xff]
    %v88 = vld [vmem:[#allocation3 + $0xe0] sm:$0xff]
    %v89 = vld [vmem:[#allocation3 + $0xe8] sm:$0xff]
    %v90 = vld [vmem:[#allocation3 + $0xf0] sm:$0xff]
    %v91 = vld [vmem:[#allocation3 + $0xf8] sm:$0xff]
    %v92 = vld [vmem:[#allocation3 + $0x100] sm:$0xff]
    %v93 = vld [vmem:[#allocation3 + $0x108] sm:$0xff]
    %v94 = vld [vmem:[#allocation3 + $0x110] sm:$0xff]
    %v95 = vld [vmem:[#allocation3 + $0x118] sm:$0xff]
    %v96 = vld [vmem:[#allocation3 + $0x120] sm:$0xff]
    %v97 = vld [vmem:[#allocation3 + $0x128] sm:$0xff]
    %v98 = vld [vmem:[#allocation3 + $0x130] sm:$0xff]
    %v99 = vld [vmem:[#allocation3 + $0x138] sm:$0xff]
    %v100 = vld [vmem:[#allocation3 + $0x140] sm:$0xff]
    %v101 = vld [vmem:[#allocation3 + $0x148] sm:$0xff]
    %v102 = vld [vmem:[#allocation3 + $0x150] sm:$0xff]
    %v103 = vld [vmem:[#allocation3 + $0x158] sm:$0xff]
    %v104 = vld [vmem:[#allocation3 + $0x160] sm:$0xff]
    %v105 = vld [vmem:[#allocation3 + $0x168] sm:$0xff]
    %v106 = vld [vmem:[#allocation3 + $0x170] sm:$0xff]
    %v107 = vld [vmem:[#allocation3 + $0x178] sm:$0xff]
    %v108 = vld [vmem:[#allocation3 + $0x180] sm:$0xff]
    %v109 = vld [vmem:[#allocation3 + $0x188] sm:$0xff]
    %v110 = vld [vmem:[#allocation3 + $0x190] sm:$0xff]
    %v111 = vld [vmem:[#allocation3 + $0x198] sm:$0xff]
    %v112 = vld [vmem:[#allocation3 + $0x1a0] sm:$0xff]
    %v113 = vld [vmem:[#allocation3 + $0x1a8] sm:$0xff]
    %v114 = vld [vmem:[#allocation3 + $0x1b0] sm:$0xff]
    %v115 = vld [vmem:[#allocation3 + $0x1b8] sm:$0xff]
    %v116 = vld [vmem:[#allocation3 + $0x1c0] sm:$0xff]
    %v117 = vld [vmem:[#allocation3 + $0x1c8] sm:$0xff]
    %v118 = vld [vmem:[#allocation3 + $0x1d0] sm:$0xff]
    %v119 = vld [vmem:[#allocation3 + $0x1d8] sm:$0xff]
    %v120 = vld [vmem:[#allocation3 + $0x1e0] sm:$0xff]
    %v121 = vld [vmem:[#allocation3 + $0x1e8] sm:$0xff]
    %v122 = vld [vmem:[#allocation3 + $0x1f0] sm:$0xff]
    %v123 = vld [vmem:[#allocation3 + $0x1f8] sm:$0xff]
    %v124 = vld [vmem:[#allocation5] sm:$0xff]
    %v125 = vld [vmem:[#allocation5 + $0x8] sm:$0xff]
    %v126 = vld [vmem:[#allocation5 + $0x10] sm:$0xff]
    %v127 = vld [vmem:[#allocation5 + $0x18] sm:$0xff]
    %v128 = vld [vmem:[#allocation5 + $0x20] sm:$0xff]
    %v129 = vld [vmem:[#allocation5 + $0x28] sm:$0xff]
    %v130 = vld [vmem:[#allocation5 + $0x30] sm:$0xff]
    %v131 = vld [vmem:[#allocation5 + $0x38] sm:$0xff]
    %v132 = vld [vmem:[#allocation5 + $0x40] sm:$0xff]
    %v133 = vld [vmem:[#allocation5 + $0x48] sm:$0xff]
    %v134 = vld [vmem:[#allocation5 + $0x50] sm:$0xff]
    %v135 = vld [vmem:[#allocation5 + $0x58] sm:$0xff]
    %v136 = vld [vmem:[#allocation5 + $0x60] sm:$0xff]
    %v137 = vld [vmem:[#allocation5 + $0x68] sm:$0xff]
    %v138 = vld [vmem:[#allocation5 + $0x70] sm:$0xff]
    %v139 = vld [vmem:[#allocation5 + $0x78] sm:$0xff]
    %v140 = vld [vmem:[#allocation5 + $0x80] sm:$0xff]
    %v141 = vld [vmem:[#allocation5 + $0x88] sm:$0xff]
    %v142 = vld [vmem:[#allocation5 + $0x90] sm:$0xff]
    %v143 = vld [vmem:[#allocation5 + $0x98] sm:$0xff]
    %v144 = vld [vmem:[#allocation5 + $0xa0] sm:$0xff]
    %v145 = vld [vmem:[#allocation5 + $0xa8] sm:$0xff]
    %v146 = vld [vmem:[#allocation5 + $0xb0] sm:$0xff]
    %v147 = vld [vmem:[#allocation5 + $0xb8] sm:$0xff]
    %v148 = vld [vmem:[#allocation5 + $0xc0] sm:$0xff]
    %v149 = vld [vmem:[#allocation5 + $0xc8] sm:$0xff]
    %v150 = vld [vmem:[#allocation5 + $0xd0] sm:$0xff]
    %v151 = vld [vmem:[#allocation5 + $0xd8] sm:$0xff]
    %v152 = vld [vmem:[#allocation5 + $0xe0] sm:$0xff]
    %v153 = vld [vmem:[#allocation5 + $0xe8] sm:$0xff]
    %v154 = vld [vmem:[#allocation5 + $0xf0] sm:$0xff]
    %v155 = vld [vmem:[#allocation5 + $0xf8] sm:$0xff]
    %v156 = vld [vmem:[#allocation5 + $0x100] sm:$0xff]
    %v157 = vld [vmem:[#allocation5 + $0x108] sm:$0xff]
    %v158 = vld [vmem:[#allocation5 + $0x110] sm:$0xff]
    %v159 = vld [vmem:[#allocation5 + $0x118] sm:$0xff]
    %v160 = vld [vmem:[#allocation5 + $0x120] sm:$0xff]
    %v161 = vld [vmem:[#allocation5 + $0x128] sm:$0xff]
    %v162 = vld [vmem:[#allocation5 + $0x130] sm:$0xff]
    %v163 = vld [vmem:[#allocation5 + $0x138] sm:$0xff]
    %v164 = vld [vmem:[#allocation5 + $0x140] sm:$0xff]
    %v165 = vld [vmem:[#allocation5 + $0x148] sm:$0xff]
    %v166 = vld [vmem:[#allocation5 + $0x150] sm:$0xff]
    %v167 = vld [vmem:[#allocation5 + $0x158] sm:$0xff]
    %v168 = vld [vmem:[#allocation5 + $0x160] sm:$0xff]
    %v169 = vld [vmem:[#allocation5 + $0x168] sm:$0xff]
    %v170 = vld [vmem:[#allocation5 + $0x170] sm:$0xff]
    %v171 = vld [vmem:[#allocation5 + $0x178] sm:$0xff]
    %v172 = vld [vmem:[#allocation5 + $0x180] sm:$0xff]
    %v173 = vld [vmem:[#allocation5 + $0x188] sm:$0xff]
    %v174 = vld [vmem:[#allocation5 + $0x190] sm:$0xff]
    %v175 = vld [vmem:[#allocation5 + $0x198] sm:$0xff]
    %v176 = vld [vmem:[#allocation5 + $0x1a0] sm:$0xff]
    %v177 = vld [vmem:[#allocation5 + $0x1a8] sm:$0xff]
    %v178 = vld [vmem:[#allocation5 + $0x1b0] sm:$0xff]
    %v179 = vld [vmem:[#allocation5 + $0x1b8] sm:$0xff]
    %v180 = vld [vmem:[#allocation5 + $0x1c0] sm:$0xff]
    %v181 = vld [vmem:[#allocation5 + $0x1c8] sm:$0xff]
    %v182 = vld [vmem:[#allocation5 + $0x1d0] sm:$0xff]
    %v183 = vld [vmem:[#allocation5 + $0x1d8] sm:$0xff]
    %v184 = vld [vmem:[#allocation5 + $0x1e0] sm:$0xff]
    %v185 = vld [vmem:[#allocation5 + $0x1e8] sm:$0xff]
    %v186 = vld [vmem:[#allocation5 + $0x1f0] sm:$0xff]
    %v187 = vld [vmem:[#allocation5 + $0x1f8] sm:$0xff]
    %v188 = vld [vmem:[#allocation5 + $0x200] sm:$0xff]
    %v189 = vld [vmem:[#allocation5 + $0x208] sm:$0xff]
    %v190 = vld [vmem:[#allocation5 + $0x210] sm:$0xff]
    %v191 = vld [vmem:[#allocation5 + $0x218] sm:$0xff]
    %v192 = vld [vmem:[#allocation5 + $0x220] sm:$0xff]
    %v193 = vld [vmem:[#allocation5 + $0x228] sm:$0xff]
    %v194 = vld [vmem:[#allocation5 + $0x230] sm:$0xff]
    %v195 = vld [vmem:[#allocation5 + $0x238] sm:$0xff]
    %v196 = vld [vmem:[#allocation5 + $0x240] sm:$0xff]
    %v197 = vld [vmem:[#allocation5 + $0x248] sm:$0xff]
    %v198 = vld [vmem:[#allocation5 + $0x250] sm:$0xff]
    %v199 = vld [vmem:[#allocation5 + $0x258] sm:$0xff]
    %v200 = vld [vmem:[#allocation5 + $0x260] sm:$0xff]
    %v201 = vld [vmem:[#allocation5 + $0x268] sm:$0xff]
    %v202 = vld [vmem:[#allocation5 + $0x270] sm:$0xff]
    %v203 = vld [vmem:[#allocation5 + $0x278] sm:$0xff]
    %v204 = vld [vmem:[#allocation5 + $0x280] sm:$0xff]
    %v205 = vld [vmem:[#allocation5 + $0x288] sm:$0xff]
    %v206 = vld [vmem:[#allocation5 + $0x290] sm:$0xff]
    %v207 = vld [vmem:[#allocation5 + $0x298] sm:$0xff]
    %v208 = vld [vmem:[#allocation5 + $0x2a0] sm:$0xff]
    %v209 = vld [vmem:[#allocation5 + $0x2a8] sm:$0xff]
    %v210 = vld [vmem:[#allocation5 + $0x2b0] sm:$0xff]
    %v211 = vld [vmem:[#allocation5 + $0x2b8] sm:$0xff]
    %v212 = vld [vmem:[#allocation5 + $0x2c0] sm:$0xff]
    %v213 = vld [vmem:[#allocation5 + $0x2c8] sm:$0xff]
    %v214 = vld [vmem:[#allocation5 + $0x2d0] sm:$0xff]
    %v215 = vld [vmem:[#allocation5 + $0x2d8] sm:$0xff]
    %v216 = vld [vmem:[#allocation5 + $0x2e0] sm:$0xff]
    %v217 = vld [vmem:[#allocation5 + $0x2e8] sm:$0xff]
    %v218 = vld [vmem:[#allocation5 + $0x2f0] sm:$0xff]
    %v219 = vld [vmem:[#allocation5 + $0x2f8] sm:$0xff]
    %v220 = vld [vmem:[#allocation5 + $0x300] sm:$0xff]
    %v221 = vld [vmem:[#allocation5 + $0x308] sm:$0xff]
    %v222 = vld [vmem:[#allocation5 + $0x310] sm:$0xff]
    %v223 = vld [vmem:[#allocation5 + $0x318] sm:$0xff]
    %v224 = vld [vmem:[#allocation5 + $0x320] sm:$0xff]
    %v225 = vld [vmem:[#allocation5 + $0x328] sm:$0xff]
    %v226 = vld [vmem:[#allocation5 + $0x330] sm:$0xff]
    %v227 = vld [vmem:[#allocation5 + $0x338] sm:$0xff]
    %v228 = vld [vmem:[#allocation5 + $0x340] sm:$0xff]
    %v229 = vld [vmem:[#allocation5 + $0x348] sm:$0xff]
    %v230 = vld [vmem:[#allocation5 + $0x350] sm:$0xff]
    %v231 = vld [vmem:[#allocation5 + $0x358] sm:$0xff]
    %v232 = vld [vmem:[#allocation5 + $0x360] sm:$0xff]
    %v233 = vld [vmem:[#allocation5 + $0x368] sm:$0xff]
    %v234 = vld [vmem:[#allocation5 + $0x370] sm:$0xff]
    %v235 = vld [vmem:[#allocation5 + $0x378] sm:$0xff]
    %v236 = vld [vmem:[#allocation5 + $0x380] sm:$0xff]
    %v237 = vld [vmem:[#allocation5 + $0x388] sm:$0xff]
    %v238 = vld [vmem:[#allocation5 + $0x390] sm:$0xff]
    %v239 = vld [vmem:[#allocation5 + $0x398] sm:$0xff]
    %v240 = vld [vmem:[#allocation5 + $0x3a0] sm:$0xff]
    %v241 = vld [vmem:[#allocation5 + $0x3a8] sm:$0xff]
    %v242 = vld [vmem:[#allocation5 + $0x3b0] sm:$0xff]
    %v243 = vld [vmem:[#allocation5 + $0x3b8] sm:$0xff]
    %v244 = vld [vmem:[#allocation5 + $0x3c0] sm:$0xff]
    %v245 = vld [vmem:[#allocation5 + $0x3c8] sm:$0xff]
    %v246 = vld [vmem:[#allocation5 + $0x3d0] sm:$0xff]
    %v247 = vld [vmem:[#allocation5 + $0x3d8] sm:$0xff]
    %v248 = vld [vmem:[#allocation5 + $0x3e0] sm:$0xff]
    %v249 = vld [vmem:[#allocation5 + $0x3e8] sm:$0xff]
    %v250 = vld [vmem:[#allocation5 + $0x3f0] sm:$0xff]
    %v251 = vld [vmem:[#allocation5 + $0x3f8] sm:$0xff]
    %v252 = vld [vmem:[%s3] sm:$0xf]
    %v254 = vlaneseq
    %v255 = vshrl.u32 %v254, 7
    %v256 = vsub.s32 0, %v255
    %v257 = vrot.slane %v252, %v256
    %v258 = vlaneseq
    %v259 = vshrl.u32 %v258, 7
    %v260 = vsub.s32 1, %v259
    %v261 = vrot.slane %v252, %v260
    %v262 = vlaneseq
    %v263 = vshrl.u32 %v262, 7
    %v264 = vsub.s32 2, %v263
    %v265 = vrot.slane %v252, %v264
    %v266 = vlaneseq
    %v267 = vshrl.u32 %v266, 7
    %v268 = vsub.s32 3, %v267
    %v269 = vrot.slane %v252, %v268
    %v274 = vld [vmem:[%s5] sm:$0xf]
    %v276 = vlaneseq
    %v277 = vshrl.u32 %v276, 7
    %v278 = vsub.s32 0, %v277
    %v279 = vrot.slane %v274, %v278
    %v280 = vlaneseq
    %v281 = vshrl.u32 %v280, 7
    %v282 = vsub.s32 1, %v281
    %v283 = vrot.slane %v274, %v282
    %v284 = vlaneseq
    %v285 = vshrl.u32 %v284, 7
    %v286 = vsub.s32 2, %v285
    %v287 = vrot.slane %v274, %v286
    %v288 = vlaneseq
    %v289 = vshrl.u32 %v288, 7
    %v290 = vsub.s32 3, %v289
    %v291 = vrot.slane %v274, %v290
    %v296 = vld [vmem:[%s6] sm:$0x1]
    %v297 = vld [vmem:[#allocation2] sm:$0x1]
    %v298 = vld [vmem:[%s0] sm:$0xf]
    %300 = vset.pattern.permute.xlu0 0
    %301 = vperm.xlu0 %300, %v298
    %v302 = vpop.permute.xlu0 %301
    %v305 = vlaneseq
    %v306 = vshrl.u32 %v305, 7
    %v307 = vsub.s32 0, %v306
    %v308 = vrot.slane %v59, %v307
    %v309 = vlaneseq
    %v310 = vshrl.u32 %v309, 7
    %v311 = vsub.s32 1, %v310
    %v312 = vrot.slane %v59, %v311
    %v313 = vlaneseq
    %v314 = vshrl.u32 %v313, 7
    %v315 = vsub.s32 2, %v314
    %v316 = vrot.slane %v59, %v315
    %v317 = vlaneseq
    %v318 = vshrl.u32 %v317, 7
    %v319 = vsub.s32 3, %v318
    %v320 = vrot.slane %v59, %v319
    %v325 = vmul.f32 %v302, %v308
    %v326 = vmul.f32 %v302, %v312
    %v327 = vmul.f32 %v302, %v316
    %v328 = vmul.f32 %v302, %v320
    %v329 = vadd.f32 %v325, %v257
    %v330 = vadd.f32 %v326, %v261
    %v331 = vadd.f32 %v327, %v265
    %v332 = vadd.f32 %v328, %v269
    %s333 = scalar_lea.vmem %s0, 4
    %v334 = vld [vmem:[%s333] sm:$0xf]
    %336 = vset.pattern.permute.xlu0 0
    %337 = vperm.xlu0 %336, %v334
    %v338 = vpop.permute.xlu0 %337
    %v340 = vmul.f32 %v338, %v308
    %v341 = vmul.f32 %v338, %v312
    %v342 = vmul.f32 %v338, %v316
    %v343 = vmul.f32 %v338, %v320
    %v344 = vadd.f32 %v340, %v257
    %v345 = vadd.f32 %v341, %v261
    %v346 = vadd.f32 %v342, %v265
    %v347 = vadd.f32 %v343, %v269
    %s348 = scalar_lea.vmem %s0, 8
    %v349 = vld [vmem:[%s348] sm:$0xf]
    %351 = vset.pattern.permute.xlu0 0
    %352 = vperm.xlu0 %351, %v349
    %v353 = vpop.permute.xlu0 %352
    %v355 = vmul.f32 %v353, %v308
    %v356 = vmul.f32 %v353, %v312
    %v357 = vmul.f32 %v353, %v316
    %v358 = vmul.f32 %v353, %v320
    %v359 = vadd.f32 %v355, %v257
    %v360 = vadd.f32 %v356, %v261
    %v361 = vadd.f32 %v357, %v265
    %v362 = vadd.f32 %v358, %v269
    %s363 = scalar_lea.vmem %s0, 12
    %v364 = vld [vmem:[%s363] sm:$0xf]
    %366 = vset.pattern.permute.xlu0 0
    %367 = vperm.xlu0 %366, %v364
    %v368 = vpop.permute.xlu0 %367
    %v370 = vmul.f32 %v368, %v308
    %v371 = vmul.f32 %v368, %v312
    %v372 = vmul.f32 %v368, %v316
    %v373 = vmul.f32 %v368, %v320
    %v374 = vadd.f32 %v370, %v257
    %v375 = vadd.f32 %v371, %v261
    %v376 = vadd.f32 %v372, %v265
    %v377 = vadd.f32 %v373, %v269
    %s378 = scalar_lea.vmem %s0, 16
    %v379 = vld [vmem:[%s378] sm:$0xf]
    %381 = vset.pattern.permute.xlu0 0
    %382 = vperm.xlu0 %381, %v379
    %v383 = vpop.permute.xlu0 %382
    %v385 = vmul.f32 %v383, %v308
    %v386 = vmul.f32 %v383, %v312
    %v387 = vmul.f32 %v383, %v316
    %v388 = vmul.f32 %v383, %v320
    %v389 = vadd.f32 %v385, %v257
    %v390 = vadd.f32 %v386, %v261
    %v391 = vadd.f32 %v387, %v265
    %v392 = vadd.f32 %v388, %v269
    %s393 = scalar_lea.vmem %s0, 20
    %v394 = vld [vmem:[%s393] sm:$0xf]
    %396 = vset.pattern.permute.xlu0 0
    %397 = vperm.xlu0 %396, %v394
    %v398 = vpop.permute.xlu0 %397
    %v400 = vmul.f32 %v398, %v308
    %v401 = vmul.f32 %v398, %v312
    %v402 = vmul.f32 %v398, %v316
    %v403 = vmul.f32 %v398, %v320
    %v404 = vadd.f32 %v400, %v257
    %v405 = vadd.f32 %v401, %v261
    %v406 = vadd.f32 %v402, %v265
    %v407 = vadd.f32 %v403, %v269
    %s408 = scalar_lea.vmem %s0, 24
    %v409 = vld [vmem:[%s408] sm:$0xf]
    %411 = vset.pattern.permute.xlu0 0
    %412 = vperm.xlu0 %411, %v409
    %v413 = vpop.permute.xlu0 %412
    %v415 = vmul.f32 %v413, %v308
    %v416 = vmul.f32 %v413, %v312
    %v417 = vmul.f32 %v413, %v316
    %v418 = vmul.f32 %v413, %v320
    %v419 = vadd.f32 %v415, %v257
    %v420 = vadd.f32 %v416, %v261
    %v421 = vadd.f32 %v417, %v265
    %v422 = vadd.f32 %v418, %v269
    %s423 = scalar_lea.vmem %s0, 28
    %v424 = vld [vmem:[%s423] sm:$0xf]
    %426 = vset.pattern.permute.xlu0 0
    %427 = vperm.xlu0 %426, %v424
    %v428 = vpop.permute.xlu0 %427
    %v430 = vmul.f32 %v428, %v308
    %v431 = vmul.f32 %v428, %v312
    %v432 = vmul.f32 %v428, %v316
    %v433 = vmul.f32 %v428, %v320
    %v434 = vadd.f32 %v430, %v257
    %v435 = vadd.f32 %v431, %v261
    %v436 = vadd.f32 %v432, %v265
    %v437 = vadd.f32 %v433, %v269
    %438 = vmatprep.subr.mxu0 %v61
    %439 = vmatpush1.msra.mxu0 %v60
    %440 = vmatprep.subr.mxu0 %v65
    %441 = vmatpush1.msra.mxu0 %v64
    %442 = vmatprep.subr.mxu0 %v69
    %443 = vmatpush1.msra.mxu0 %v68
    %444 = vmatprep.subr.mxu0 %v73
    %445 = vmatpush1.msra.mxu0 %v72
    %446 = vmatprep.subr.mxu0 %v77
    %447 = vmatpush1.msra.mxu0 %v76
    %448 = vmatprep.subr.mxu0 %v81
    %449 = vmatpush1.msra.mxu0 %v80
    %450 = vmatprep.subr.mxu0 %v85
    %451 = vmatpush1.msra.mxu0 %v84
    %452 = vmatprep.subr.mxu0 %v89
    %453 = vmatpush1.msra.mxu0 %v88
    %454 = vmatprep.subr.mxu0 %v93
    %455 = vmatpush1.msra.mxu0 %v92
    %456 = vmatprep.subr.mxu0 %v97
    %457 = vmatpush1.msra.mxu0 %v96
    %458 = vmatprep.subr.mxu0 %v101
    %459 = vmatpush1.msra.mxu0 %v100
    %460 = vmatprep.subr.mxu0 %v105
    %461 = vmatpush1.msra.mxu0 %v104
    %462 = vmatprep.subr.mxu0 %v109
    %463 = vmatpush1.msra.mxu0 %v108
    %464 = vmatprep.subr.mxu0 %v113
    %465 = vmatpush1.msra.mxu0 %v112
    %466 = vmatprep.subr.mxu0 %v117
    %467 = vmatpush1.msra.mxu0 %v116
    %468 = vmatprep.subr.mxu0 %v121
    %469 = vmatpush1.msra.mxu0 %v120
    %470 = vmatprep.subr.mxu0 0.0
    %471 = vmatpush1.msra.mxu0 0.0
    %472 = vmatprep.subr.mxu0 0.0
    %473 = vmatpush1.msra.mxu0 0.0
    %474 = vmatprep.subr.mxu0 0.0
    %475 = vmatpush1.msra.mxu0 0.0
    %476 = vmatprep.subr.mxu0 0.0
    %477 = vmatpush1.msra.mxu0 0.0
    %478 = vmatprep.subr.mxu0 0.0
    %479 = vmatpush1.msra.mxu0 0.0
    %480 = vmatprep.subr.mxu0 0.0
    %481 = vmatpush1.msra.mxu0 0.0
    %482 = vmatprep.subr.mxu0 0.0
    %483 = vmatpush1.msra.mxu0 0.0
    %484 = vmatprep.subr.mxu0 0.0
    %485 = vmatpush1.msra.mxu0 0.0
    %486 = vmatprep.subr.mxu0 0.0
    %487 = vmatpush1.msra.mxu0 0.0
    %488 = vmatprep.subr.mxu0 0.0
    %489 = vmatpush1.msra.mxu0 0.0
    %490 = vmatprep.subr.mxu0 0.0
    %491 = vmatpush1.msra.mxu0 0.0
    %492 = vmatprep.subr.mxu0 0.0
    %493 = vmatpush1.msra.mxu0 0.0
    %494 = vmatprep.subr.mxu0 0.0
    %495 = vmatpush1.msra.mxu0 0.0
    %496 = vmatprep.subr.mxu0 0.0
    %497 = vmatpush1.msra.mxu0 0.0
    %498 = vmatprep.subr.mxu0 0.0
    %499 = vmatpush1.msra.mxu0 0.0
    %500 = vmatprep.subr.mxu0 0.0
    %501 = vmatpush1.msra.mxu0 0.0
    %502 = vmatprep.mubr.f32.mxu0 0.0
    %503 = vmatmul.mubr.f32.gmra.mrb[0].mxu0 0.0
    %v504 = vpop.f32.mrb[0].mxu0
    %v505 = vadd.f32 0.0, %v504
    %v506 = vpop.f32.mrb[0].mxu0
    %v507 = vadd.f32 0.0, %v506
    %508 = vdwg.mxu0
    %509 = vmatprep.subr.mxu0 %v63
    %510 = vmatpush1.msra.mxu0 %v62
    %511 = vmatprep.subr.mxu0 %v67
    %512 = vmatpush1.msra.mxu0 %v66
    %513 = vmatprep.subr.mxu0 %v71
    %514 = vmatpush1.msra.mxu0 %v70
    %515 = vmatprep.subr.mxu0 %v75
    %516 = vmatpush1.msra.mxu0 %v74
    %517 = vmatprep.subr.mxu0 %v79
    %518 = vmatpush1.msra.mxu0 %v78
    %519 = vmatprep.subr.mxu0 %v83
    %520 = vmatpush1.msra.mxu0 %v82
    %521 = vmatprep.subr.mxu0 %v87
    %522 = vmatpush1.msra.mxu0 %v86
    %523 = vmatprep.subr.mxu0 %v91
    %524 = vmatpush1.msra.mxu0 %v90
    %525 = vmatprep.subr.mxu0 %v95
    %526 = vmatpush1.msra.mxu0 %v94
    %527 = vmatprep.subr.mxu0 %v99
    %528 = vmatpush1.msra.mxu0 %v98
    %529 = vmatprep.subr.mxu0 %v103
    %530 = vmatpush1.msra.mxu0 %v102
    %531 = vmatprep.subr.mxu0 %v107
    %532 = vmatpush1.msra.mxu0 %v106
    %533 = vmatprep.subr.mxu0 %v111
    %534 = vmatpush1.msra.mxu0 %v110
    %535 = vmatprep.subr.mxu0 %v115
    %536 = vmatpush1.msra.mxu0 %v114
    %537 = vmatprep.subr.mxu0 %v119
    %538 = vmatpush1.msra.mxu0 %v118
    %539 = vmatprep.subr.mxu0 %v123
    %540 = vmatpush1.msra.mxu0 %v122
    %541 = vmatprep.subr.mxu0 0.0
    %542 = vmatpush1.msra.mxu0 0.0
    %543 = vmatprep.subr.mxu0 0.0
    %544 = vmatpush1.msra.mxu0 0.0
    %545 = vmatprep.subr.mxu0 0.0
    %546 = vmatpush1.msra.mxu0 0.0
    %547 = vmatprep.subr.mxu0 0.0
    %548 = vmatpush1.msra.mxu0 0.0
    %549 = vmatprep.subr.mxu0 0.0
    %550 = vmatpush1.msra.mxu0 0.0
    %551 = vmatprep.subr.mxu0 0.0
    %552 = vmatpush1.msra.mxu0 0.0
    %553 = vmatprep.subr.mxu0 0.0
    %554 = vmatpush1.msra.mxu0 0.0
    %555 = vmatprep.subr.mxu0 0.0
    %556 = vmatpush1.msra.mxu0 0.0
    %557 = vmatprep.subr.mxu0 0.0
    %558 = vmatpush1.msra.mxu0 0.0
    %559 = vmatprep.subr.mxu0 0.0
    %560 = vmatpush1.msra.mxu0 0.0
    %561 = vmatprep.subr.mxu0 0.0
    %562 = vmatpush1.msra.mxu0 0.0
    %563 = vmatprep.subr.mxu0 0.0
    %564 = vmatpush1.msra.mxu0 0.0
    %565 = vmatprep.subr.mxu0 0.0
    %566 = vmatpush1.msra.mxu0 0.0
    %567 = vmatprep.subr.mxu0 0.0
    %568 = vmatpush1.msra.mxu0 0.0
    %569 = vmatprep.subr.mxu0 0.0
    %570 = vmatpush1.msra.mxu0 0.0
    %571 = vmatprep.subr.mxu0 0.0
    %572 = vmatpush1.msra.mxu0 0.0
    %573 = vmatprep.mubr.f32.mxu0 0.0
    %574 = vmatmul.mubr.f32.gmra.mrb[0].mxu0 0.0
    %v575 = vpop.f32.mrb[0].mxu0
    %v576 = vadd.f32 0.0, %v575
    %v577 = vpop.f32.mrb[0].mxu0
    %v578 = vadd.f32 0.0, %v577
    %579 = vdwg.mxu0
    %v580 = vadd.f32 %v329, %v505
    %v581 = vadd.f32 %v330, %v507
    %v582 = vadd.f32 %v331, %v576
    %v583 = vadd.f32 %v332, %v578
    %v584 = vxor.u32 %v580, 2147483648
    %v585 = vxor.u32 %v581, 2147483648
    %v586 = vxor.u32 %v582, 2147483648
    %v587 = vmul.f32 %v584, 1.442695
    %v588 = vpow.pop %v587
    %v589 = vmul.f32 %v585, 1.442695
    %v590 = vpow.pop %v589
    %v591 = vmul.f32 %v586, 1.442695
    %v592 = vpow.pop %v591
    %v593 = vadd.f32 %v588, 1.0
    %v594 = vadd.f32 %v590, 1.0
    %v595 = vadd.f32 %v592, 1.0
    %v596 = vrcp.pop %v593
    %v597 = vmul.f32 1.0, %v596
    %v598 = vrcp.pop %v594
    %v599 = vmul.f32 1.0, %v598
    %v600 = vrcp.pop %v595
    %v601 = vmul.f32 1.0, %v600
    %v602 = vtanh.pop %v583
    %v603 = vmul.f32 %v599, 0.0
    %v604 = vmul.f32 %v597, %v602
    %v605 = vadd.f32 %v603, %v604
    %v606 = vtanh.pop %v605
    %v607 = vmul.f32 %v601, %v606
    %608 = vmatprep.subr.mxu0 %v125
    %609 = vmatpush1.msra.mxu0 %v124
    %610 = vmatprep.subr.mxu0 %v129
    %611 = vmatpush1.msra.mxu0 %v128
    %612 = vmatprep.subr.mxu0 %v133
    %613 = vmatpush1.msra.mxu0 %v132
    %614 = vmatprep.subr.mxu0 %v137
    %615 = vmatpush1.msra.mxu0 %v136
    %616 = vmatprep.subr.mxu0 %v141
    %617 = vmatpush1.msra.mxu0 %v140
    %618 = vmatprep.subr.mxu0 %v145
    %619 = vmatpush1.msra.mxu0 %v144
    %620 = vmatprep.subr.mxu0 %v149
    %621 = vmatpush1.msra.mxu0 %v148
    %622 = vmatprep.subr.mxu0 %v153
    %623 = vmatpush1.msra.mxu0 %v152
    %624 = vmatprep.subr.mxu0 %v157
    %625 = vmatpush1.msra.mxu0 %v156
    %626 = vmatprep.subr.mxu0 %v161
    %627 = vmatpush1.msra.mxu0 %v160
    %628 = vmatprep.subr.mxu0 %v165
    %629 = vmatpush1.msra.mxu0 %v164
    %630 = vmatprep.subr.mxu0 %v169
    %631 = vmatpush1.msra.mxu0 %v168
    %632 = vmatprep.subr.mxu0 %v173
    %633 = vmatpush1.msra.mxu0 %v172
    %634 = vmatprep.subr.mxu0 %v177
    %635 = vmatpush1.msra.mxu0 %v176
    %636 = vmatprep.subr.mxu0 %v181
    %637 = vmatpush1.msra.mxu0 %v180
    %638 = vmatprep.subr.mxu0 %v185
    %639 = vmatpush1.msra.mxu0 %v184
    %640 = vmatprep.subr.mxu0 %v189
    %641 = vmatpush1.msra.mxu0 %v188
    %642 = vmatprep.subr.mxu0 %v193
    %643 = vmatpush1.msra.mxu0 %v192
    %644 = vmatprep.subr.mxu0 %v197
    %645 = vmatpush1.msra.mxu0 %v196
    %646 = vmatprep.subr.mxu0 %v201
    %647 = vmatpush1.msra.mxu0 %v200
    %648 = vmatprep.subr.mxu0 %v205
    %649 = vmatpush1.msra.mxu0 %v204
    %650 = vmatprep.subr.mxu0 %v209
    %651 = vmatpush1.msra.mxu0 %v208
    %652 = vmatprep.subr.mxu0 %v213
    %653 = vmatpush1.msra.mxu0 %v212
    %654 = vmatprep.subr.mxu0 %v217
    %655 = vmatpush1.msra.mxu0 %v216
    %656 = vmatprep.subr.mxu0 %v221
    %657 = vmatpush1.msra.mxu0 %v220
    %658 = vmatprep.subr.mxu0 %v225
    %659 = vmatpush1.msra.mxu0 %v224
    %660 = vmatprep.subr.mxu0 %v229
    %661 = vmatpush1.msra.mxu0 %v228
    %662 = vmatprep.subr.mxu0 %v233
    %663 = vmatpush1.msra.mxu0 %v232
    %664 = vmatprep.subr.mxu0 %v237
    %665 = vmatpush1.msra.mxu0 %v236
    %666 = vmatprep.subr.mxu0 %v241
    %667 = vmatpush1.msra.mxu0 %v240
    %668 = vmatprep.subr.mxu0 %v245
    %669 = vmatpush1.msra.mxu0 %v244
    %670 = vmatprep.subr.mxu0 %v249
    %671 = vmatpush1.msra.mxu0 %v248
    %672 = vmatprep.mubr.f32.mxu0 0.0
    %673 = vmatmul.mubr.f32.gmra.mrb[0].mxu0 %v607
    %v674 = vpop.f32.mrb[0].mxu0
    %v675 = vadd.f32 %v279, %v674
    %v676 = vpop.f32.mrb[0].mxu0
    %v677 = vadd.f32 %v283, %v676
    %678 = vdwg.mxu0
    %679 = vmatprep.subr.mxu0 %v127
    %680 = vmatpush1.msra.mxu0 %v126
    %681 = vmatprep.subr.mxu0 %v131
    %682 = vmatpush1.msra.mxu0 %v130
    %683 = vmatprep.subr.mxu0 %v135
    %684 = vmatpush1.msra.mxu0 %v134
    %685 = vmatprep.subr.mxu0 %v139
    %686 = vmatpush1.msra.mxu0 %v138
    %687 = vmatprep.subr.mxu0 %v143
    %688 = vmatpush1.msra.mxu0 %v142
    %689 = vmatprep.subr.mxu0 %v147
    %690 = vmatpush1.msra.mxu0 %v146
    %691 = vmatprep.subr.mxu0 %v151
    %692 = vmatpush1.msra.mxu0 %v150
    %693 = vmatprep.subr.mxu0 %v155
    %694 = vmatpush1.msra.mxu0 %v154
    %695 = vmatprep.subr.mxu0 %v159
    %696 = vmatpush1.msra.mxu0 %v158
    %697 = vmatprep.subr.mxu0 %v163
    %698 = vmatpush1.msra.mxu0 %v162
    %699 = vmatprep.subr.mxu0 %v167
    %700 = vmatpush1.msra.mxu0 %v166
    %701 = vmatprep.subr.mxu0 %v171
    %702 = vmatpush1.msra.mxu0 %v170
    %703 = vmatprep.subr.mxu0 %v175
    %704 = vmatpush1.msra.mxu0 %v174
    %705 = vmatprep.subr.mxu0 %v179
    %706 = vmatpush1.msra.mxu0 %v178
    %707 = vmatprep.subr.mxu0 %v183
    %708 = vmatpush1.msra.mxu0 %v182
    %709 = vmatprep.subr.mxu0 %v187
    %710 = vmatpush1.msra.mxu0 %v186
    %711 = vmatprep.subr.mxu0 %v191
    %712 = vmatpush1.msra.mxu0 %v190
    %713 = vmatprep.subr.mxu0 %v195
    %714 = vmatpush1.msra.mxu0 %v194
    %715 = vmatprep.subr.mxu0 %v199
    %716 = vmatpush1.msra.mxu0 %v198
    %717 = vmatprep.subr.mxu0 %v203
    %718 = vmatpush1.msra.mxu0 %v202
    %719 = vmatprep.subr.mxu0 %v207
    %720 = vmatpush1.msra.mxu0 %v206
    %721 = vmatprep.subr.mxu0 %v211
    %722 = vmatpush1.msra.mxu0 %v210
    %723 = vmatprep.subr.mxu0 %v215
    %724 = vmatpush1.msra.mxu0 %v214
    %725 = vmatprep.subr.mxu0 %v219
    %726 = vmatpush1.msra.mxu0 %v218
    %727 = vmatprep.subr.mxu0 %v223
    %728 = vmatpush1.msra.mxu0 %v222
    %729 = vmatprep.subr.mxu0 %v227
    %730 = vmatpush1.msra.mxu0 %v226
    %731 = vmatprep.subr.mxu0 %v231
    %732 = vmatpush1.msra.mxu0 %v230
    %733 = vmatprep.subr.mxu0 %v235
    %734 = vmatpush1.msra.mxu0 %v234
    %735 = vmatprep.subr.mxu0 %v239
    %736 = vmatpush1.msra.mxu0 %v238
    %737 = vmatprep.subr.mxu0 %v243
    %738 = vmatpush1.msra.mxu0 %v242
    %739 = vmatprep.subr.mxu0 %v247
    %740 = vmatpush1.msra.mxu0 %v246
    %741 = vmatprep.subr.mxu0 %v251
    %742 = vmatpush1.msra.mxu0 %v250
    %743 = vmatprep.mubr.f32.mxu0 0.0
    %744 = vmatmul.mubr.f32.gmra.mrb[0].mxu0 %v607
    %v745 = vpop.f32.mrb[0].mxu0
    %v746 = vadd.f32 %v287, %v745
    %v747 = vpop.f32.mrb[0].mxu0
    %v748 = vadd.f32 %v291, %v747
    %749 = vdwg.mxu0
    %v750 = vxor.u32 %v675, 2147483648
    %v751 = vxor.u32 %v677, 2147483648
    %v752 = vxor.u32 %v746, 2147483648
    %v753 = vmul.f32 %v750, 1.442695
    %v754 = vpow.pop %v753
    %v755 = vmul.f32 %v751, 1.442695
    %v756 = vpow.pop %v755
    %v757 = vmul.f32 %v752, 1.442695
    %v758 = vpow.pop %v757
    %v759 = vadd.f32 %v754, 1.0
    %v760 = vadd.f32 %v756, 1.0
    %v761 = vadd.f32 %v758, 1.0
    %v762 = vrcp.pop %v759
    %v763 = vmul.f32 1.0, %v762
    %v764 = vrcp.pop %v760
    %v765 = vmul.f32 1.0, %v764
    %v766 = vrcp.pop %v761
    %v767 = vmul.f32 1.0, %v766
    %v768 = vtanh.pop %v748
    %v769 = vmul.f32 %v765, 0.0
    %v770 = vmul.f32 %v763, %v768
    %v771 = vadd.f32 %v769, %v770
    %v772 = vtanh.pop %v771
    %v773 = vmul.f32 %v767, %v772
    %774 = vmatprep.subr.mxu0 %v61
    %775 = vmatpush1.msra.mxu0 %v60
    %776 = vmatprep.subr.mxu0 %v65
    %777 = vmatpush1.msra.mxu0 %v64
    %778 = vmatprep.subr.mxu0 %v69
    %779 = vmatpush1.msra.mxu0 %v68
    %780 = vmatprep.subr.mxu0 %v73
    %781 = vmatpush1.msra.mxu0 %v72
    %782 = vmatprep.subr.mxu0 %v77
    %783 = vmatpush1.msra.mxu0 %v76
    %784 = vmatprep.subr.mxu0 %v81
    %785 = vmatpush1.msra.mxu0 %v80
    %786 = vmatprep.subr.mxu0 %v85
    %787 = vmatpush1.msra.mxu0 %v84
    %788 = vmatprep.subr.mxu0 %v89
    %789 = vmatpush1.msra.mxu0 %v88
    %790 = vmatprep.subr.mxu0 %v93
    %791 = vmatpush1.msra.mxu0 %v92
    %792 = vmatprep.subr.mxu0 %v97
    %793 = vmatpush1.msra.mxu0 %v96
    %794 = vmatprep.subr.mxu0 %v101
    %795 = vmatpush1.msra.mxu0 %v100
    %796 = vmatprep.subr.mxu0 %v105
    %797 = vmatpush1.msra.mxu0 %v104
    %798 = vmatprep.subr.mxu0 %v109
    %799 = vmatpush1.msra.mxu0 %v108
    %800 = vmatprep.subr.mxu0 %v113
    %801 = vmatpush1.msra.mxu0 %v112
    %802 = vmatprep.subr.mxu0 %v117
    %803 = vmatpush1.msra.mxu0 %v116
    %804 = vmatprep.subr.mxu0 %v121
    %805 = vmatpush1.msra.mxu0 %v120
    %806 = vmatprep.subr.mxu0 0.0
    %807 = vmatpush1.msra.mxu0 0.0
    %808 = vmatprep.subr.mxu0 0.0
    %809 = vmatpush1.msra.mxu0 0.0
    %810 = vmatprep.subr.mxu0 0.0
    %811 = vmatpush1.msra.mxu0 0.0
    %812 = vmatprep.subr.mxu0 0.0
    %813 = vmatpush1.msra.mxu0 0.0
    %814 = vmatprep.subr.mxu0 0.0
    %815 = vmatpush1.msra.mxu0 0.0
    %816 = vmatprep.subr.mxu0 0.0
    %817 = vmatpush1.msra.mxu0 0.0
    %818 = vmatprep.subr.mxu0 0.0
    %819 = vmatpush1.msra.mxu0 0.0
    %820 = vmatprep.subr.mxu0 0.0
    %821 = vmatpush1.msra.mxu0 0.0
    %822 = vmatprep.subr.mxu0 0.0
    %823 = vmatpush1.msra.mxu0 0.0
    %824 = vmatprep.subr.mxu0 0.0
    %825 = vmatpush1.msra.mxu0 0.0
    %826 = vmatprep.subr.mxu0 0.0
    %827 = vmatpush1.msra.mxu0 0.0
    %828 = vmatprep.subr.mxu0 0.0
    %829 = vmatpush1.msra.mxu0 0.0
    %830 = vmatprep.subr.mxu0 0.0
    %831 = vmatpush1.msra.mxu0 0.0
    %832 = vmatprep.subr.mxu0 0.0
    %833 = vmatpush1.msra.mxu0 0.0
    %834 = vmatprep.subr.mxu0 0.0
    %835 = vmatpush1.msra.mxu0 0.0
    %836 = vmatprep.subr.mxu0 0.0
    %837 = vmatpush1.msra.mxu0 0.0
    %838 = vmatprep.mubr.f32.mxu0 0.0
    %839 = vmatmul.mubr.f32.gmra.mrb[0].mxu0 %v607
    %v840 = vpop.f32.mrb[0].mxu0
    %v841 = vadd.f32 0.0, %v840
    %v842 = vpop.f32.mrb[0].mxu0
    %v843 = vadd.f32 0.0, %v842
    %844 = vdwg.mxu0
    %845 = vmatprep.subr.mxu0 %v63
    %846 = vmatpush1.msra.mxu0 %v62
    %847 = vmatprep.subr.mxu0 %v67
    %848 = vmatpush1.msra.mxu0 %v66
    %849 = vmatprep.subr.mxu0 %v71
    %850 = vmatpush1.msra.mxu0 %v70
    %851 = vmatprep.subr.mxu0 %v75
    %852 = vmatpush1.msra.mxu0 %v74
    %853 = vmatprep.subr.mxu0 %v79
    %854 = vmatpush1.msra.mxu0 %v78
    %855 = vmatprep.subr.mxu0 %v83
    %856 = vmatpush1.msra.mxu0 %v82
    %857 = vmatprep.subr.mxu0 %v87
    %858 = vmatpush1.msra.mxu0 %v86
    %859 = vmatprep.subr.mxu0 %v91
    %860 = vmatpush1.msra.mxu0 %v90
    %861 = vmatprep.subr.mxu0 %v95
    %862 = vmatpush1.msra.mxu0 %v94
    %863 = vmatprep.subr.mxu0 %v99
    %864 = vmatpush1.msra.mxu0 %v98
    %865 = vmatprep.subr.mxu0 %v103
    %866 = vmatpush1.msra.mxu0 %v102
    %867 = vmatprep.subr.mxu0 %v107
    %868 = vmatpush1.msra.mxu0 %v106
    %869 = vmatprep.subr.mxu0 %v111
    %870 = vmatpush1.msra.mxu0 %v110
    %871 = vmatprep.subr.mxu0 %v115
    %872 = vmatpush1.msra.mxu0 %v114
    %873 = vmatprep.subr.mxu0 %v119
    %874 = vmatpush1.msra.mxu0 %v118
    %875 = vmatprep.subr.mxu0 %v123
    %876 = vmatpush1.msra.mxu0 %v122
    %877 = vmatprep.subr.mxu0 0.0
    %878 = vmatpush1.msra.mxu0 0.0
    %879 = vmatprep.subr.mxu0 0.0
    %880 = vmatpush1.msra.mxu0 0.0
    %881 = vmatprep.subr.mxu0 0.0
    %882 = vmatpush1.msra.mxu0 0.0
    %883 = vmatprep.subr.mxu0 0.0
    %884 = vmatpush1.msra.mxu0 0.0
    %885 = vmatprep.subr.mxu0 0.0
    %886 = vmatpush1.msra.mxu0 0.0
    %887 = vmatprep.subr.mxu0 0.0
    %888 = vmatpush1.msra.mxu0 0.0
    %889 = vmatprep.subr.mxu0 0.0
    %890 = vmatpush1.msra.mxu0 0.0
    %891 = vmatprep.subr.mxu0 0.0
    %892 = vmatpush1.msra.mxu0 0.0
    %893 = vmatprep.subr.mxu0 0.0
    %894 = vmatpush1.msra.mxu0 0.0
    %895 = vmatprep.subr.mxu0 0.0
    %896 = vmatpush1.msra.mxu0 0.0
    %897 = vmatprep.subr.mxu0 0.0
    %898 = vmatpush1.msra.mxu0 0.0
    %899 = vmatprep.subr.mxu0 0.0
    %900 = vmatpush1.msra.mxu0 0.0
    %901 = vmatprep.subr.mxu0 0.0
    %902 = vmatpush1.msra.mxu0 0.0
    %903 = vmatprep.subr.mxu0 0.0
    %904 = vmatpush1.msra.mxu0 0.0
    %905 = vmatprep.subr.mxu0 0.0
    %906 = vmatpush1.msra.mxu0 0.0
    %907 = vmatprep.subr.mxu0 0.0
    %908 = vmatpush1.msra.mxu0 0.0
    %909 = vmatprep.mubr.f32.mxu0 0.0
    %910 = vmatmul.mubr.f32.gmra.mrb[0].mxu0 %v607
    %v911 = vpop.f32.mrb[0].mxu0
    %v912 = vadd.f32 0.0, %v911
    %v913 = vpop.f32.mrb[0].mxu0
    %v914 = vadd.f32 0.0, %v913
    %915 = vdwg.mxu0
    %v916 = vadd.f32 %v344, %v841
    %v917 = vadd.f32 %v345, %v843
    %v918 = vadd.f32 %v346, %v912
    %v919 = vadd.f32 %v347, %v914
    %v920 = vxor.u32 %v916, 2147483648
    %v921 = vxor.u32 %v917, 2147483648
    %v922 = vxor.u32 %v918, 2147483648
    %v923 = vmul.f32 %v920, 1.442695
    %v924 = vpow.pop %v923
    %v925 = vmul.f32 %v921, 1.442695
    %v926 = vpow.pop %v925
    %v927 = vmul.f32 %v922, 1.442695
    %v928 = vpow.pop %v927
    %v929 = vadd.f32 %v924, 1.0
    %v930 = vadd.f32 %v926, 1.0
    %v931 = vadd.f32 %v928, 1.0
    %v932 = vrcp.pop %v929
    %v933 = vmul.f32 1.0, %v932
    %v934 = vrcp.pop %v930
    %v935 = vmul.f32 1.0, %v934
    %v936 = vrcp.pop %v931
    %v937 = vmul.f32 1.0, %v936
    %v938 = vtanh.pop %v919
    %v939 = vmul.f32 %v935, %v605
    %v940 = vmul.f32 %v933, %v938
    %v941 = vadd.f32 %v939, %v940
    %v942 = vtanh.pop %v941
    %v943 = vmul.f32 %v937, %v942
    %944 = vmatprep.subr.mxu0 %v125
    %945 = vmatpush1.msra.mxu0 %v124
    %946 = vmatprep.subr.mxu0 %v129
    %947 = vmatpush1.msra.mxu0 %v128
    %948 = vmatprep.subr.mxu0 %v133
    %949 = vmatpush1.msra.mxu0 %v132
    %950 = vmatprep.subr.mxu0 %v137
    %951 = vmatpush1.msra.mxu0 %v136
    %952 = vmatprep.subr.mxu0 %v141
    %953 = vmatpush1.msra.mxu0 %v140
    %954 = vmatprep.subr.mxu0 %v145
    %955 = vmatpush1.msra.mxu0 %v144
    %956 = vmatprep.subr.mxu0 %v149
    %957 = vmatpush1.msra.mxu0 %v148
    %958 = vmatprep.subr.mxu0 %v153
    %959 = vmatpush1.msra.mxu0 %v152
    %960 = vmatprep.subr.mxu0 %v157
    %961 = vmatpush1.msra.mxu0 %v156
    %962 = vmatprep.subr.mxu0 %v161
    %963 = vmatpush1.msra.mxu0 %v160
    %964 = vmatprep.subr.mxu0 %v165
    %965 = vmatpush1.msra.mxu0 %v164
    %966 = vmatprep.subr.mxu0 %v169
    %967 = vmatpush1.msra.mxu0 %v168
    %968 = vmatprep.subr.mxu0 %v173
    %969 = vmatpush1.msra.mxu0 %v172
    %970 = vmatprep.subr.mxu0 %v177
    %971 = vmatpush1.msra.mxu0 %v176
    %972 = vmatprep.subr.mxu0 %v181
    %973 = vmatpush1.msra.mxu0 %v180
    %974 = vmatprep.subr.mxu0 %v185
    %975 = vmatpush1.msra.mxu0 %v184
    %976 = vmatprep.subr.mxu0 %v189
    %977 = vmatpush1.msra.mxu0 %v188
    %978 = vmatprep.subr.mxu0 %v193
    %979 = vmatpush1.msra.mxu0 %v192
    %980 = vmatprep.subr.mxu0 %v197
    %981 = vmatpush1.msra.mxu0 %v196
    %982 = vmatprep.subr.mxu0 %v201
    %983 = vmatpush1.msra.mxu0 %v200
    %984 = vmatprep.subr.mxu0 %v205
    %985 = vmatpush1.msra.mxu0 %v204
    %986 = vmatprep.subr.mxu0 %v209
    %987 = vmatpush1.msra.mxu0 %v208
    %988 = vmatprep.subr.mxu0 %v213
    %989 = vmatpush1.msra.mxu0 %v212
    %990 = vmatprep.subr.mxu0 %v217
    %991 = vmatpush1.msra.mxu0 %v216
    %992 = vmatprep.subr.mxu0 %v221
    %993 = vmatpush1.msra.mxu0 %v220
    %994 = vmatprep.subr.mxu0 %v225
    %995 = vmatpush1.msra.mxu0 %v224
    %996 = vmatprep.subr.mxu0 %v229
    %997 = vmatpush1.msra.mxu0 %v228
    %998 = vmatprep.subr.mxu0 %v233
    %999 = vmatpush1.msra.mxu0 %v232
    %1000 = vmatprep.subr.mxu0 %v237
    %1001 = vmatpush1.msra.mxu0 %v236
    %1002 = vmatprep.subr.mxu0 %v241
    %1003 = vmatpush1.msra.mxu0 %v240
    %1004 = vmatprep.subr.mxu0 %v245
    %1005 = vmatpush1.msra.mxu0 %v244
    %1006 = vmatprep.subr.mxu0 %v249
    %1007 = vmatpush1.msra.mxu0 %v248
    %1008 = vmatprep.mubr.f32.mxu0 %v773
    %1009 = vmatmul.mubr.f32.gmra.mrb[0].mxu0 %v943
    %v1010 = vpop.f32.mrb[0].mxu0
    %v1011 = vadd.f32 %v279, %v1010
    %v1012 = vpop.f32.mrb[0].mxu0
    %v1013 = vadd.f32 %v283, %v1012
    %1014 = vdwg.mxu0
    %1015 = vmatprep.subr.mxu0 %v127
    %1016 = vmatpush1.msra.mxu0 %v126
    %1017 = vmatprep.subr.mxu0 %v131
    %1018 = vmatpush1.msra.mxu0 %v130
    %1019 = vmatprep.subr.mxu0 %v135
    %1020 = vmatpush1.msra.mxu0 %v134
    %1021 = vmatprep.subr.mxu0 %v139
    %1022 = vmatpush1.msra.mxu0 %v138
    %1023 = vmatprep.subr.mxu0 %v143
    %1024 = vmatpush1.msra.mxu0 %v142
    %1025 = vmatprep.subr.mxu0 %v147
    %1026 = vmatpush1.msra.mxu0 %v146
    %1027 = vmatprep.subr.mxu0 %v151
    %1028 = vmatpush1.msra.mxu0 %v150
    %1029 = vmatprep.subr.mxu0 %v155
    %1030 = vmatpush1.msra.mxu0 %v154
    %1031 = vmatprep.subr.mxu0 %v159
    %1032 = vmatpush1.msra.mxu0 %v158
    %1033 = vmatprep.subr.mxu0 %v163
    %1034 = vmatpush1.msra.mxu0 %v162
    %1035 = vmatprep.subr.mxu0 %v167
    %1036 = vmatpush1.msra.mxu0 %v166
    %1037 = vmatprep.subr.mxu0 %v171
    %1038 = vmatpush1.msra.mxu0 %v170
    %1039 = vmatprep.subr.mxu0 %v175
    %1040 = vmatpush1.msra.mxu0 %v174
    %1041 = vmatprep.subr.mxu0 %v179
    %1042 = vmatpush1.msra.mxu0 %v178
    %1043 = vmatprep.subr.mxu0 %v183
    %1044 = vmatpush1.msra.mxu0 %v182
    %1045 = vmatprep.subr.mxu0 %v187
    %1046 = vmatpush1.msra.mxu0 %v186
    %1047 = vmatprep.subr.mxu0 %v191
    %1048 = vmatpush1.msra.mxu0 %v190
    %1049 = vmatprep.subr.mxu0 %v195
    %1050 = vmatpush1.msra.mxu0 %v194
    %1051 = vmatprep.subr.mxu0 %v199
    %1052 = vmatpush1.msra.mxu0 %v198
    %1053 = vmatprep.subr.mxu0 %v203
    %1054 = vmatpush1.msra.mxu0 %v202
    %1055 = vmatprep.subr.mxu0 %v207
    %1056 = vmatpush1.msra.mxu0 %v206
    %1057 = vmatprep.subr.mxu0 %v211
    %1058 = vmatpush1.msra.mxu0 %v210
    %1059 = vmatprep.subr.mxu0 %v215
    %1060 = vmatpush1.msra.mxu0 %v214
    %1061 = vmatprep.subr.mxu0 %v219
    %1062 = vmatpush1.msra.mxu0 %v218
    %1063 = vmatprep.subr.mxu0 %v223
    %1064 = vmatpush1.msra.mxu0 %v222
    %1065 = vmatprep.subr.mxu0 %v227
    %1066 = vmatpush1.msra.mxu0 %v226
    %1067 = vmatprep.subr.mxu0 %v231
    %1068 = vmatpush1.msra.mxu0 %v230
    %1069 = vmatprep.subr.mxu0 %v235
    %1070 = vmatpush1.msra.mxu0 %v234
    %1071 = vmatprep.subr.mxu0 %v239
    %1072 = vmatpush1.msra.mxu0 %v238
    %1073 = vmatprep.subr.mxu0 %v243
    %1074 = vmatpush1.msra.mxu0 %v242
    %1075 = vmatprep.subr.mxu0 %v247
    %1076 = vmatpush1.msra.mxu0 %v246
    %1077 = vmatprep.subr.mxu0 %v251
    %1078 = vmatpush1.msra.mxu0 %v250
    %1079 = vmatprep.mubr.f32.mxu0 %v773
    %1080 = vmatmul.mubr.f32.gmra.mrb[0].mxu0 %v943
    %v1081 = vpop.f32.mrb[0].mxu0
    %v1082 = vadd.f32 %v287, %v1081
    %v1083 = vpop.f32.mrb[0].mxu0
    %v1084 = vadd.f32 %v291, %v1083
    %1085 = vdwg.mxu0
    %v1086 = vxor.u32 %v1011, 2147483648
    %v1087 = vxor.u32 %v1013, 2147483648
    %v1088 = vxor.u32 %v1082, 2147483648
    %v1089 = vmul.f32 %v1086, 1.442695
    %v1090 = vpow.pop %v1089
    %v1091 = vmul.f32 %v1087, 1.442695
    %v1092 = vpow.pop %v1091
    %v1093 = vmul.f32 %v1088, 1.442695
    %v1094 = vpow.pop %v1093
    %v1095 = vadd.f32 %v1090, 1.0
    %v1096 = vadd.f32 %v1092, 1.0
    %v1097 = vadd.f32 %v1094, 1.0
    %v1098 = vrcp.pop %v1095
    %v1099 = vmul.f32 1.0, %v1098
    %v1100 = vrcp.pop %v1096
    %v1101 = vmul.f32 1.0, %v1100
    %v1102 = vrcp.pop %v1097
    %v1103 = vmul.f32 1.0, %v1102
    %v1104 = vtanh.pop %v1084
    %v1105 = vmul.f32 %v1101, %v771
    %v1106 = vmul.f32 %v1099, %v1104
    %v1107 = vadd.f32 %v1105, %v1106
    %v1108 = vtanh.pop %v1107
    %v1109 = vmul.f32 %v1103, %v1108
    %1110 = vmatprep.subr.mxu0 %v61
    %1111 = vmatpush1.msra.mxu0 %v60
    %1112 = vmatprep.subr.mxu0 %v65
    %1113 = vmatpush1.msra.mxu0 %v64
    %1114 = vmatprep.subr.mxu0 %v69
    %1115 = vmatpush1.msra.mxu0 %v68
    %1116 = vmatprep.subr.mxu0 %v73
    %1117 = vmatpush1.msra.mxu0 %v72
    %1118 = vmatprep.subr.mxu0 %v77
    %1119 = vmatpush1.msra.mxu0 %v76
    %1120 = vmatprep.subr.mxu0 %v81
    %1121 = vmatpush1.msra.mxu0 %v80
    %1122 = vmatprep.subr.mxu0 %v85
    %1123 = vmatpush1.msra.mxu0 %v84
    %1124 = vmatprep.subr.mxu0 %v89
    %1125 = vmatpush1.msra.mxu0 %v88
    %1126 = vmatprep.subr.mxu0 %v93
    %1127 = vmatpush1.msra.mxu0 %v92
    %1128 = vmatprep.subr.mxu0 %v97
    %1129 = vmatpush1.msra.mxu0 %v96
    %1130 = vmatprep.subr.mxu0 %v101
    %1131 = vmatpush1.msra.mxu0 %v100
    %1132 = vmatprep.subr.mxu0 %v105
    %1133 = vmatpush1.msra.mxu0 %v104
    %1134 = vmatprep.subr.mxu0 %v109
    %1135 = vmatpush1.msra.mxu0 %v108
    %1136 = vmatprep.subr.mxu0 %v113
    %1137 = vmatpush1.msra.mxu0 %v112
    %1138 = vmatprep.subr.mxu0 %v117
    %1139 = vmatpush1.msra.mxu0 %v116
    %1140 = vmatprep.subr.mxu0 %v121
    %1141 = vmatpush1.msra.mxu0 %v120
    %1142 = vmatprep.subr.mxu0 0.0
    %1143 = vmatpush1.msra.mxu0 0.0
    %1144 = vmatprep.subr.mxu0 0.0
    %1145 = vmatpush1.msra.mxu0 0.0
    %1146 = vmatprep.subr.mxu0 0.0
    %1147 = vmatpush1.msra.mxu0 0.0
    %1148 = vmatprep.subr.mxu0 0.0
    %1149 = vmatpush1.msra.mxu0 0.0
    %1150 = vmatprep.subr.mxu0 0.0
    %1151 = vmatpush1.msra.mxu0 0.0
    %1152 = vmatprep.subr.mxu0 0.0
    %1153 = vmatpush1.msra.mxu0 0.0
    %1154 = vmatprep.subr.mxu0 0.0
    %1155 = vmatpush1.msra.mxu0 0.0
    %1156 = vmatprep.subr.mxu0 0.0
    %1157 = vmatpush1.msra.mxu0 0.0
    %1158 = vmatprep.subr.mxu0 0.0
    %1159 = vmatpush1.msra.mxu0 0.0
    %1160 = vmatprep.subr.mxu0 0.0
    %1161 = vmatpush1.msra.mxu0 0.0
    %1162 = vmatprep.subr.mxu0 0.0
    %1163 = vmatpush1.msra.mxu0 0.0
    %1164 = vmatprep.subr.mxu0 0.0
    %1165 = vmatpush1.msra.mxu0 0.0
    %1166 = vmatprep.subr.mxu0 0.0
    %1167 = vmatpush1.msra.mxu0 0.0
    %1168 = vmatprep.subr.mxu0 0.0
    %1169 = vmatpush1.msra.mxu0 0.0
    %1170 = vmatprep.subr.mxu0 0.0
    %1171 = vmatpush1.msra.mxu0 0.0
    %1172 = vmatprep.subr.mxu0 0.0
    %1173 = vmatpush1.msra.mxu0 0.0
    %1174 = vmatprep.mubr.f32.mxu0 0.0
    %1175 = vmatmul.mubr.f32.gmra.mrb[0].mxu0 %v943
    %v1176 = vpop.f32.mrb[0].mxu0
    %v1177 = vadd.f32 0.0, %v1176
    %v1178 = vpop.f32.mrb[0].mxu0
    %v1179 = vadd.f32 0.0, %v1178
    %1180 = vdwg.mxu0
    %1181 = vmatprep.subr.mxu0 %v63
    %1182 = vmatpush1.msra.mxu0 %v62
    %1183 = vmatprep.subr.mxu0 %v67
    %1184 = vmatpush1.msra.mxu0 %v66
    %1185 = vmatprep.subr.mxu0 %v71
    %1186 = vmatpush1.msra.mxu0 %v70
    %1187 = vmatprep.subr.mxu0 %v75
    %1188 = vmatpush1.msra.mxu0 %v74
    %1189 = vmatprep.subr.mxu0 %v79
    %1190 = vmatpush1.msra.mxu0 %v78
    %1191 = vmatprep.subr.mxu0 %v83
    %1192 = vmatpush1.msra.mxu0 %v82
    %1193 = vmatprep.subr.mxu0 %v87
    %1194 = vmatpush1.msra.mxu0 %v86
    %1195 = vmatprep.subr.mxu0 %v91
    %1196 = vmatpush1.msra.mxu0 %v90
    %1197 = vmatprep.subr.mxu0 %v95
    %1198 = vmatpush1.msra.mxu0 %v94
    %1199 = vmatprep.subr.mxu0 %v99
    %1200 = vmatpush1.msra.mxu0 %v98
    %1201 = vmatprep.subr.mxu0 %v103
    %1202 = vmatpush1.msra.mxu0 %v102
    %1203 = vmatprep.subr.mxu0 %v107
    %1204 = vmatpush1.msra.mxu0 %v106
    %1205 = vmatprep.subr.mxu0 %v111
    %1206 = vmatpush1.msra.mxu0 %v110
    %1207 = vmatprep.subr.mxu0 %v115
    %1208 = vmatpush1.msra.mxu0 %v114
    %1209 = vmatprep.subr.mxu0 %v119
    %1210 = vmatpush1.msra.mxu0 %v118
    %1211 = vmatprep.subr.mxu0 %v123
    %1212 = vmatpush1.msra.mxu0 %v122
    %1213 = vmatprep.subr.mxu0 0.0
    %1214 = vmatpush1.msra.mxu0 0.0
    %1215 = vmatprep.subr.mxu0 0.0
    %1216 = vmatpush1.msra.mxu0 0.0
    %1217 = vmatprep.subr.mxu0 0.0
    %1218 = vmatpush1.msra.mxu0 0.0
    %1219 = vmatprep.subr.mxu0 0.0
    %1220 = vmatpush1.msra.mxu0 0.0
    %1221 = vmatprep.subr.mxu0 0.0
    %1222 = vmatpush1.msra.mxu0 0.0
    %1223 = vmatprep.subr.mxu0 0.0
    %1224 = vmatpush1.msra.mxu0 0.0
    %1225 = vmatprep.subr.mxu0 0.0
    %1226 = vmatpush1.msra.mxu0 0.0
    %1227 = vmatprep.subr.mxu0 0.0
    %1228 = vmatpush1.msra.mxu0 0.0
    %1229 = vmatprep.subr.mxu0 0.0
    %1230 = vmatpush1.msra.mxu0 0.0
    %1231 = vmatprep.subr.mxu0 0.0
    %1232 = vmatpush1.msra.mxu0 0.0
    %1233 = vmatprep.subr.mxu0 0.0
    %1234 = vmatpush1.msra.mxu0 0.0
    %1235 = vmatprep.subr.mxu0 0.0
    %1236 = vmatpush1.msra.mxu0 0.0
    %1237 = vmatprep.subr.mxu0 0.0
    %1238 = vmatpush1.msra.mxu0 0.0
    %1239 = vmatprep.subr.mxu0 0.0
    %1240 = vmatpush1.msra.mxu0 0.0
    %1241 = vmatprep.subr.mxu0 0.0
    %1242 = vmatpush1.msra.mxu0 0.0
    %1243 = vmatprep.subr.mxu0 0.0
    %1244 = vmatpush1.msra.mxu0 0.0
    %1245 = vmatprep.mubr.f32.mxu0 0.0
    %1246 = vmatmul.mubr.f32.gmra.mrb[0].mxu0 %v943
    %v1247 = vpop.f32.mrb[0].mxu0
    %v1248 = vadd.f32 0.0, %v1247
    %v1249 = vpop.f32.mrb[0].mxu0
    %v1250 = vadd.f32 0.0, %v1249
    %1251 = vdwg.mxu0
    %v1252 = vadd.f32 %v359, %v1177
    %v1253 = vadd.f32 %v360, %v1179
    %v1254 = vadd.f32 %v361, %v1248
    %v1255 = vadd.f32 %v362, %v1250
    %v1256 = vxor.u32 %v1252, 2147483648
    %v1257 = vxor.u32 %v1253, 2147483648
    %v1258 = vxor.u32 %v1254, 2147483648
    %v1259 = vmul.f32 %v1256, 1.442695
    %v1260 = vpow.pop %v1259
    %v1261 = vmul.f32 %v1257, 1.442695
    %v1262 = vpow.pop %v1261
    %v1263 = vmul.f32 %v1258, 1.442695
    %v1264 = vpow.pop %v1263
    %v1265 = vadd.f32 %v1260, 1.0
    %v1266 = vadd.f32 %v1262, 1.0
    %v1267 = vadd.f32 %v1264, 1.0
    %v1268 = vrcp.pop %v1265
    %v1269 = vmul.f32 1.0, %v1268
    %v1270 = vrcp.pop %v1266
    %v1271 = vmul.f32 1.0, %v1270
    %v1272 = vrcp.pop %v1267
    %v1273 = vmul.f32 1.0, %v1272
    %v1274 = vtanh.pop %v1255
    %v1275 = vmul.f32 %v1271, %v941
    %v1276 = vmul.f32 %v1269, %v1274
    %v1277 = vadd.f32 %v1275, %v1276
    %v1278 = vtanh.pop %v1277
    %v1279 = vmul.f32 %v1273, %v1278
    %1280 = vmatprep.subr.mxu0 %v125
    %1281 = vmatpush1.msra.mxu0 %v124
    %1282 = vmatprep.subr.mxu0 %v129
    %1283 = vmatpush1.msra.mxu0 %v128
    %1284 = vmatprep.subr.mxu0 %v133
    %1285 = vmatpush1.msra.mxu0 %v132
    %1286 = vmatprep.subr.mxu0 %v137
    %1287 = vmatpush1.msra.mxu0 %v136
    %1288 = vmatprep.subr.mxu0 %v141
    %1289 = vmatpush1.msra.mxu0 %v140
    %1290 = vmatprep.subr.mxu0 %v145
    %1291 = vmatpush1.msra.mxu0 %v144
    %1292 = vmatprep.subr.mxu0 %v149
    %1293 = vmatpush1.msra.mxu0 %v148
    %1294 = vmatprep.subr.mxu0 %v153
    %1295 = vmatpush1.msra.mxu0 %v152
    %1296 = vmatprep.subr.mxu0 %v157
    %1297 = vmatpush1.msra.mxu0 %v156
    %1298 = vmatprep.subr.mxu0 %v161
    %1299 = vmatpush1.msra.mxu0 %v160
    %1300 = vmatprep.subr.mxu0 %v165
    %1301 = vmatpush1.msra.mxu0 %v164
    %1302 = vmatprep.subr.mxu0 %v169
    %1303 = vmatpush1.msra.mxu0 %v168
    %1304 = vmatprep.subr.mxu0 %v173
    %1305 = vmatpush1.msra.mxu0 %v172
    %1306 = vmatprep.subr.mxu0 %v177
    %1307 = vmatpush1.msra.mxu0 %v176
    %1308 = vmatprep.subr.mxu0 %v181
    %1309 = vmatpush1.msra.mxu0 %v180
    %1310 = vmatprep.subr.mxu0 %v185
    %1311 = vmatpush1.msra.mxu0 %v184
    %1312 = vmatprep.subr.mxu0 %v189
    %1313 = vmatpush1.msra.mxu0 %v188
    %1314 = vmatprep.subr.mxu0 %v193
    %1315 = vmatpush1.msra.mxu0 %v192
    %1316 = vmatprep.subr.mxu0 %v197
    %1317 = vmatpush1.msra.mxu0 %v196
    %1318 = vmatprep.subr.mxu0 %v201
    %1319 = vmatpush1.msra.mxu0 %v200
    %1320 = vmatprep.subr.mxu0 %v205
    %1321 = vmatpush1.msra.mxu0 %v204
    %1322 = vmatprep.subr.mxu0 %v209
    %1323 = vmatpush1.msra.mxu0 %v208
    %1324 = vmatprep.subr.mxu0 %v213
    %1325 = vmatpush1.msra.mxu0 %v212
    %1326 = vmatprep.subr.mxu0 %v217
    %1327 = vmatpush1.msra.mxu0 %v216
    %1328 = vmatprep.subr.mxu0 %v221
    %1329 = vmatpush1.msra.mxu0 %v220
    %1330 = vmatprep.subr.mxu0 %v225
    %1331 = vmatpush1.msra.mxu0 %v224
    %1332 = vmatprep.subr.mxu0 %v229
    %1333 = vmatpush1.msra.mxu0 %v228
    %1334 = vmatprep.subr.mxu0 %v233
    %1335 = vmatpush1.msra.mxu0 %v232
    %1336 = vmatprep.subr.mxu0 %v237
    %1337 = vmatpush1.msra.mxu0 %v236
    %1338 = vmatprep.subr.mxu0 %v241
    %1339 = vmatpush1.msra.mxu0 %v240
    %1340 = vmatprep.subr.mxu0 %v245
    %1341 = vmatpush1.msra.mxu0 %v244
    %1342 = vmatprep.subr.mxu0 %v249
    %1343 = vmatpush1.msra.mxu0 %v248
    %1344 = vmatprep.mubr.f32.mxu0 %v1109
    %1345 = vmatmul.mubr.f32.gmra.mrb[0].mxu0 %v1279
    %v1346 = vpop.f32.mrb[0].mxu0
    %v1347 = vadd.f32 %v279, %v1346
    %v1348 = vpop.f32.mrb[0].mxu0
    %v1349 = vadd.f32 %v283, %v1348
    %1350 = vdwg.mxu0
    %1351 = vmatprep.subr.mxu0 %v127
    %1352 = vmatpush1.msra.mxu0 %v126
    %1353 = vmatprep.subr.mxu0 %v131
    %1354 = vmatpush1.msra.mxu0 %v130
    %1355 = vmatprep.subr.mxu0 %v135
    %1356 = vmatpush1.msra.mxu0 %v134
    %1357 = vmatprep.subr.mxu0 %v139
    %1358 = vmatpush1.msra.mxu0 %v138
    %1359 = vmatprep.subr.mxu0 %v143
    %1360 = vmatpush1.msra.mxu0 %v142
    %1361 = vmatprep.subr.mxu0 %v147
    %1362 = vmatpush1.msra.mxu0 %v146
    %1363 = vmatprep.subr.mxu0 %v151
    %1364 = vmatpush1.msra.mxu0 %v150
    %1365 = vmatprep.subr.mxu0 %v155
    %1366 = vmatpush1.msra.mxu0 %v154
    %1367 = vmatprep.subr.mxu0 %v159
    %1368 = vmatpush1.msra.mxu0 %v158
    %1369 = vmatprep.subr.mxu0 %v163
    %1370 = vmatpush1.msra.mxu0 %v162
    %1371 = vmatprep.subr.mxu0 %v167
    %1372 = vmatpush1.msra.mxu0 %v166
    %1373 = vmatprep.subr.mxu0 %v171
    %1374 = vmatpush1.msra.mxu0 %v170
    %1375 = vmatprep.subr.mxu0 %v175
    %1376 = vmatpush1.msra.mxu0 %v174
    %1377 = vmatprep.subr.mxu0 %v179
    %1378 = vmatpush1.msra.mxu0 %v178
    %1379 = vmatprep.subr.mxu0 %v183
    %1380 = vmatpush1.msra.mxu0 %v182
    %1381 = vmatprep.subr.mxu0 %v187
    %1382 = vmatpush1.msra.mxu0 %v186
    %1383 = vmatprep.subr.mxu0 %v191
    %1384 = vmatpush1.msra.mxu0 %v190
    %1385 = vmatprep.subr.mxu0 %v195
    %1386 = vmatpush1.msra.mxu0 %v194
    %1387 = vmatprep.subr.mxu0 %v199
    %1388 = vmatpush1.msra.mxu0 %v198
    %1389 = vmatprep.subr.mxu0 %v203
    %1390 = vmatpush1.msra.mxu0 %v202
    %1391 = vmatprep.subr.mxu0 %v207
    %1392 = vmatpush1.msra.mxu0 %v206
    %1393 = vmatprep.subr.mxu0 %v211
    %1394 = vmatpush1.msra.mxu0 %v210
    %1395 = vmatprep.subr.mxu0 %v215
    %1396 = vmatpush1.msra.mxu0 %v214
    %1397 = vmatprep.subr.mxu0 %v219
    %1398 = vmatpush1.msra.mxu0 %v218
    %1399 = vmatprep.subr.mxu0 %v223
    %1400 = vmatpush1.msra.mxu0 %v222
    %1401 = vmatprep.subr.mxu0 %v227
    %1402 = vmatpush1.msra.mxu0 %v226
    %1403 = vmatprep.subr.mxu0 %v231
    %1404 = vmatpush1.msra.mxu0 %v230
    %1405 = vmatprep.subr.mxu0 %v235
    %1406 = vmatpush1.msra.mxu0 %v234
    %1407 = vmatprep.subr.mxu0 %v239
    %1408 = vmatpush1.msra.mxu0 %v238
    %1409 = vmatprep.subr.mxu0 %v243
    %1410 = vmatpush1.msra.mxu0 %v242
    %1411 = vmatprep.subr.mxu0 %v247
    %1412 = vmatpush1.msra.mxu0 %v246
    %1413 = vmatprep.subr.mxu0 %v251
    %1414 = vmatpush1.msra.mxu0 %v250
    %1415 = vmatprep.mubr.f32.mxu0 %v1109
    %1416 = vmatmul.mubr.f32.gmra.mrb[0].mxu0 %v1279
    %v1417 = vpop.f32.mrb[0].mxu0
    %v1418 = vadd.f32 %v287, %v1417
    %v1419 = vpop.f32.mrb[0].mxu0
    %v1420 = vadd.f32 %v291, %v1419
    %1421 = vdwg.mxu0
    %v1422 = vxor.u32 %v1347, 2147483648
    %v1423 = vxor.u32 %v1349, 2147483648
    %v1424 = vxor.u32 %v1418, 2147483648
    %v1425 = vmul.f32 %v1422, 1.442695
    %v1426 = vpow.pop %v1425
    %v1427 = vmul.f32 %v1423, 1.442695
    %v1428 = vpow.pop %v1427
    %v1429 = vmul.f32 %v1424, 1.442695
    %v1430 = vpow.pop %v1429
    %v1431 = vadd.f32 %v1426, 1.0
    %v1432 = vadd.f32 %v1428, 1.0
    %v1433 = vadd.f32 %v1430, 1.0
    %v1434 = vrcp.pop %v1431
    %v1435 = vmul.f32 1.0, %v1434
    %v1436 = vrcp.pop %v1432
    %v1437 = vmul.f32 1.0, %v1436
    %v1438 = vrcp.pop %v1433
    %v1439 = vmul.f32 1.0, %v1438
    %v1440 = vtanh.pop %v1420
    %v1441 = vmul.f32 %v1437, %v1107
    %v1442 = vmul.f32 %v1435, %v1440
    %v1443 = vadd.f32 %v1441, %v1442
    %v1444 = vtanh.pop %v1443
    %v1445 = vmul.f32 %v1439, %v1444
    %1446 = vmatprep.subr.mxu0 %v61
    %1447 = vmatpush1.msra.mxu0 %v60
    %1448 = vmatprep.subr.mxu0 %v65
    %1449 = vmatpush1.msra.mxu0 %v64
    %1450 = vmatprep.subr.mxu0 %v69
    %1451 = vmatpush1.msra.mxu0 %v68
    %1452 = vmatprep.subr.mxu0 %v73
    %1453 = vmatpush1.msra.mxu0 %v72
    %1454 = vmatprep.subr.mxu0 %v77
    %1455 = vmatpush1.msra.mxu0 %v76
    %1456 = vmatprep.subr.mxu0 %v81
    %1457 = vmatpush1.msra.mxu0 %v80
    %1458 = vmatprep.subr.mxu0 %v85
    %1459 = vmatpush1.msra.mxu0 %v84
    %1460 = vmatprep.subr.mxu0 %v89
    %1461 = vmatpush1.msra.mxu0 %v88
    %1462 = vmatprep.subr.mxu0 %v93
    %1463 = vmatpush1.msra.mxu0 %v92
    %1464 = vmatprep.subr.mxu0 %v97
    %1465 = vmatpush1.msra.mxu0 %v96
    %1466 = vmatprep.subr.mxu0 %v101
    %1467 = vmatpush1.msra.mxu0 %v100
    %1468 = vmatprep.subr.mxu0 %v105
    %1469 = vmatpush1.msra.mxu0 %v104
    %1470 = vmatprep.subr.mxu0 %v109
    %1471 = vmatpush1.msra.mxu0 %v108
    %1472 = vmatprep.subr.mxu0 %v113
    %1473 = vmatpush1.msra.mxu0 %v112
    %1474 = vmatprep.subr.mxu0 %v117
    %1475 = vmatpush1.msra.mxu0 %v116
    %1476 = vmatprep.subr.mxu0 %v121
    %1477 = vmatpush1.msra.mxu0 %v120
    %1478 = vmatprep.subr.mxu0 0.0
    %1479 = vmatpush1.msra.mxu0 0.0
    %1480 = vmatprep.subr.mxu0 0.0
    %1481 = vmatpush1.msra.mxu0 0.0
    %1482 = vmatprep.subr.mxu0 0.0
    %1483 = vmatpush1.msra.mxu0 0.0
    %1484 = vmatprep.subr.mxu0 0.0
    %1485 = vmatpush1.msra.mxu0 0.0
    %1486 = vmatprep.subr.mxu0 0.0
    %1487 = vmatpush1.msra.mxu0 0.0
    %1488 = vmatprep.subr.mxu0 0.0
    %1489 = vmatpush1.msra.mxu0 0.0
    %1490 = vmatprep.subr.mxu0 0.0
    %1491 = vmatpush1.msra.mxu0 0.0
    %1492 = vmatprep.subr.mxu0 0.0
    %1493 = vmatpush1.msra.mxu0 0.0
    %1494 = vmatprep.subr.mxu0 0.0
    %1495 = vmatpush1.msra.mxu0 0.0
    %1496 = vmatprep.subr.mxu0 0.0
    %1497 = vmatpush1.msra.mxu0 0.0
    %1498 = vmatprep.subr.mxu0 0.0
    %1499 = vmatpush1.msra.mxu0 0.0
    %1500 = vmatprep.subr.mxu0 0.0
    %1501 = vmatpush1.msra.mxu0 0.0
    %1502 = vmatprep.subr.mxu0 0.0
    %1503 = vmatpush1.msra.mxu0 0.0
    %1504 = vmatprep.subr.mxu0 0.0
    %1505 = vmatpush1.msra.mxu0 0.0
    %1506 = vmatprep.subr.mxu0 0.0
    %1507 = vmatpush1.msra.mxu0 0.0
    %1508 = vmatprep.subr.mxu0 0.0
    %1509 = vmatpush1.msra.mxu0 0.0
    %1510 = vmatprep.mubr.f32.mxu0 0.0
    %1511 = vmatmul.mubr.f32.gmra.mrb[0].mxu0 %v1279
    %v1512 = vpop.f32.mrb[0].mxu0
    %v1513 = vadd.f32 0.0, %v1512
    %v1514 = vpop.f32.mrb[0].mxu0
    %v1515 = vadd.f32 0.0, %v1514
    %1516 = vdwg.mxu0
    %1517 = vmatprep.subr.mxu0 %v63
    %1518 = vmatpush1.msra.mxu0 %v62
    %1519 = vmatprep.subr.mxu0 %v67
    %1520 = vmatpush1.msra.mxu0 %v66
    %1521 = vmatprep.subr.mxu0 %v71
    %1522 = vmatpush1.msra.mxu0 %v70
    %1523 = vmatprep.subr.mxu0 %v75
    %1524 = vmatpush1.msra.mxu0 %v74
    %1525 = vmatprep.subr.mxu0 %v79
    %1526 = vmatpush1.msra.mxu0 %v78
    %1527 = vmatprep.subr.mxu0 %v83
    %1528 = vmatpush1.msra.mxu0 %v82
    %1529 = vmatprep.subr.mxu0 %v87
    %1530 = vmatpush1.msra.mxu0 %v86
    %1531 = vmatprep.subr.mxu0 %v91
    %1532 = vmatpush1.msra.mxu0 %v90
    %1533 = vmatprep.subr.mxu0 %v95
    %1534 = vmatpush1.msra.mxu0 %v94
    %1535 = vmatprep.subr.mxu0 %v99
    %1536 = vmatpush1.msra.mxu0 %v98
    %1537 = vmatprep.subr.mxu0 %v103
    %1538 = vmatpush1.msra.mxu0 %v102
    %1539 = vmatprep.subr.mxu0 %v107
    %1540 = vmatpush1.msra.mxu0 %v106
    %1541 = vmatprep.subr.mxu0 %v111
    %1542 = vmatpush1.msra.mxu0 %v110
    %1543 = vmatprep.subr.mxu0 %v115
    %1544 = vmatpush1.msra.mxu0 %v114
    %1545 = vmatprep.subr.mxu0 %v119
    %1546 = vmatpush1.msra.mxu0 %v118
    %1547 = vmatprep.subr.mxu0 %v123
    %1548 = vmatpush1.msra.mxu0 %v122
    %1549 = vmatprep.subr.mxu0 0.0
    %1550 = vmatpush1.msra.mxu0 0.0
    %1551 = vmatprep.subr.mxu0 0.0
    %1552 = vmatpush1.msra.mxu0 0.0
    %1553 = vmatprep.subr.mxu0 0.0
    %1554 = vmatpush1.msra.mxu0 0.0
    %1555 = vmatprep.subr.mxu0 0.0
    %1556 = vmatpush1.msra.mxu0 0.0
    %1557 = vmatprep.subr.mxu0 0.0
    %1558 = vmatpush1.msra.mxu0 0.0
    %1559 = vmatprep.subr.mxu0 0.0
    %1560 = vmatpush1.msra.mxu0 0.0
    %1561 = vmatprep.subr.mxu0 0.0
    %1562 = vmatpush1.msra.mxu0 0.0
    %1563 = vmatprep.subr.mxu0 0.0
    %1564 = vmatpush1.msra.mxu0 0.0
    %1565 = vmatprep.subr.mxu0 0.0
    %1566 = vmatpush1.msra.mxu0 0.0
    %1567 = vmatprep.subr.mxu0 0.0
    %1568 = vmatpush1.msra.mxu0 0.0
    %1569 = vmatprep.subr.mxu0 0.0
    %1570 = vmatpush1.msra.mxu0 0.0
    %1571 = vmatprep.subr.mxu0 0.0
    %1572 = vmatpush1.msra.mxu0 0.0
    %1573 = vmatprep.subr.mxu0 0.0
    %1574 = vmatpush1.msra.mxu0 0.0
    %1575 = vmatprep.subr.mxu0 0.0
    %1576 = vmatpush1.msra.mxu0 0.0
    %1577 = vmatprep.subr.mxu0 0.0
    %1578 = vmatpush1.msra.mxu0 0.0
    %1579 = vmatprep.subr.mxu0 0.0
    %1580 = vmatpush1.msra.mxu0 0.0
    %1581 = vmatprep.mubr.f32.mxu0 0.0
    %1582 = vmatmul.mubr.f32.gmra.mrb[0].mxu0 %v1279
    %v1583 = vpop.f32.mrb[0].mxu0
    %v1584 = vadd.f32 0.0, %v1583
    %v1585 = vpop.f32.mrb[0].mxu0
    %v1586 = vadd.f32 0.0, %v1585
    %1587 = vdwg.mxu0
    %v1588 = vadd.f32 %v374, %v1513
    %v1589 = vadd.f32 %v375, %v1515
    %v1590 = vadd.f32 %v376, %v1584
    %v1591 = vadd.f32 %v377, %v1586
    %v1592 = vxor.u32 %v1588, 2147483648
    %v1593 = vxor.u32 %v1589, 2147483648
    %v1594 = vxor.u32 %v1590, 2147483648
    %v1595 = vmul.f32 %v1592, 1.442695
    %v1596 = vpow.pop %v1595
    %v1597 = vmul.f32 %v1593, 1.442695
    %v1598 = vpow.pop %v1597
    %v1599 = vmul.f32 %v1594, 1.442695
    %v1600 = vpow.pop %v1599
    %v1601 = vadd.f32 %v1596, 1.0
    %v1602 = vadd.f32 %v1598, 1.0
    %v1603 = vadd.f32 %v1600, 1.0
    %v1604 = vrcp.pop %v1601
    %v1605 = vmul.f32 1.0, %v1604
    %v1606 = vrcp.pop %v1602
    %v1607 = vmul.f32 1.0, %v1606
    %v1608 = vrcp.pop %v1603
    %v1609 = vmul.f32 1.0, %v1608
    %v1610 = vtanh.pop %v1591
    %v1611 = vmul.f32 %v1607, %v1277
    %v1612 = vmul.f32 %v1605, %v1610
    %v1613 = vadd.f32 %v1611, %v1612
    %v1614 = vtanh.pop %v1613
    %v1615 = vmul.f32 %v1609, %v1614
    %1616 = vmatprep.subr.mxu0 %v125
    %1617 = vmatpush1.msra.mxu0 %v124
    %1618 = vmatprep.subr.mxu0 %v129
    %1619 = vmatpush1.msra.mxu0 %v128
    %1620 = vmatprep.subr.mxu0 %v133
    %1621 = vmatpush1.msra.mxu0 %v132
    %1622 = vmatprep.subr.mxu0 %v137
    %1623 = vmatpush1.msra.mxu0 %v136
    %1624 = vmatprep.subr.mxu0 %v141
    %1625 = vmatpush1.msra.mxu0 %v140
    %1626 = vmatprep.subr.mxu0 %v145
    %1627 = vmatpush1.msra.mxu0 %v144
    %1628 = vmatprep.subr.mxu0 %v149
    %1629 = vmatpush1.msra.mxu0 %v148
    %1630 = vmatprep.subr.mxu0 %v153
    %1631 = vmatpush1.msra.mxu0 %v152
    %1632 = vmatprep.subr.mxu0 %v157
    %1633 = vmatpush1.msra.mxu0 %v156
    %1634 = vmatprep.subr.mxu0 %v161
    %1635 = vmatpush1.msra.mxu0 %v160
    %1636 = vmatprep.subr.mxu0 %v165
    %1637 = vmatpush1.msra.mxu0 %v164
    %1638 = vmatprep.subr.mxu0 %v169
    %1639 = vmatpush1.msra.mxu0 %v168
    %1640 = vmatprep.subr.mxu0 %v173
    %1641 = vmatpush1.msra.mxu0 %v172
    %1642 = vmatprep.subr.mxu0 %v177
    %1643 = vmatpush1.msra.mxu0 %v176
    %1644 = vmatprep.subr.mxu0 %v181
    %1645 = vmatpush1.msra.mxu0 %v180
    %1646 = vmatprep.subr.mxu0 %v185
    %1647 = vmatpush1.msra.mxu0 %v184
    %1648 = vmatprep.subr.mxu0 %v189
    %1649 = vmatpush1.msra.mxu0 %v188
    %1650 = vmatprep.subr.mxu0 %v193
    %1651 = vmatpush1.msra.mxu0 %v192
    %1652 = vmatprep.subr.mxu0 %v197
    %1653 = vmatpush1.msra.mxu0 %v196
    %1654 = vmatprep.subr.mxu0 %v201
    %1655 = vmatpush1.msra.mxu0 %v200
    %1656 = vmatprep.subr.mxu0 %v205
    %1657 = vmatpush1.msra.mxu0 %v204
    %1658 = vmatprep.subr.mxu0 %v209
    %1659 = vmatpush1.msra.mxu0 %v208
    %1660 = vmatprep.subr.mxu0 %v213
    %1661 = vmatpush1.msra.mxu0 %v212
    %1662 = vmatprep.subr.mxu0 %v217
    %1663 = vmatpush1.msra.mxu0 %v216
    %1664 = vmatprep.subr.mxu0 %v221
    %1665 = vmatpush1.msra.mxu0 %v220
    %1666 = vmatprep.subr.mxu0 %v225
    %1667 = vmatpush1.msra.mxu0 %v224
    %1668 = vmatprep.subr.mxu0 %v229
    %1669 = vmatpush1.msra.mxu0 %v228
    %1670 = vmatprep.subr.mxu0 %v233
    %1671 = vmatpush1.msra.mxu0 %v232
    %1672 = vmatprep.subr.mxu0 %v237
    %1673 = vmatpush1.msra.mxu0 %v236
    %1674 = vmatprep.subr.mxu0 %v241
    %1675 = vmatpush1.msra.mxu0 %v240
    %1676 = vmatprep.subr.mxu0 %v245
    %1677 = vmatpush1.msra.mxu0 %v244
    %1678 = vmatprep.subr.mxu0 %v249
    %1679 = vmatpush1.msra.mxu0 %v248
    %1680 = vmatprep.mubr.f32.mxu0 %v1445
    %1681 = vmatmul.mubr.f32.gmra.mrb[0].mxu0 %v1615
    %v1682 = vpop.f32.mrb[0].mxu0
    %v1683 = vadd.f32 %v279, %v1682
    %v1684 = vpop.f32.mrb[0].mxu0
    %v1685 = vadd.f32 %v283, %v1684
    %1686 = vdwg.mxu0
    %1687 = vmatprep.subr.mxu0 %v127
    %1688 = vmatpush1.msra.mxu0 %v126
    %1689 = vmatprep.subr.mxu0 %v131
    %1690 = vmatpush1.msra.mxu0 %v130
    %1691 = vmatprep.subr.mxu0 %v135
    %1692 = vmatpush1.msra.mxu0 %v134
    %1693 = vmatprep.subr.mxu0 %v139
    %1694 = vmatpush1.msra.mxu0 %v138
    %1695 = vmatprep.subr.mxu0 %v143
    %1696 = vmatpush1.msra.mxu0 %v142
    %1697 = vmatprep.subr.mxu0 %v147
    %1698 = vmatpush1.msra.mxu0 %v146
    %1699 = vmatprep.subr.mxu0 %v151
    %1700 = vmatpush1.msra.mxu0 %v150
    %1701 = vmatprep.subr.mxu0 %v155
    %1702 = vmatpush1.msra.mxu0 %v154
    %1703 = vmatprep.subr.mxu0 %v159
    %1704 = vmatpush1.msra.mxu0 %v158
    %1705 = vmatprep.subr.mxu0 %v163
    %1706 = vmatpush1.msra.mxu0 %v162
    %1707 = vmatprep.subr.mxu0 %v167
    %1708 = vmatpush1.msra.mxu0 %v166
    %1709 = vmatprep.subr.mxu0 %v171
    %1710 = vmatpush1.msra.mxu0 %v170
    %1711 = vmatprep.subr.mxu0 %v175
    %1712 = vmatpush1.msra.mxu0 %v174
    %1713 = vmatprep.subr.mxu0 %v179
    %1714 = vmatpush1.msra.mxu0 %v178
    %1715 = vmatprep.subr.mxu0 %v183
    %1716 = vmatpush1.msra.mxu0 %v182
    %1717 = vmatprep.subr.mxu0 %v187
    %1718 = vmatpush1.msra.mxu0 %v186
    %1719 = vmatprep.subr.mxu0 %v191
    %1720 = vmatpush1.msra.mxu0 %v190
    %1721 = vmatprep.subr.mxu0 %v195
    %1722 = vmatpush1.msra.mxu0 %v194
    %1723 = vmatprep.subr.mxu0 %v199
    %1724 = vmatpush1.msra.mxu0 %v198
    %1725 = vmatprep.subr.mxu0 %v203
    %1726 = vmatpush1.msra.mxu0 %v202
    %1727 = vmatprep.subr.mxu0 %v207
    %1728 = vmatpush1.msra.mxu0 %v206
    %1729 = vmatprep.subr.mxu0 %v211
    %1730 = vmatpush1.msra.mxu0 %v210
    %1731 = vmatprep.subr.mxu0 %v215
    %1732 = vmatpush1.msra.mxu0 %v214
    %1733 = vmatprep.subr.mxu0 %v219
    %1734 = vmatpush1.msra.mxu0 %v218
    %1735 = vmatprep.subr.mxu0 %v223
    %1736 = vmatpush1.msra.mxu0 %v222
    %1737 = vmatprep.subr.mxu0 %v227
    %1738 = vmatpush1.msra.mxu0 %v226
    %1739 = vmatprep.subr.mxu0 %v231
    %1740 = vmatpush1.msra.mxu0 %v230
    %1741 = vmatprep.subr.mxu0 %v235
    %1742 = vmatpush1.msra.mxu0 %v234
    %1743 = vmatprep.subr.mxu0 %v239
    %1744 = vmatpush1.msra.mxu0 %v238
    %1745 = vmatprep.subr.mxu0 %v243
    %1746 = vmatpush1.msra.mxu0 %v242
    %1747 = vmatprep.subr.mxu0 %v247
    %1748 = vmatpush1.msra.mxu0 %v246
    %1749 = vmatprep.subr.mxu0 %v251
    %1750 = vmatpush1.msra.mxu0 %v250
    %1751 = vmatprep.mubr.f32.mxu0 %v1445
    %1752 = vmatmul.mubr.f32.gmra.mrb[0].mxu0 %v1615
    %v1753 = vpop.f32.mrb[0].mxu0
    %v1754 = vadd.f32 %v287, %v1753
    %v1755 = vpop.f32.mrb[0].mxu0
    %v1756 = vadd.f32 %v291, %v1755
    %1757 = vdwg.mxu0
    %v1758 = vxor.u32 %v1683, 2147483648
    %v1759 = vxor.u32 %v1685, 2147483648
    %v1760 = vxor.u32 %v1754, 2147483648
    %v1761 = vmul.f32 %v1758, 1.442695
    %v1762 = vpow.pop %v1761
    %v1763 = vmul.f32 %v1759, 1.442695
    %v1764 = vpow.pop %v1763
    %v1765 = vmul.f32 %v1760, 1.442695
    %v1766 = vpow.pop %v1765
    %v1767 = vadd.f32 %v1762, 1.0
    %v1768 = vadd.f32 %v1764, 1.0
    %v1769 = vadd.f32 %v1766, 1.0
    %v1770 = vrcp.pop %v1767
    %v1771 = vmul.f32 1.0, %v1770
    %v1772 = vrcp.pop %v1768
    %v1773 = vmul.f32 1.0, %v1772
    %v1774 = vrcp.pop %v1769
    %v1775 = vmul.f32 1.0, %v1774
    %v1776 = vtanh.pop %v1756
    %v1777 = vmul.f32 %v1773, %v1443
    %v1778 = vmul.f32 %v1771, %v1776
    %v1779 = vadd.f32 %v1777, %v1778
    %v1780 = vtanh.pop %v1779
    %v1781 = vmul.f32 %v1775, %v1780
    %1782 = vmatprep.subr.mxu0 %v61
    %1783 = vmatpush1.msra.mxu0 %v60
    %1784 = vmatprep.subr.mxu0 %v65
    %1785 = vmatpush1.msra.mxu0 %v64
    %1786 = vmatprep.subr.mxu0 %v69
    %1787 = vmatpush1.msra.mxu0 %v68
    %1788 = vmatprep.subr.mxu0 %v73
    %1789 = vmatpush1.msra.mxu0 %v72
    %1790 = vmatprep.subr.mxu0 %v77
    %1791 = vmatpush1.msra.mxu0 %v76
    %1792 = vmatprep.subr.mxu0 %v81
    %1793 = vmatpush1.msra.mxu0 %v80
    %1794 = vmatprep.subr.mxu0 %v85
    %1795 = vmatpush1.msra.mxu0 %v84
    %1796 = vmatprep.subr.mxu0 %v89
    %1797 = vmatpush1.msra.mxu0 %v88
    %1798 = vmatprep.subr.mxu0 %v93
    %1799 = vmatpush1.msra.mxu0 %v92
    %1800 = vmatprep.subr.mxu0 %v97
    %1801 = vmatpush1.msra.mxu0 %v96
    %1802 = vmatprep.subr.mxu0 %v101
    %1803 = vmatpush1.msra.mxu0 %v100
    %1804 = vmatprep.subr.mxu0 %v105
    %1805 = vmatpush1.msra.mxu0 %v104
    %1806 = vmatprep.subr.mxu0 %v109
    %1807 = vmatpush1.msra.mxu0 %v108
    %1808 = vmatprep.subr.mxu0 %v113
    %1809 = vmatpush1.msra.mxu0 %v112
    %1810 = vmatprep.subr.mxu0 %v117
    %1811 = vmatpush1.msra.mxu0 %v116
    %1812 = vmatprep.subr.mxu0 %v121
    %1813 = vmatpush1.msra.mxu0 %v120
    %1814 = vmatprep.subr.mxu0 0.0
    %1815 = vmatpush1.msra.mxu0 0.0
    %1816 = vmatprep.subr.mxu0 0.0
    %1817 = vmatpush1.msra.mxu0 0.0
    %1818 = vmatprep.subr.mxu0 0.0
    %1819 = vmatpush1.msra.mxu0 0.0
    %1820 = vmatprep.subr.mxu0 0.0
    %1821 = vmatpush1.msra.mxu0 0.0
    %1822 = vmatprep.subr.mxu0 0.0
    %1823 = vmatpush1.msra.mxu0 0.0
    %1824 = vmatprep.subr.mxu0 0.0
    %1825 = vmatpush1.msra.mxu0 0.0
    %1826 = vmatprep.subr.mxu0 0.0
    %1827 = vmatpush1.msra.mxu0 0.0
    %1828 = vmatprep.subr.mxu0 0.0
    %1829 = vmatpush1.msra.mxu0 0.0
    %1830 = vmatprep.subr.mxu0 0.0
    %1831 = vmatpush1.msra.mxu0 0.0
    %1832 = vmatprep.subr.mxu0 0.0
    %1833 = vmatpush1.msra.mxu0 0.0
    %1834 = vmatprep.subr.mxu0 0.0
    %1835 = vmatpush1.msra.mxu0 0.0
    %1836 = vmatprep.subr.mxu0 0.0
    %1837 = vmatpush1.msra.mxu0 0.0
    %1838 = vmatprep.subr.mxu0 0.0
    %1839 = vmatpush1.msra.mxu0 0.0
    %1840 = vmatprep.subr.mxu0 0.0
    %1841 = vmatpush1.msra.mxu0 0.0
    %1842 = vmatprep.subr.mxu0 0.0
    %1843 = vmatpush1.msra.mxu0 0.0
    %1844 = vmatprep.subr.mxu0 0.0
    %1845 = vmatpush1.msra.mxu0 0.0
    %1846 = vmatprep.mubr.f32.mxu0 0.0
    %1847 = vmatmul.mubr.f32.gmra.mrb[0].mxu0 %v1615
    %v1848 = vpop.f32.mrb[0].mxu0
    %v1849 = vadd.f32 0.0, %v1848
    %v1850 = vpop.f32.mrb[0].mxu0
    %v1851 = vadd.f32 0.0, %v1850
    %1852 = vdwg.mxu0
    %1853 = vmatprep.subr.mxu0 %v63
    %1854 = vmatpush1.msra.mxu0 %v62
    %1855 = vmatprep.subr.mxu0 %v67
    %1856 = vmatpush1.msra.mxu0 %v66
    %1857 = vmatprep.subr.mxu0 %v71
    %1858 = vmatpush1.msra.mxu0 %v70
    %1859 = vmatprep.subr.mxu0 %v75
    %1860 = vmatpush1.msra.mxu0 %v74
    %1861 = vmatprep.subr.mxu0 %v79
    %1862 = vmatpush1.msra.mxu0 %v78
    %1863 = vmatprep.subr.mxu0 %v83
    %1864 = vmatpush1.msra.mxu0 %v82
    %1865 = vmatprep.subr.mxu0 %v87
    %1866 = vmatpush1.msra.mxu0 %v86
    %1867 = vmatprep.subr.mxu0 %v91
    %1868 = vmatpush1.msra.mxu0 %v90
    %1869 = vmatprep.subr.mxu0 %v95
    %1870 = vmatpush1.msra.mxu0 %v94
    %1871 = vmatprep.subr.mxu0 %v99
    %1872 = vmatpush1.msra.mxu0 %v98
    %1873 = vmatprep.subr.mxu0 %v103
    %1874 = vmatpush1.msra.mxu0 %v102
    %1875 = vmatprep.subr.mxu0 %v107
    %1876 = vmatpush1.msra.mxu0 %v106
    %1877 = vmatprep.subr.mxu0 %v111
    %1878 = vmatpush1.msra.mxu0 %v110
    %1879 = vmatprep.subr.mxu0 %v115
    %1880 = vmatpush1.msra.mxu0 %v114
    %1881 = vmatprep.subr.mxu0 %v119
    %1882 = vmatpush1.msra.mxu0 %v118
    %1883 = vmatprep.subr.mxu0 %v123
    %1884 = vmatpush1.msra.mxu0 %v122
    %1885 = vmatprep.subr.mxu0 0.0
    %1886 = vmatpush1.msra.mxu0 0.0
    %1887 = vmatprep.subr.mxu0 0.0
    %1888 = vmatpush1.msra.mxu0 0.0
    %1889 = vmatprep.subr.mxu0 0.0
    %1890 = vmatpush1.msra.mxu0 0.0
    %1891 = vmatprep.subr.mxu0 0.0
    %1892 = vmatpush1.msra.mxu0 0.0
    %1893 = vmatprep.subr.mxu0 0.0
    %1894 = vmatpush1.msra.mxu0 0.0
    %1895 = vmatprep.subr.mxu0 0.0
    %1896 = vmatpush1.msra.mxu0 0.0
    %1897 = vmatprep.subr.mxu0 0.0
    %1898 = vmatpush1.msra.mxu0 0.0
    %1899 = vmatprep.subr.mxu0 0.0
    %1900 = vmatpush1.msra.mxu0 0.0
    %1901 = vmatprep.subr.mxu0 0.0
    %1902 = vmatpush1.msra.mxu0 0.0
    %1903 = vmatprep.subr.mxu0 0.0
    %1904 = vmatpush1.msra.mxu0 0.0
    %1905 = vmatprep.subr.mxu0 0.0
    %1906 = vmatpush1.msra.mxu0 0.0
    %1907 = vmatprep.subr.mxu0 0.0
    %1908 = vmatpush1.msra.mxu0 0.0
    %1909 = vmatprep.subr.mxu0 0.0
    %1910 = vmatpush1.msra.mxu0 0.0
    %1911 = vmatprep.subr.mxu0 0.0
    %1912 = vmatpush1.msra.mxu0 0.0
    %1913 = vmatprep.subr.mxu0 0.0
    %1914 = vmatpush1.msra.mxu0 0.0
    %1915 = vmatprep.subr.mxu0 0.0
    %1916 = vmatpush1.msra.mxu0 0.0
    %1917 = vmatprep.mubr.f32.mxu0 0.0
    %1918 = vmatmul.mubr.f32.gmra.mrb[0].mxu0 %v1615
    %v1919 = vpop.f32.mrb[0].mxu0
    %v1920 = vadd.f32 0.0, %v1919
    %v1921 = vpop.f32.mrb[0].mxu0
    %v1922 = vadd.f32 0.0, %v1921
    %1923 = vdwg.mxu0
    %v1924 = vadd.f32 %v389, %v1849
    %v1925 = vadd.f32 %v390, %v1851
    %v1926 = vadd.f32 %v391, %v1920
    %v1927 = vadd.f32 %v392, %v1922
    %v1928 = vxor.u32 %v1924, 2147483648
    %v1929 = vxor.u32 %v1925, 2147483648
    %v1930 = vxor.u32 %v1926, 2147483648
    %v1931 = vmul.f32 %v1928, 1.442695
    %v1932 = vpow.pop %v1931
    %v1933 = vmul.f32 %v1929, 1.442695
    %v1934 = vpow.pop %v1933
    %v1935 = vmul.f32 %v1930, 1.442695
    %v1936 = vpow.pop %v1935
    %v1937 = vadd.f32 %v1932, 1.0
    %v1938 = vadd.f32 %v1934, 1.0
    %v1939 = vadd.f32 %v1936, 1.0
    %v1940 = vrcp.pop %v1937
    %v1941 = vmul.f32 1.0, %v1940
    %v1942 = vrcp.pop %v1938
    %v1943 = vmul.f32 1.0, %v1942
    %v1944 = vrcp.pop %v1939
    %v1945 = vmul.f32 1.0, %v1944
    %v1946 = vtanh.pop %v1927
    %v1947 = vmul.f32 %v1943, %v1613
    %v1948 = vmul.f32 %v1941, %v1946
    %v1949 = vadd.f32 %v1947, %v1948
    %v1950 = vtanh.pop %v1949
    %v1951 = vmul.f32 %v1945, %v1950
    %1952 = vmatprep.subr.mxu0 %v125
    %1953 = vmatpush1.msra.mxu0 %v124
    %1954 = vmatprep.subr.mxu0 %v129
    %1955 = vmatpush1.msra.mxu0 %v128
    %1956 = vmatprep.subr.mxu0 %v133
    %1957 = vmatpush1.msra.mxu0 %v132
    %1958 = vmatprep.subr.mxu0 %v137
    %1959 = vmatpush1.msra.mxu0 %v136
    %1960 = vmatprep.subr.mxu0 %v141
    %1961 = vmatpush1.msra.mxu0 %v140
    %1962 = vmatprep.subr.mxu0 %v145
    %1963 = vmatpush1.msra.mxu0 %v144
    %1964 = vmatprep.subr.mxu0 %v149
    %1965 = vmatpush1.msra.mxu0 %v148
    %1966 = vmatprep.subr.mxu0 %v153
    %1967 = vmatpush1.msra.mxu0 %v152
    %1968 = vmatprep.subr.mxu0 %v157
    %1969 = vmatpush1.msra.mxu0 %v156
    %1970 = vmatprep.subr.mxu0 %v161
    %1971 = vmatpush1.msra.mxu0 %v160
    %1972 = vmatprep.subr.mxu0 %v165
    %1973 = vmatpush1.msra.mxu0 %v164
    %1974 = vmatprep.subr.mxu0 %v169
    %1975 = vmatpush1.msra.mxu0 %v168
    %1976 = vmatprep.subr.mxu0 %v173
    %1977 = vmatpush1.msra.mxu0 %v172
    %1978 = vmatprep.subr.mxu0 %v177
    %1979 = vmatpush1.msra.mxu0 %v176
    %1980 = vmatprep.subr.mxu0 %v181
    %1981 = vmatpush1.msra.mxu0 %v180
    %1982 = vmatprep.subr.mxu0 %v185
    %1983 = vmatpush1.msra.mxu0 %v184
    %1984 = vmatprep.subr.mxu0 %v189
    %1985 = vmatpush1.msra.mxu0 %v188
    %1986 = vmatprep.subr.mxu0 %v193
    %1987 = vmatpush1.msra.mxu0 %v192
    %1988 = vmatprep.subr.mxu0 %v197
    %1989 = vmatpush1.msra.mxu0 %v196
    %1990 = vmatprep.subr.mxu0 %v201
    %1991 = vmatpush1.msra.mxu0 %v200
    %1992 = vmatprep.subr.mxu0 %v205
    %1993 = vmatpush1.msra.mxu0 %v204
    %1994 = vmatprep.subr.mxu0 %v209
    %1995 = vmatpush1.msra.mxu0 %v208
    %1996 = vmatprep.subr.mxu0 %v213
    %1997 = vmatpush1.msra.mxu0 %v212
    %1998 = vmatprep.subr.mxu0 %v217
    %1999 = vmatpush1.msra.mxu0 %v216
    %2000 = vmatprep.subr.mxu0 %v221
    %2001 = vmatpush1.msra.mxu0 %v220
    %2002 = vmatprep.subr.mxu0 %v225
    %2003 = vmatpush1.msra.mxu0 %v224
    %2004 = vmatprep.subr.mxu0 %v229
    %2005 = vmatpush1.msra.mxu0 %v228
    %2006 = vmatprep.subr.mxu0 %v233
    %2007 = vmatpush1.msra.mxu0 %v232
    %2008 = vmatprep.subr.mxu0 %v237
    %2009 = vmatpush1.msra.mxu0 %v236
    %2010 = vmatprep.subr.mxu0 %v241
    %2011 = vmatpush1.msra.mxu0 %v240
    %2012 = vmatprep.subr.mxu0 %v245
    %2013 = vmatpush1.msra.mxu0 %v244
    %2014 = vmatprep.subr.mxu0 %v249
    %2015 = vmatpush1.msra.mxu0 %v248
    %2016 = vmatprep.mubr.f32.mxu0 %v1781
    %2017 = vmatmul.mubr.f32.gmra.mrb[0].mxu0 %v1951
    %v2018 = vpop.f32.mrb[0].mxu0
    %v2019 = vadd.f32 %v279, %v2018
    %v2020 = vpop.f32.mrb[0].mxu0
    %v2021 = vadd.f32 %v283, %v2020
    %2022 = vdwg.mxu0
    %2023 = vmatprep.subr.mxu0 %v127
    %2024 = vmatpush1.msra.mxu0 %v126
    %2025 = vmatprep.subr.mxu0 %v131
    %2026 = vmatpush1.msra.mxu0 %v130
    %2027 = vmatprep.subr.mxu0 %v135
    %2028 = vmatpush1.msra.mxu0 %v134
    %2029 = vmatprep.subr.mxu0 %v139
    %2030 = vmatpush1.msra.mxu0 %v138
    %2031 = vmatprep.subr.mxu0 %v143
    %2032 = vmatpush1.msra.mxu0 %v142
    %2033 = vmatprep.subr.mxu0 %v147
    %2034 = vmatpush1.msra.mxu0 %v146
    %2035 = vmatprep.subr.mxu0 %v151
    %2036 = vmatpush1.msra.mxu0 %v150
    %2037 = vmatprep.subr.mxu0 %v155
    %2038 = vmatpush1.msra.mxu0 %v154
    %2039 = vmatprep.subr.mxu0 %v159
    %2040 = vmatpush1.msra.mxu0 %v158
    %2041 = vmatprep.subr.mxu0 %v163
    %2042 = vmatpush1.msra.mxu0 %v162
    %2043 = vmatprep.subr.mxu0 %v167
    %2044 = vmatpush1.msra.mxu0 %v166
    %2045 = vmatprep.subr.mxu0 %v171
    %2046 = vmatpush1.msra.mxu0 %v170
    %2047 = vmatprep.subr.mxu0 %v175
    %2048 = vmatpush1.msra.mxu0 %v174
    %2049 = vmatprep.subr.mxu0 %v179
    %2050 = vmatpush1.msra.mxu0 %v178
    %2051 = vmatprep.subr.mxu0 %v183
    %2052 = vmatpush1.msra.mxu0 %v182
    %2053 = vmatprep.subr.mxu0 %v187
    %2054 = vmatpush1.msra.mxu0 %v186
    %2055 = vmatprep.subr.mxu0 %v191
    %2056 = vmatpush1.msra.mxu0 %v190
    %2057 = vmatprep.subr.mxu0 %v195
    %2058 = vmatpush1.msra.mxu0 %v194
    %2059 = vmatprep.subr.mxu0 %v199
    %2060 = vmatpush1.msra.mxu0 %v198
    %2061 = vmatprep.subr.mxu0 %v203
    %2062 = vmatpush1.msra.mxu0 %v202
    %2063 = vmatprep.subr.mxu0 %v207
    %2064 = vmatpush1.msra.mxu0 %v206
    %2065 = vmatprep.subr.mxu0 %v211
    %2066 = vmatpush1.msra.mxu0 %v210
    %2067 = vmatprep.subr.mxu0 %v215
    %2068 = vmatpush1.msra.mxu0 %v214
    %2069 = vmatprep.subr.mxu0 %v219
    %2070 = vmatpush1.msra.mxu0 %v218
    %2071 = vmatprep.subr.mxu0 %v223
    %2072 = vmatpush1.msra.mxu0 %v222
    %2073 = vmatprep.subr.mxu0 %v227
    %2074 = vmatpush1.msra.mxu0 %v226
    %2075 = vmatprep.subr.mxu0 %v231
    %2076 = vmatpush1.msra.mxu0 %v230
    %2077 = vmatprep.subr.mxu0 %v235
    %2078 = vmatpush1.msra.mxu0 %v234
    %2079 = vmatprep.subr.mxu0 %v239
    %2080 = vmatpush1.msra.mxu0 %v238
    %2081 = vmatprep.subr.mxu0 %v243
    %2082 = vmatpush1.msra.mxu0 %v242
    %2083 = vmatprep.subr.mxu0 %v247
    %2084 = vmatpush1.msra.mxu0 %v246
    %2085 = vmatprep.subr.mxu0 %v251
    %2086 = vmatpush1.msra.mxu0 %v250
    %2087 = vmatprep.mubr.f32.mxu0 %v1781
    %2088 = vmatmul.mubr.f32.gmra.mrb[0].mxu0 %v1951
    %v2089 = vpop.f32.mrb[0].mxu0
    %v2090 = vadd.f32 %v287, %v2089
    %v2091 = vpop.f32.mrb[0].mxu0
    %v2092 = vadd.f32 %v291, %v2091
    %2093 = vdwg.mxu0
    %v2094 = vxor.u32 %v2019, 2147483648
    %v2095 = vxor.u32 %v2021, 2147483648
    %v2096 = vxor.u32 %v2090, 2147483648
    %v2097 = vmul.f32 %v2094, 1.442695
    %v2098 = vpow.pop %v2097
    %v2099 = vmul.f32 %v2095, 1.442695
    %v2100 = vpow.pop %v2099
    %v2101 = vmul.f32 %v2096, 1.442695
    %v2102 = vpow.pop %v2101
    %v2103 = vadd.f32 %v2098, 1.0
    %v2104 = vadd.f32 %v2100, 1.0
    %v2105 = vadd.f32 %v2102, 1.0
    %v2106 = vrcp.pop %v2103
    %v2107 = vmul.f32 1.0, %v2106
    %v2108 = vrcp.pop %v2104
    %v2109 = vmul.f32 1.0, %v2108
    %v2110 = vrcp.pop %v2105
    %v2111 = vmul.f32 1.0, %v2110
    %v2112 = vtanh.pop %v2092
    %v2113 = vmul.f32 %v2109, %v1779
    %v2114 = vmul.f32 %v2107, %v2112
    %v2115 = vadd.f32 %v2113, %v2114
    %v2116 = vtanh.pop %v2115
    %v2117 = vmul.f32 %v2111, %v2116
    %2118 = vmatprep.subr.mxu0 %v61
    %2119 = vmatpush1.msra.mxu0 %v60
    %2120 = vmatprep.subr.mxu0 %v65
    %2121 = vmatpush1.msra.mxu0 %v64
    %2122 = vmatprep.subr.mxu0 %v69
    %2123 = vmatpush1.msra.mxu0 %v68
    %2124 = vmatprep.subr.mxu0 %v73
    %2125 = vmatpush1.msra.mxu0 %v72
    %2126 = vmatprep.subr.mxu0 %v77
    %2127 = vmatpush1.msra.mxu0 %v76
    %2128 = vmatprep.subr.mxu0 %v81
    %2129 = vmatpush1.msra.mxu0 %v80
    %2130 = vmatprep.subr.mxu0 %v85
    %2131 = vmatpush1.msra.mxu0 %v84
    %2132 = vmatprep.subr.mxu0 %v89
    %2133 = vmatpush1.msra.mxu0 %v88
    %2134 = vmatprep.subr.mxu0 %v93
    %2135 = vmatpush1.msra.mxu0 %v92
    %2136 = vmatprep.subr.mxu0 %v97
    %2137 = vmatpush1.msra.mxu0 %v96
    %2138 = vmatprep.subr.mxu0 %v101
    %2139 = vmatpush1.msra.mxu0 %v100
    %2140 = vmatprep.subr.mxu0 %v105
    %2141 = vmatpush1.msra.mxu0 %v104
    %2142 = vmatprep.subr.mxu0 %v109
    %2143 = vmatpush1.msra.mxu0 %v108
    %2144 = vmatprep.subr.mxu0 %v113
    %2145 = vmatpush1.msra.mxu0 %v112
    %2146 = vmatprep.subr.mxu0 %v117
    %2147 = vmatpush1.msra.mxu0 %v116
    %2148 = vmatprep.subr.mxu0 %v121
    %2149 = vmatpush1.msra.mxu0 %v120
    %2150 = vmatprep.subr.mxu0 0.0
    %2151 = vmatpush1.msra.mxu0 0.0
    %2152 = vmatprep.subr.mxu0 0.0
    %2153 = vmatpush1.msra.mxu0 0.0
    %2154 = vmatprep.subr.mxu0 0.0
    %2155 = vmatpush1.msra.mxu0 0.0
    %2156 = vmatprep.subr.mxu0 0.0
    %2157 = vmatpush1.msra.mxu0 0.0
    %2158 = vmatprep.subr.mxu0 0.0
    %2159 = vmatpush1.msra.mxu0 0.0
    %2160 = vmatprep.subr.mxu0 0.0
    %2161 = vmatpush1.msra.mxu0 0.0
    %2162 = vmatprep.subr.mxu0 0.0
    %2163 = vmatpush1.msra.mxu0 0.0
    %2164 = vmatprep.subr.mxu0 0.0
    %2165 = vmatpush1.msra.mxu0 0.0
    %2166 = vmatprep.subr.mxu0 0.0
    %2167 = vmatpush1.msra.mxu0 0.0
    %2168 = vmatprep.subr.mxu0 0.0
    %2169 = vmatpush1.msra.mxu0 0.0
    %2170 = vmatprep.subr.mxu0 0.0
    %2171 = vmatpush1.msra.mxu0 0.0
    %2172 = vmatprep.subr.mxu0 0.0
    %2173 = vmatpush1.msra.mxu0 0.0
    %2174 = vmatprep.subr.mxu0 0.0
    %2175 = vmatpush1.msra.mxu0 0.0
    %2176 = vmatprep.subr.mxu0 0.0
    %2177 = vmatpush1.msra.mxu0 0.0
    %2178 = vmatprep.subr.mxu0 0.0
    %2179 = vmatpush1.msra.mxu0 0.0
    %2180 = vmatprep.subr.mxu0 0.0
    %2181 = vmatpush1.msra.mxu0 0.0
    %2182 = vmatprep.mubr.f32.mxu0 0.0
    %2183 = vmatmul.mubr.f32.gmra.mrb[0].mxu0 %v1951
    %v2184 = vpop.f32.mrb[0].mxu0
    %v2185 = vadd.f32 0.0, %v2184
    %v2186 = vpop.f32.mrb[0].mxu0
    %v2187 = vadd.f32 0.0, %v2186
    %2188 = vdwg.mxu0
    %2189 = vmatprep.subr.mxu0 %v63
    %2190 = vmatpush1.msra.mxu0 %v62
    %2191 = vmatprep.subr.mxu0 %v67
    %2192 = vmatpush1.msra.mxu0 %v66
    %2193 = vmatprep.subr.mxu0 %v71
    %2194 = vmatpush1.msra.mxu0 %v70
    %2195 = vmatprep.subr.mxu0 %v75
    %2196 = vmatpush1.msra.mxu0 %v74
    %2197 = vmatprep.subr.mxu0 %v79
    %2198 = vmatpush1.msra.mxu0 %v78
    %2199 = vmatprep.subr.mxu0 %v83
    %2200 = vmatpush1.msra.mxu0 %v82
    %2201 = vmatprep.subr.mxu0 %v87
    %2202 = vmatpush1.msra.mxu0 %v86
    %2203 = vmatprep.subr.mxu0 %v91
    %2204 = vmatpush1.msra.mxu0 %v90
    %2205 = vmatprep.subr.mxu0 %v95
    %2206 = vmatpush1.msra.mxu0 %v94
    %2207 = vmatprep.subr.mxu0 %v99
    %2208 = vmatpush1.msra.mxu0 %v98
    %2209 = vmatprep.subr.mxu0 %v103
    %2210 = vmatpush1.msra.mxu0 %v102
    %2211 = vmatprep.subr.mxu0 %v107
    %2212 = vmatpush1.msra.mxu0 %v106
    %2213 = vmatprep.subr.mxu0 %v111
    %2214 = vmatpush1.msra.mxu0 %v110
    %2215 = vmatprep.subr.mxu0 %v115
    %2216 = vmatpush1.msra.mxu0 %v114
    %2217 = vmatprep.subr.mxu0 %v119
    %2218 = vmatpush1.msra.mxu0 %v118
    %2219 = vmatprep.subr.mxu0 %v123
    %2220 = vmatpush1.msra.mxu0 %v122
    %2221 = vmatprep.subr.mxu0 0.0
    %2222 = vmatpush1.msra.mxu0 0.0
    %2223 = vmatprep.subr.mxu0 0.0
    %2224 = vmatpush1.msra.mxu0 0.0
    %2225 = vmatprep.subr.mxu0 0.0
    %2226 = vmatpush1.msra.mxu0 0.0
    %2227 = vmatprep.subr.mxu0 0.0
    %2228 = vmatpush1.msra.mxu0 0.0
    %2229 = vmatprep.subr.mxu0 0.0
    %2230 = vmatpush1.msra.mxu0 0.0
    %2231 = vmatprep.subr.mxu0 0.0
    %2232 = vmatpush1.msra.mxu0 0.0
    %2233 = vmatprep.subr.mxu0 0.0
    %2234 = vmatpush1.msra.mxu0 0.0
    %2235 = vmatprep.subr.mxu0 0.0
    %2236 = vmatpush1.msra.mxu0 0.0
    %2237 = vmatprep.subr.mxu0 0.0
    %2238 = vmatpush1.msra.mxu0 0.0
    %2239 = vmatprep.subr.mxu0 0.0
    %2240 = vmatpush1.msra.mxu0 0.0
    %2241 = vmatprep.subr.mxu0 0.0
    %2242 = vmatpush1.msra.mxu0 0.0
    %2243 = vmatprep.subr.mxu0 0.0
    %2244 = vmatpush1.msra.mxu0 0.0
    %2245 = vmatprep.subr.mxu0 0.0
    %2246 = vmatpush1.msra.mxu0 0.0
    %2247 = vmatprep.subr.mxu0 0.0
    %2248 = vmatpush1.msra.mxu0 0.0
    %2249 = vmatprep.subr.mxu0 0.0
    %2250 = vmatpush1.msra.mxu0 0.0
    %2251 = vmatprep.subr.mxu0 0.0
    %2252 = vmatpush1.msra.mxu0 0.0
    %2253 = vmatprep.mubr.f32.mxu0 0.0
    %2254 = vmatmul.mubr.f32.gmra.mrb[0].mxu0 %v1951
    %v2255 = vpop.f32.mrb[0].mxu0
    %v2256 = vadd.f32 0.0, %v2255
    %v2257 = vpop.f32.mrb[0].mxu0
    %v2258 = vadd.f32 0.0, %v2257
    %2259 = vdwg.mxu0
    %v2260 = vadd.f32 %v404, %v2185
    %v2261 = vadd.f32 %v405, %v2187
    %v2262 = vadd.f32 %v406, %v2256
    %v2263 = vadd.f32 %v407, %v2258
    %v2264 = vxor.u32 %v2260, 2147483648
    %v2265 = vxor.u32 %v2261, 2147483648
    %v2266 = vxor.u32 %v2262, 2147483648
    %v2267 = vmul.f32 %v2264, 1.442695
    %v2268 = vpow.pop %v2267
    %v2269 = vmul.f32 %v2265, 1.442695
    %v2270 = vpow.pop %v2269
    %v2271 = vmul.f32 %v2266, 1.442695
    %v2272 = vpow.pop %v2271
    %v2273 = vadd.f32 %v2268, 1.0
    %v2274 = vadd.f32 %v2270, 1.0
    %v2275 = vadd.f32 %v2272, 1.0
    %v2276 = vrcp.pop %v2273
    %v2277 = vmul.f32 1.0, %v2276
    %v2278 = vrcp.pop %v2274
    %v2279 = vmul.f32 1.0, %v2278
    %v2280 = vrcp.pop %v2275
    %v2281 = vmul.f32 1.0, %v2280
    %v2282 = vtanh.pop %v2263
    %v2283 = vmul.f32 %v2279, %v1949
    %v2284 = vmul.f32 %v2277, %v2282
    %v2285 = vadd.f32 %v2283, %v2284
    %v2286 = vtanh.pop %v2285
    %v2287 = vmul.f32 %v2281, %v2286
    %2288 = vmatprep.subr.mxu0 %v125
    %2289 = vmatpush1.msra.mxu0 %v124
    %2290 = vmatprep.subr.mxu0 %v129
    %2291 = vmatpush1.msra.mxu0 %v128
    %2292 = vmatprep.subr.mxu0 %v133
    %2293 = vmatpush1.msra.mxu0 %v132
    %2294 = vmatprep.subr.mxu0 %v137
    %2295 = vmatpush1.msra.mxu0 %v136
    %2296 = vmatprep.subr.mxu0 %v141
    %2297 = vmatpush1.msra.mxu0 %v140
    %2298 = vmatprep.subr.mxu0 %v145
    %2299 = vmatpush1.msra.mxu0 %v144
    %2300 = vmatprep.subr.mxu0 %v149
    %2301 = vmatpush1.msra.mxu0 %v148
    %2302 = vmatprep.subr.mxu0 %v153
    %2303 = vmatpush1.msra.mxu0 %v152
    %2304 = vmatprep.subr.mxu0 %v157
    %2305 = vmatpush1.msra.mxu0 %v156
    %2306 = vmatprep.subr.mxu0 %v161
    %2307 = vmatpush1.msra.mxu0 %v160
    %2308 = vmatprep.subr.mxu0 %v165
    %2309 = vmatpush1.msra.mxu0 %v164
    %2310 = vmatprep.subr.mxu0 %v169
    %2311 = vmatpush1.msra.mxu0 %v168
    %2312 = vmatprep.subr.mxu0 %v173
    %2313 = vmatpush1.msra.mxu0 %v172
    %2314 = vmatprep.subr.mxu0 %v177
    %2315 = vmatpush1.msra.mxu0 %v176
    %2316 = vmatprep.subr.mxu0 %v181
    %2317 = vmatpush1.msra.mxu0 %v180
    %2318 = vmatprep.subr.mxu0 %v185
    %2319 = vmatpush1.msra.mxu0 %v184
    %2320 = vmatprep.subr.mxu0 %v189
    %2321 = vmatpush1.msra.mxu0 %v188
    %2322 = vmatprep.subr.mxu0 %v193
    %2323 = vmatpush1.msra.mxu0 %v192
    %2324 = vmatprep.subr.mxu0 %v197
    %2325 = vmatpush1.msra.mxu0 %v196
    %2326 = vmatprep.subr.mxu0 %v201
    %2327 = vmatpush1.msra.mxu0 %v200
    %2328 = vmatprep.subr.mxu0 %v205
    %2329 = vmatpush1.msra.mxu0 %v204
    %2330 = vmatprep.subr.mxu0 %v209
    %2331 = vmatpush1.msra.mxu0 %v208
    %2332 = vmatprep.subr.mxu0 %v213
    %2333 = vmatpush1.msra.mxu0 %v212
    %2334 = vmatprep.subr.mxu0 %v217
    %2335 = vmatpush1.msra.mxu0 %v216
    %2336 = vmatprep.subr.mxu0 %v221
    %2337 = vmatpush1.msra.mxu0 %v220
    %2338 = vmatprep.subr.mxu0 %v225
    %2339 = vmatpush1.msra.mxu0 %v224
    %2340 = vmatprep.subr.mxu0 %v229
    %2341 = vmatpush1.msra.mxu0 %v228
    %2342 = vmatprep.subr.mxu0 %v233
    %2343 = vmatpush1.msra.mxu0 %v232
    %2344 = vmatprep.subr.mxu0 %v237
    %2345 = vmatpush1.msra.mxu0 %v236
    %2346 = vmatprep.subr.mxu0 %v241
    %2347 = vmatpush1.msra.mxu0 %v240
    %2348 = vmatprep.subr.mxu0 %v245
    %2349 = vmatpush1.msra.mxu0 %v244
    %2350 = vmatprep.subr.mxu0 %v249
    %2351 = vmatpush1.msra.mxu0 %v248
    %2352 = vmatprep.mubr.f32.mxu0 %v2117
    %2353 = vmatmul.mubr.f32.gmra.mrb[0].mxu0 %v2287
    %v2354 = vpop.f32.mrb[0].mxu0
    %v2355 = vadd.f32 %v279, %v2354
    %v2356 = vpop.f32.mrb[0].mxu0
    %v2357 = vadd.f32 %v283, %v2356
    %2358 = vdwg.mxu0
    %2359 = vmatprep.subr.mxu0 %v127
    %2360 = vmatpush1.msra.mxu0 %v126
    %2361 = vmatprep.subr.mxu0 %v131
    %2362 = vmatpush1.msra.mxu0 %v130
    %2363 = vmatprep.subr.mxu0 %v135
    %2364 = vmatpush1.msra.mxu0 %v134
    %2365 = vmatprep.subr.mxu0 %v139
    %2366 = vmatpush1.msra.mxu0 %v138
    %2367 = vmatprep.subr.mxu0 %v143
    %2368 = vmatpush1.msra.mxu0 %v142
    %2369 = vmatprep.subr.mxu0 %v147
    %2370 = vmatpush1.msra.mxu0 %v146
    %2371 = vmatprep.subr.mxu0 %v151
    %2372 = vmatpush1.msra.mxu0 %v150
    %2373 = vmatprep.subr.mxu0 %v155
    %2374 = vmatpush1.msra.mxu0 %v154
    %2375 = vmatprep.subr.mxu0 %v159
    %2376 = vmatpush1.msra.mxu0 %v158
    %2377 = vmatprep.subr.mxu0 %v163
    %2378 = vmatpush1.msra.mxu0 %v162
    %2379 = vmatprep.subr.mxu0 %v167
    %2380 = vmatpush1.msra.mxu0 %v166
    %2381 = vmatprep.subr.mxu0 %v171
    %2382 = vmatpush1.msra.mxu0 %v170
    %2383 = vmatprep.subr.mxu0 %v175
    %2384 = vmatpush1.msra.mxu0 %v174
    %2385 = vmatprep.subr.mxu0 %v179
    %2386 = vmatpush1.msra.mxu0 %v178
    %2387 = vmatprep.subr.mxu0 %v183
    %2388 = vmatpush1.msra.mxu0 %v182
    %2389 = vmatprep.subr.mxu0 %v187
    %2390 = vmatpush1.msra.mxu0 %v186
    %2391 = vmatprep.subr.mxu0 %v191
    %2392 = vmatpush1.msra.mxu0 %v190
    %2393 = vmatprep.subr.mxu0 %v195
    %2394 = vmatpush1.msra.mxu0 %v194
    %2395 = vmatprep.subr.mxu0 %v199
    %2396 = vmatpush1.msra.mxu0 %v198
    %2397 = vmatprep.subr.mxu0 %v203
    %2398 = vmatpush1.msra.mxu0 %v202
    %2399 = vmatprep.subr.mxu0 %v207
    %2400 = vmatpush1.msra.mxu0 %v206
    %2401 = vmatprep.subr.mxu0 %v211
    %2402 = vmatpush1.msra.mxu0 %v210
    %2403 = vmatprep.subr.mxu0 %v215
    %2404 = vmatpush1.msra.mxu0 %v214
    %2405 = vmatprep.subr.mxu0 %v219
    %2406 = vmatpush1.msra.mxu0 %v218
    %2407 = vmatprep.subr.mxu0 %v223
    %2408 = vmatpush1.msra.mxu0 %v222
    %2409 = vmatprep.subr.mxu0 %v227
    %2410 = vmatpush1.msra.mxu0 %v226
    %2411 = vmatprep.subr.mxu0 %v231
    %2412 = vmatpush1.msra.mxu0 %v230
    %2413 = vmatprep.subr.mxu0 %v235
    %2414 = vmatpush1.msra.mxu0 %v234
    %2415 = vmatprep.subr.mxu0 %v239
    %2416 = vmatpush1.msra.mxu0 %v238
    %2417 = vmatprep.subr.mxu0 %v243
    %2418 = vmatpush1.msra.mxu0 %v242
    %2419 = vmatprep.subr.mxu0 %v247
    %2420 = vmatpush1.msra.mxu0 %v246
    %2421 = vmatprep.subr.mxu0 %v251
    %2422 = vmatpush1.msra.mxu0 %v250
    %2423 = vmatprep.mubr.f32.mxu0 %v2117
    %2424 = vmatmul.mubr.f32.gmra.mrb[0].mxu0 %v2287
    %v2425 = vpop.f32.mrb[0].mxu0
    %v2426 = vadd.f32 %v287, %v2425
    %v2427 = vpop.f32.mrb[0].mxu0
    %v2428 = vadd.f32 %v291, %v2427
    %2429 = vdwg.mxu0
    %v2430 = vxor.u32 %v2355, 2147483648
    %v2431 = vxor.u32 %v2357, 2147483648
    %v2432 = vxor.u32 %v2426, 2147483648
    %v2433 = vmul.f32 %v2430, 1.442695
    %v2434 = vpow.pop %v2433
    %v2435 = vmul.f32 %v2431, 1.442695
    %v2436 = vpow.pop %v2435
    %v2437 = vmul.f32 %v2432, 1.442695
    %v2438 = vpow.pop %v2437
    %v2439 = vadd.f32 %v2434, 1.0
    %v2440 = vadd.f32 %v2436, 1.0
    %v2441 = vadd.f32 %v2438, 1.0
    %v2442 = vrcp.pop %v2439
    %v2443 = vmul.f32 1.0, %v2442
    %v2444 = vrcp.pop %v2440
    %v2445 = vmul.f32 1.0, %v2444
    %v2446 = vrcp.pop %v2441
    %v2447 = vmul.f32 1.0, %v2446
    %v2448 = vtanh.pop %v2428
    %v2449 = vmul.f32 %v2445, %v2115
    %v2450 = vmul.f32 %v2443, %v2448
    %v2451 = vadd.f32 %v2449, %v2450
    %v2452 = vtanh.pop %v2451
    %v2453 = vmul.f32 %v2447, %v2452
    %2454 = vmatprep.subr.mxu0 %v61
    %2455 = vmatpush1.msra.mxu0 %v60
    %2456 = vmatprep.subr.mxu0 %v65
    %2457 = vmatpush1.msra.mxu0 %v64
    %2458 = vmatprep.subr.mxu0 %v69
    %2459 = vmatpush1.msra.mxu0 %v68
    %2460 = vmatprep.subr.mxu0 %v73
    %2461 = vmatpush1.msra.mxu0 %v72
    %2462 = vmatprep.subr.mxu0 %v77
    %2463 = vmatpush1.msra.mxu0 %v76
    %2464 = vmatprep.subr.mxu0 %v81
    %2465 = vmatpush1.msra.mxu0 %v80
    %2466 = vmatprep.subr.mxu0 %v85
    %2467 = vmatpush1.msra.mxu0 %v84
    %2468 = vmatprep.subr.mxu0 %v89
    %2469 = vmatpush1.msra.mxu0 %v88
    %2470 = vmatprep.subr.mxu0 %v93
    %2471 = vmatpush1.msra.mxu0 %v92
    %2472 = vmatprep.subr.mxu0 %v97
    %2473 = vmatpush1.msra.mxu0 %v96
    %2474 = vmatprep.subr.mxu0 %v101
    %2475 = vmatpush1.msra.mxu0 %v100
    %2476 = vmatprep.subr.mxu0 %v105
    %2477 = vmatpush1.msra.mxu0 %v104
    %2478 = vmatprep.subr.mxu0 %v109
    %2479 = vmatpush1.msra.mxu0 %v108
    %2480 = vmatprep.subr.mxu0 %v113
    %2481 = vmatpush1.msra.mxu0 %v112
    %2482 = vmatprep.subr.mxu0 %v117
    %2483 = vmatpush1.msra.mxu0 %v116
    %2484 = vmatprep.subr.mxu0 %v121
    %2485 = vmatpush1.msra.mxu0 %v120
    %2486 = vmatprep.subr.mxu0 0.0
    %2487 = vmatpush1.msra.mxu0 0.0
    %2488 = vmatprep.subr.mxu0 0.0
    %2489 = vmatpush1.msra.mxu0 0.0
    %2490 = vmatprep.subr.mxu0 0.0
    %2491 = vmatpush1.msra.mxu0 0.0
    %2492 = vmatprep.subr.mxu0 0.0
    %2493 = vmatpush1.msra.mxu0 0.0
    %2494 = vmatprep.subr.mxu0 0.0
    %2495 = vmatpush1.msra.mxu0 0.0
    %2496 = vmatprep.subr.mxu0 0.0
    %2497 = vmatpush1.msra.mxu0 0.0
    %2498 = vmatprep.subr.mxu0 0.0
    %2499 = vmatpush1.msra.mxu0 0.0
    %2500 = vmatprep.subr.mxu0 0.0
    %2501 = vmatpush1.msra.mxu0 0.0
    %2502 = vmatprep.subr.mxu0 0.0
    %2503 = vmatpush1.msra.mxu0 0.0
    %2504 = vmatprep.subr.mxu0 0.0
    %2505 = vmatpush1.msra.mxu0 0.0
    %2506 = vmatprep.subr.mxu0 0.0
    %2507 = vmatpush1.msra.mxu0 0.0
    %2508 = vmatprep.subr.mxu0 0.0
    %2509 = vmatpush1.msra.mxu0 0.0
    %2510 = vmatprep.subr.mxu0 0.0
    %2511 = vmatpush1.msra.mxu0 0.0
    %2512 = vmatprep.subr.mxu0 0.0
    %2513 = vmatpush1.msra.mxu0 0.0
    %2514 = vmatprep.subr.mxu0 0.0
    %2515 = vmatpush1.msra.mxu0 0.0
    %2516 = vmatprep.subr.mxu0 0.0
    %2517 = vmatpush1.msra.mxu0 0.0
    %2518 = vmatprep.mubr.f32.mxu0 0.0
    %2519 = vmatmul.mubr.f32.gmra.mrb[0].mxu0 %v2287
    %v2520 = vpop.f32.mrb[0].mxu0
    %v2521 = vadd.f32 0.0, %v2520
    %v2522 = vpop.f32.mrb[0].mxu0
    %v2523 = vadd.f32 0.0, %v2522
    %2524 = vdwg.mxu0
    %2525 = vmatprep.subr.mxu0 %v63
    %2526 = vmatpush1.msra.mxu0 %v62
    %2527 = vmatprep.subr.mxu0 %v67
    %2528 = vmatpush1.msra.mxu0 %v66
    %2529 = vmatprep.subr.mxu0 %v71
    %2530 = vmatpush1.msra.mxu0 %v70
    %2531 = vmatprep.subr.mxu0 %v75
    %2532 = vmatpush1.msra.mxu0 %v74
    %2533 = vmatprep.subr.mxu0 %v79
    %2534 = vmatpush1.msra.mxu0 %v78
    %2535 = vmatprep.subr.mxu0 %v83
    %2536 = vmatpush1.msra.mxu0 %v82
    %2537 = vmatprep.subr.mxu0 %v87
    %2538 = vmatpush1.msra.mxu0 %v86
    %2539 = vmatprep.subr.mxu0 %v91
    %2540 = vmatpush1.msra.mxu0 %v90
    %2541 = vmatprep.subr.mxu0 %v95
    %2542 = vmatpush1.msra.mxu0 %v94
    %2543 = vmatprep.subr.mxu0 %v99
    %2544 = vmatpush1.msra.mxu0 %v98
    %2545 = vmatprep.subr.mxu0 %v103
    %2546 = vmatpush1.msra.mxu0 %v102
    %2547 = vmatprep.subr.mxu0 %v107
    %2548 = vmatpush1.msra.mxu0 %v106
    %2549 = vmatprep.subr.mxu0 %v111
    %2550 = vmatpush1.msra.mxu0 %v110
    %2551 = vmatprep.subr.mxu0 %v115
    %2552 = vmatpush1.msra.mxu0 %v114
    %2553 = vmatprep.subr.mxu0 %v119
    %2554 = vmatpush1.msra.mxu0 %v118
    %2555 = vmatprep.subr.mxu0 %v123
    %2556 = vmatpush1.msra.mxu0 %v122
    %2557 = vmatprep.subr.mxu0 0.0
    %2558 = vmatpush1.msra.mxu0 0.0
    %2559 = vmatprep.subr.mxu0 0.0
    %2560 = vmatpush1.msra.mxu0 0.0
    %2561 = vmatprep.subr.mxu0 0.0
    %2562 = vmatpush1.msra.mxu0 0.0
    %2563 = vmatprep.subr.mxu0 0.0
    %2564 = vmatpush1.msra.mxu0 0.0
    %2565 = vmatprep.subr.mxu0 0.0
    %2566 = vmatpush1.msra.mxu0 0.0
    %2567 = vmatprep.subr.mxu0 0.0
    %2568 = vmatpush1.msra.mxu0 0.0
    %2569 = vmatprep.subr.mxu0 0.0
    %2570 = vmatpush1.msra.mxu0 0.0
    %2571 = vmatprep.subr.mxu0 0.0
    %2572 = vmatpush1.msra.mxu0 0.0
    %2573 = vmatprep.subr.mxu0 0.0
    %2574 = vmatpush1.msra.mxu0 0.0
    %2575 = vmatprep.subr.mxu0 0.0
    %2576 = vmatpush1.msra.mxu0 0.0
    %2577 = vmatprep.subr.mxu0 0.0
    %2578 = vmatpush1.msra.mxu0 0.0
    %2579 = vmatprep.subr.mxu0 0.0
    %2580 = vmatpush1.msra.mxu0 0.0
    %2581 = vmatprep.subr.mxu0 0.0
    %2582 = vmatpush1.msra.mxu0 0.0
    %2583 = vmatprep.subr.mxu0 0.0
    %2584 = vmatpush1.msra.mxu0 0.0
    %2585 = vmatprep.subr.mxu0 0.0
    %2586 = vmatpush1.msra.mxu0 0.0
    %2587 = vmatprep.subr.mxu0 0.0
    %2588 = vmatpush1.msra.mxu0 0.0
    %2589 = vmatprep.mubr.f32.mxu0 0.0
    %2590 = vmatmul.mubr.f32.gmra.mrb[0].mxu0 %v2287
    %v2591 = vpop.f32.mrb[0].mxu0
    %v2592 = vadd.f32 0.0, %v2591
    %v2593 = vpop.f32.mrb[0].mxu0
    %v2594 = vadd.f32 0.0, %v2593
    %2595 = vdwg.mxu0
    %v2596 = vadd.f32 %v419, %v2521
    %v2597 = vadd.f32 %v420, %v2523
    %v2598 = vadd.f32 %v421, %v2592
    %v2599 = vadd.f32 %v422, %v2594
    %v2600 = vxor.u32 %v2596, 2147483648
    %v2601 = vxor.u32 %v2597, 2147483648
    %v2602 = vxor.u32 %v2598, 2147483648
    %v2603 = vmul.f32 %v2600, 1.442695
    %v2604 = vpow.pop %v2603
    %v2605 = vmul.f32 %v2601, 1.442695
    %v2606 = vpow.pop %v2605
    %v2607 = vmul.f32 %v2602, 1.442695
    %v2608 = vpow.pop %v2607
    %v2609 = vadd.f32 %v2604, 1.0
    %v2610 = vadd.f32 %v2606, 1.0
    %v2611 = vadd.f32 %v2608, 1.0
    %v2612 = vrcp.pop %v2609
    %v2613 = vmul.f32 1.0, %v2612
    %v2614 = vrcp.pop %v2610
    %v2615 = vmul.f32 1.0, %v2614
    %v2616 = vrcp.pop %v2611
    %v2617 = vmul.f32 1.0, %v2616
    %v2618 = vtanh.pop %v2599
    %v2619 = vmul.f32 %v2615, %v2285
    %v2620 = vmul.f32 %v2613, %v2618
    %v2621 = vadd.f32 %v2619, %v2620
    %v2622 = vtanh.pop %v2621
    %v2623 = vmul.f32 %v2617, %v2622
    %2624 = vmatprep.subr.mxu0 %v125
    %2625 = vmatpush1.msra.mxu0 %v124
    %2626 = vmatprep.subr.mxu0 %v129
    %2627 = vmatpush1.msra.mxu0 %v128
    %2628 = vmatprep.subr.mxu0 %v133
    %2629 = vmatpush1.msra.mxu0 %v132
    %2630 = vmatprep.subr.mxu0 %v137
    %2631 = vmatpush1.msra.mxu0 %v136
    %2632 = vmatprep.subr.mxu0 %v141
    %2633 = vmatpush1.msra.mxu0 %v140
    %2634 = vmatprep.subr.mxu0 %v145
    %2635 = vmatpush1.msra.mxu0 %v144
    %2636 = vmatprep.subr.mxu0 %v149
    %2637 = vmatpush1.msra.mxu0 %v148
    %2638 = vmatprep.subr.mxu0 %v153
    %2639 = vmatpush1.msra.mxu0 %v152
    %2640 = vmatprep.subr.mxu0 %v157
    %2641 = vmatpush1.msra.mxu0 %v156
    %2642 = vmatprep.subr.mxu0 %v161
    %2643 = vmatpush1.msra.mxu0 %v160
    %2644 = vmatprep.subr.mxu0 %v165
    %2645 = vmatpush1.msra.mxu0 %v164
    %2646 = vmatprep.subr.mxu0 %v169
    %2647 = vmatpush1.msra.mxu0 %v168
    %2648 = vmatprep.subr.mxu0 %v173
    %2649 = vmatpush1.msra.mxu0 %v172
    %2650 = vmatprep.subr.mxu0 %v177
    %2651 = vmatpush1.msra.mxu0 %v176
    %2652 = vmatprep.subr.mxu0 %v181
    %2653 = vmatpush1.msra.mxu0 %v180
    %2654 = vmatprep.subr.mxu0 %v185
    %2655 = vmatpush1.msra.mxu0 %v184
    %2656 = vmatprep.subr.mxu0 %v189
    %2657 = vmatpush1.msra.mxu0 %v188
    %2658 = vmatprep.subr.mxu0 %v193
    %2659 = vmatpush1.msra.mxu0 %v192
    %2660 = vmatprep.subr.mxu0 %v197
    %2661 = vmatpush1.msra.mxu0 %v196
    %2662 = vmatprep.subr.mxu0 %v201
    %2663 = vmatpush1.msra.mxu0 %v200
    %2664 = vmatprep.subr.mxu0 %v205
    %2665 = vmatpush1.msra.mxu0 %v204
    %2666 = vmatprep.subr.mxu0 %v209
    %2667 = vmatpush1.msra.mxu0 %v208
    %2668 = vmatprep.subr.mxu0 %v213
    %2669 = vmatpush1.msra.mxu0 %v212
    %2670 = vmatprep.subr.mxu0 %v217
    %2671 = vmatpush1.msra.mxu0 %v216
    %2672 = vmatprep.subr.mxu0 %v221
    %2673 = vmatpush1.msra.mxu0 %v220
    %2674 = vmatprep.subr.mxu0 %v225
    %2675 = vmatpush1.msra.mxu0 %v224
    %2676 = vmatprep.subr.mxu0 %v229
    %2677 = vmatpush1.msra.mxu0 %v228
    %2678 = vmatprep.subr.mxu0 %v233
    %2679 = vmatpush1.msra.mxu0 %v232
    %2680 = vmatprep.subr.mxu0 %v237
    %2681 = vmatpush1.msra.mxu0 %v236
    %2682 = vmatprep.subr.mxu0 %v241
    %2683 = vmatpush1.msra.mxu0 %v240
    %2684 = vmatprep.subr.mxu0 %v245
    %2685 = vmatpush1.msra.mxu0 %v244
    %2686 = vmatprep.subr.mxu0 %v249
    %2687 = vmatpush1.msra.mxu0 %v248
    %2688 = vmatprep.mubr.f32.mxu0 %v2453
    %2689 = vmatmul.mubr.f32.gmra.mrb[0].mxu0 %v2623
    %v2690 = vpop.f32.mrb[0].mxu0
    %v2691 = vadd.f32 %v279, %v2690
    %v2692 = vpop.f32.mrb[0].mxu0
    %v2693 = vadd.f32 %v283, %v2692
    %2694 = vdwg.mxu0
    %2695 = vmatprep.subr.mxu0 %v127
    %2696 = vmatpush1.msra.mxu0 %v126
    %2697 = vmatprep.subr.mxu0 %v131
    %2698 = vmatpush1.msra.mxu0 %v130
    %2699 = vmatprep.subr.mxu0 %v135
    %2700 = vmatpush1.msra.mxu0 %v134
    %2701 = vmatprep.subr.mxu0 %v139
    %2702 = vmatpush1.msra.mxu0 %v138
    %2703 = vmatprep.subr.mxu0 %v143
    %2704 = vmatpush1.msra.mxu0 %v142
    %2705 = vmatprep.subr.mxu0 %v147
    %2706 = vmatpush1.msra.mxu0 %v146
    %2707 = vmatprep.subr.mxu0 %v151
    %2708 = vmatpush1.msra.mxu0 %v150
    %2709 = vmatprep.subr.mxu0 %v155
    %2710 = vmatpush1.msra.mxu0 %v154
    %2711 = vmatprep.subr.mxu0 %v159
    %2712 = vmatpush1.msra.mxu0 %v158
    %2713 = vmatprep.subr.mxu0 %v163
    %2714 = vmatpush1.msra.mxu0 %v162
    %2715 = vmatprep.subr.mxu0 %v167
    %2716 = vmatpush1.msra.mxu0 %v166
    %2717 = vmatprep.subr.mxu0 %v171
    %2718 = vmatpush1.msra.mxu0 %v170
    %2719 = vmatprep.subr.mxu0 %v175
    %2720 = vmatpush1.msra.mxu0 %v174
    %2721 = vmatprep.subr.mxu0 %v179
    %2722 = vmatpush1.msra.mxu0 %v178
    %2723 = vmatprep.subr.mxu0 %v183
    %2724 = vmatpush1.msra.mxu0 %v182
    %2725 = vmatprep.subr.mxu0 %v187
    %2726 = vmatpush1.msra.mxu0 %v186
    %2727 = vmatprep.subr.mxu0 %v191
    %2728 = vmatpush1.msra.mxu0 %v190
    %2729 = vmatprep.subr.mxu0 %v195
    %2730 = vmatpush1.msra.mxu0 %v194
    %2731 = vmatprep.subr.mxu0 %v199
    %2732 = vmatpush1.msra.mxu0 %v198
    %2733 = vmatprep.subr.mxu0 %v203
    %2734 = vmatpush1.msra.mxu0 %v202
    %2735 = vmatprep.subr.mxu0 %v207
    %2736 = vmatpush1.msra.mxu0 %v206
    %2737 = vmatprep.subr.mxu0 %v211
    %2738 = vmatpush1.msra.mxu0 %v210
    %2739 = vmatprep.subr.mxu0 %v215
    %2740 = vmatpush1.msra.mxu0 %v214
    %2741 = vmatprep.subr.mxu0 %v219
    %2742 = vmatpush1.msra.mxu0 %v218
    %2743 = vmatprep.subr.mxu0 %v223
    %2744 = vmatpush1.msra.mxu0 %v222
    %2745 = vmatprep.subr.mxu0 %v227
    %2746 = vmatpush1.msra.mxu0 %v226
    %2747 = vmatprep.subr.mxu0 %v231
    %2748 = vmatpush1.msra.mxu0 %v230
    %2749 = vmatprep.subr.mxu0 %v235
    %2750 = vmatpush1.msra.mxu0 %v234
    %2751 = vmatprep.subr.mxu0 %v239
    %2752 = vmatpush1.msra.mxu0 %v238
    %2753 = vmatprep.subr.mxu0 %v243
    %2754 = vmatpush1.msra.mxu0 %v242
    %2755 = vmatprep.subr.mxu0 %v247
    %2756 = vmatpush1.msra.mxu0 %v246
    %2757 = vmatprep.subr.mxu0 %v251
    %2758 = vmatpush1.msra.mxu0 %v250
    %2759 = vmatprep.mubr.f32.mxu0 %v2453
    %2760 = vmatmul.mubr.f32.gmra.mrb[0].mxu0 %v2623
    %v2761 = vpop.f32.mrb[0].mxu0
    %v2762 = vadd.f32 %v287, %v2761
    %v2763 = vpop.f32.mrb[0].mxu0
    %v2764 = vadd.f32 %v291, %v2763
    %2765 = vdwg.mxu0
    %v2766 = vxor.u32 %v2691, 2147483648
    %v2767 = vxor.u32 %v2693, 2147483648
    %v2768 = vxor.u32 %v2762, 2147483648
    %v2769 = vmul.f32 %v2766, 1.442695
    %v2770 = vpow.pop %v2769
    %v2771 = vmul.f32 %v2767, 1.442695
    %v2772 = vpow.pop %v2771
    %v2773 = vmul.f32 %v2768, 1.442695
    %v2774 = vpow.pop %v2773
    %v2775 = vadd.f32 %v2770, 1.0
    %v2776 = vadd.f32 %v2772, 1.0
    %v2777 = vadd.f32 %v2774, 1.0
    %v2778 = vrcp.pop %v2775
    %v2779 = vmul.f32 1.0, %v2778
    %v2780 = vrcp.pop %v2776
    %v2781 = vmul.f32 1.0, %v2780
    %v2782 = vrcp.pop %v2777
    %v2783 = vmul.f32 1.0, %v2782
    %v2784 = vtanh.pop %v2764
    %v2785 = vmul.f32 %v2781, %v2451
    %v2786 = vmul.f32 %v2779, %v2784
    %v2787 = vadd.f32 %v2785, %v2786
    %v2788 = vtanh.pop %v2787
    %v2789 = vmul.f32 %v2783, %v2788
    %2790 = vmatprep.subr.mxu0 %v61
    %2791 = vmatpush1.msra.mxu0 %v60
    %2792 = vmatprep.subr.mxu0 %v65
    %2793 = vmatpush1.msra.mxu0 %v64
    %2794 = vmatprep.subr.mxu0 %v69
    %2795 = vmatpush1.msra.mxu0 %v68
    %2796 = vmatprep.subr.mxu0 %v73
    %2797 = vmatpush1.msra.mxu0 %v72
    %2798 = vmatprep.subr.mxu0 %v77
    %2799 = vmatpush1.msra.mxu0 %v76
    %2800 = vmatprep.subr.mxu0 %v81
    %2801 = vmatpush1.msra.mxu0 %v80
    %2802 = vmatprep.subr.mxu0 %v85
    %2803 = vmatpush1.msra.mxu0 %v84
    %2804 = vmatprep.subr.mxu0 %v89
    %2805 = vmatpush1.msra.mxu0 %v88
    %2806 = vmatprep.subr.mxu0 %v93
    %2807 = vmatpush1.msra.mxu0 %v92
    %2808 = vmatprep.subr.mxu0 %v97
    %2809 = vmatpush1.msra.mxu0 %v96
    %2810 = vmatprep.subr.mxu0 %v101
    %2811 = vmatpush1.msra.mxu0 %v100
    %2812 = vmatprep.subr.mxu0 %v105
    %2813 = vmatpush1.msra.mxu0 %v104
    %2814 = vmatprep.subr.mxu0 %v109
    %2815 = vmatpush1.msra.mxu0 %v108
    %2816 = vmatprep.subr.mxu0 %v113
    %2817 = vmatpush1.msra.mxu0 %v112
    %2818 = vmatprep.subr.mxu0 %v117
    %2819 = vmatpush1.msra.mxu0 %v116
    %2820 = vmatprep.subr.mxu0 %v121
    %2821 = vmatpush1.msra.mxu0 %v120
    %2822 = vmatprep.subr.mxu0 0.0
    %2823 = vmatpush1.msra.mxu0 0.0
    %2824 = vmatprep.subr.mxu0 0.0
    %2825 = vmatpush1.msra.mxu0 0.0
    %2826 = vmatprep.subr.mxu0 0.0
    %2827 = vmatpush1.msra.mxu0 0.0
    %2828 = vmatprep.subr.mxu0 0.0
    %2829 = vmatpush1.msra.mxu0 0.0
    %2830 = vmatprep.subr.mxu0 0.0
    %2831 = vmatpush1.msra.mxu0 0.0
    %2832 = vmatprep.subr.mxu0 0.0
    %2833 = vmatpush1.msra.mxu0 0.0
    %2834 = vmatprep.subr.mxu0 0.0
    %2835 = vmatpush1.msra.mxu0 0.0
    %2836 = vmatprep.subr.mxu0 0.0
    %2837 = vmatpush1.msra.mxu0 0.0
    %2838 = vmatprep.subr.mxu0 0.0
    %2839 = vmatpush1.msra.mxu0 0.0
    %2840 = vmatprep.subr.mxu0 0.0
    %2841 = vmatpush1.msra.mxu0 0.0
    %2842 = vmatprep.subr.mxu0 0.0
    %2843 = vmatpush1.msra.mxu0 0.0
    %2844 = vmatprep.subr.mxu0 0.0
    %2845 = vmatpush1.msra.mxu0 0.0
    %2846 = vmatprep.subr.mxu0 0.0
    %2847 = vmatpush1.msra.mxu0 0.0
    %2848 = vmatprep.subr.mxu0 0.0
    %2849 = vmatpush1.msra.mxu0 0.0
    %2850 = vmatprep.subr.mxu0 0.0
    %2851 = vmatpush1.msra.mxu0 0.0
    %2852 = vmatprep.subr.mxu0 0.0
    %2853 = vmatpush1.msra.mxu0 0.0
    %2854 = vmatprep.mubr.f32.mxu0 0.0
    %2855 = vmatmul.mubr.f32.gmra.mrb[0].mxu0 %v2623
    %v2856 = vpop.f32.mrb[0].mxu0
    %v2857 = vadd.f32 0.0, %v2856
    %v2858 = vpop.f32.mrb[0].mxu0
    %v2859 = vadd.f32 0.0, %v2858
    %2860 = vdwg.mxu0
    %2861 = vmatprep.subr.mxu0 %v63
    %2862 = vmatpush1.msra.mxu0 %v62
    %2863 = vmatprep.subr.mxu0 %v67
    %2864 = vmatpush1.msra.mxu0 %v66
    %2865 = vmatprep.subr.mxu0 %v71
    %2866 = vmatpush1.msra.mxu0 %v70
    %2867 = vmatprep.subr.mxu0 %v75
    %2868 = vmatpush1.msra.mxu0 %v74
    %2869 = vmatprep.subr.mxu0 %v79
    %2870 = vmatpush1.msra.mxu0 %v78
    %2871 = vmatprep.subr.mxu0 %v83
    %2872 = vmatpush1.msra.mxu0 %v82
    %2873 = vmatprep.subr.mxu0 %v87
    %2874 = vmatpush1.msra.mxu0 %v86
    %2875 = vmatprep.subr.mxu0 %v91
    %2876 = vmatpush1.msra.mxu0 %v90
    %2877 = vmatprep.subr.mxu0 %v95
    %2878 = vmatpush1.msra.mxu0 %v94
    %2879 = vmatprep.subr.mxu0 %v99
    %2880 = vmatpush1.msra.mxu0 %v98
    %2881 = vmatprep.subr.mxu0 %v103
    %2882 = vmatpush1.msra.mxu0 %v102
    %2883 = vmatprep.subr.mxu0 %v107
    %2884 = vmatpush1.msra.mxu0 %v106
    %2885 = vmatprep.subr.mxu0 %v111
    %2886 = vmatpush1.msra.mxu0 %v110
    %2887 = vmatprep.subr.mxu0 %v115
    %2888 = vmatpush1.msra.mxu0 %v114
    %2889 = vmatprep.subr.mxu0 %v119
    %2890 = vmatpush1.msra.mxu0 %v118
    %2891 = vmatprep.subr.mxu0 %v123
    %2892 = vmatpush1.msra.mxu0 %v122
    %2893 = vmatprep.subr.mxu0 0.0
    %2894 = vmatpush1.msra.mxu0 0.0
    %2895 = vmatprep.subr.mxu0 0.0
    %2896 = vmatpush1.msra.mxu0 0.0
    %2897 = vmatprep.subr.mxu0 0.0
    %2898 = vmatpush1.msra.mxu0 0.0
    %2899 = vmatprep.subr.mxu0 0.0
    %2900 = vmatpush1.msra.mxu0 0.0
    %2901 = vmatprep.subr.mxu0 0.0
    %2902 = vmatpush1.msra.mxu0 0.0
    %2903 = vmatprep.subr.mxu0 0.0
    %2904 = vmatpush1.msra.mxu0 0.0
    %2905 = vmatprep.subr.mxu0 0.0
    %2906 = vmatpush1.msra.mxu0 0.0
    %2907 = vmatprep.subr.mxu0 0.0
    %2908 = vmatpush1.msra.mxu0 0.0
    %2909 = vmatprep.subr.mxu0 0.0
    %2910 = vmatpush1.msra.mxu0 0.0
    %2911 = vmatprep.subr.mxu0 0.0
    %2912 = vmatpush1.msra.mxu0 0.0
    %2913 = vmatprep.subr.mxu0 0.0
    %2914 = vmatpush1.msra.mxu0 0.0
    %2915 = vmatprep.subr.mxu0 0.0
    %2916 = vmatpush1.msra.mxu0 0.0
    %2917 = vmatprep.subr.mxu0 0.0
    %2918 = vmatpush1.msra.mxu0 0.0
    %2919 = vmatprep.subr.mxu0 0.0
    %2920 = vmatpush1.msra.mxu0 0.0
    %2921 = vmatprep.subr.mxu0 0.0
    %2922 = vmatpush1.msra.mxu0 0.0
    %2923 = vmatprep.subr.mxu0 0.0
    %2924 = vmatpush1.msra.mxu0 0.0
    %2925 = vmatprep.mubr.f32.mxu0 0.0
    %2926 = vmatmul.mubr.f32.gmra.mrb[0].mxu0 %v2623
    %v2927 = vpop.f32.mrb[0].mxu0
    %v2928 = vadd.f32 0.0, %v2927
    %v2929 = vpop.f32.mrb[0].mxu0
    %v2930 = vadd.f32 0.0, %v2929
    %2931 = vdwg.mxu0
    %v2932 = vadd.f32 %v434, %v2857
    %v2933 = vadd.f32 %v435, %v2859
    %v2934 = vadd.f32 %v436, %v2928
    %v2935 = vadd.f32 %v437, %v2930
    %v2936 = vxor.u32 %v2932, 2147483648
    %v2937 = vxor.u32 %v2933, 2147483648
    %v2938 = vxor.u32 %v2934, 2147483648
    %v2939 = vmul.f32 %v2936, 1.442695
    %v2940 = vpow.pop %v2939
    %v2941 = vmul.f32 %v2937, 1.442695
    %v2942 = vpow.pop %v2941
    %v2943 = vmul.f32 %v2938, 1.442695
    %v2944 = vpow.pop %v2943
    %v2945 = vadd.f32 %v2940, 1.0
    %v2946 = vadd.f32 %v2942, 1.0
    %v2947 = vadd.f32 %v2944, 1.0
    %v2948 = vrcp.pop %v2945
    %v2949 = vmul.f32 1.0, %v2948
    %v2950 = vrcp.pop %v2946
    %v2951 = vmul.f32 1.0, %v2950
    %v2952 = vrcp.pop %v2947
    %v2953 = vmul.f32 1.0, %v2952
    %v2954 = vtanh.pop %v2935
    %v2955 = vmul.f32 %v2951, %v2621
    %v2956 = vmul.f32 %v2949, %v2954
    %v2957 = vadd.f32 %v2955, %v2956
    %v2958 = vtanh.pop %v2957
    %v2959 = vmul.f32 %v2953, %v2958
    %2960 = vmatprep.subr.mxu0 %v125
    %2961 = vmatpush1.msra.mxu0 %v124
    %2962 = vmatprep.subr.mxu0 %v129
    %2963 = vmatpush1.msra.mxu0 %v128
    %2964 = vmatprep.subr.mxu0 %v133
    %2965 = vmatpush1.msra.mxu0 %v132
    %2966 = vmatprep.subr.mxu0 %v137
    %2967 = vmatpush1.msra.mxu0 %v136
    %2968 = vmatprep.subr.mxu0 %v141
    %2969 = vmatpush1.msra.mxu0 %v140
    %2970 = vmatprep.subr.mxu0 %v145
    %2971 = vmatpush1.msra.mxu0 %v144
    %2972 = vmatprep.subr.mxu0 %v149
    %2973 = vmatpush1.msra.mxu0 %v148
    %2974 = vmatprep.subr.mxu0 %v153
    %2975 = vmatpush1.msra.mxu0 %v152
    %2976 = vmatprep.subr.mxu0 %v157
    %2977 = vmatpush1.msra.mxu0 %v156
    %2978 = vmatprep.subr.mxu0 %v161
    %2979 = vmatpush1.msra.mxu0 %v160
    %2980 = vmatprep.subr.mxu0 %v165
    %2981 = vmatpush1.msra.mxu0 %v164
    %2982 = vmatprep.subr.mxu0 %v169
    %2983 = vmatpush1.msra.mxu0 %v168
    %2984 = vmatprep.subr.mxu0 %v173
    %2985 = vmatpush1.msra.mxu0 %v172
    %2986 = vmatprep.subr.mxu0 %v177
    %2987 = vmatpush1.msra.mxu0 %v176
    %2988 = vmatprep.subr.mxu0 %v181
    %2989 = vmatpush1.msra.mxu0 %v180
    %2990 = vmatprep.subr.mxu0 %v185
    %2991 = vmatpush1.msra.mxu0 %v184
    %2992 = vmatprep.subr.mxu0 %v189
    %2993 = vmatpush1.msra.mxu0 %v188
    %2994 = vmatprep.subr.mxu0 %v193
    %2995 = vmatpush1.msra.mxu0 %v192
    %2996 = vmatprep.subr.mxu0 %v197
    %2997 = vmatpush1.msra.mxu0 %v196
    %2998 = vmatprep.subr.mxu0 %v201
    %2999 = vmatpush1.msra.mxu0 %v200
    %3000 = vmatprep.subr.mxu0 %v205
    %3001 = vmatpush1.msra.mxu0 %v204
    %3002 = vmatprep.subr.mxu0 %v209
    %3003 = vmatpush1.msra.mxu0 %v208
    %3004 = vmatprep.subr.mxu0 %v213
    %3005 = vmatpush1.msra.mxu0 %v212
    %3006 = vmatprep.subr.mxu0 %v217
    %3007 = vmatpush1.msra.mxu0 %v216
    %3008 = vmatprep.subr.mxu0 %v221
    %3009 = vmatpush1.msra.mxu0 %v220
    %3010 = vmatprep.subr.mxu0 %v225
    %3011 = vmatpush1.msra.mxu0 %v224
    %3012 = vmatprep.subr.mxu0 %v229
    %3013 = vmatpush1.msra.mxu0 %v228
    %3014 = vmatprep.subr.mxu0 %v233
    %3015 = vmatpush1.msra.mxu0 %v232
    %3016 = vmatprep.subr.mxu0 %v237
    %3017 = vmatpush1.msra.mxu0 %v236
    %3018 = vmatprep.subr.mxu0 %v241
    %3019 = vmatpush1.msra.mxu0 %v240
    %3020 = vmatprep.subr.mxu0 %v245
    %3021 = vmatpush1.msra.mxu0 %v244
    %3022 = vmatprep.subr.mxu0 %v249
    %3023 = vmatpush1.msra.mxu0 %v248
    %3024 = vmatprep.mubr.f32.mxu0 %v2789
    %3025 = vmatmul.mubr.f32.gmra.mrb[0].mxu0 %v2959
    %v3026 = vpop.f32.mrb[0].mxu0
    %v3027 = vadd.f32 %v279, %v3026
    %v3028 = vpop.f32.mrb[0].mxu0
    %v3029 = vadd.f32 %v283, %v3028
    %3030 = vdwg.mxu0
    %3031 = vmatprep.subr.mxu0 %v127
    %3032 = vmatpush1.msra.mxu0 %v126
    %3033 = vmatprep.subr.mxu0 %v131
    %3034 = vmatpush1.msra.mxu0 %v130
    %3035 = vmatprep.subr.mxu0 %v135
    %3036 = vmatpush1.msra.mxu0 %v134
    %3037 = vmatprep.subr.mxu0 %v139
    %3038 = vmatpush1.msra.mxu0 %v138
    %3039 = vmatprep.subr.mxu0 %v143
    %3040 = vmatpush1.msra.mxu0 %v142
    %3041 = vmatprep.subr.mxu0 %v147
    %3042 = vmatpush1.msra.mxu0 %v146
    %3043 = vmatprep.subr.mxu0 %v151
    %3044 = vmatpush1.msra.mxu0 %v150
    %3045 = vmatprep.subr.mxu0 %v155
    %3046 = vmatpush1.msra.mxu0 %v154
    %3047 = vmatprep.subr.mxu0 %v159
    %3048 = vmatpush1.msra.mxu0 %v158
    %3049 = vmatprep.subr.mxu0 %v163
    %3050 = vmatpush1.msra.mxu0 %v162
    %3051 = vmatprep.subr.mxu0 %v167
    %3052 = vmatpush1.msra.mxu0 %v166
    %3053 = vmatprep.subr.mxu0 %v171
    %3054 = vmatpush1.msra.mxu0 %v170
    %3055 = vmatprep.subr.mxu0 %v175
    %3056 = vmatpush1.msra.mxu0 %v174
    %3057 = vmatprep.subr.mxu0 %v179
    %3058 = vmatpush1.msra.mxu0 %v178
    %3059 = vmatprep.subr.mxu0 %v183
    %3060 = vmatpush1.msra.mxu0 %v182
    %3061 = vmatprep.subr.mxu0 %v187
    %3062 = vmatpush1.msra.mxu0 %v186
    %3063 = vmatprep.subr.mxu0 %v191
    %3064 = vmatpush1.msra.mxu0 %v190
    %3065 = vmatprep.subr.mxu0 %v195
    %3066 = vmatpush1.msra.mxu0 %v194
    %3067 = vmatprep.subr.mxu0 %v199
    %3068 = vmatpush1.msra.mxu0 %v198
    %3069 = vmatprep.subr.mxu0 %v203
    %3070 = vmatpush1.msra.mxu0 %v202
    %3071 = vmatprep.subr.mxu0 %v207
    %3072 = vmatpush1.msra.mxu0 %v206
    %3073 = vmatprep.subr.mxu0 %v211
    %3074 = vmatpush1.msra.mxu0 %v210
    %3075 = vmatprep.subr.mxu0 %v215
    %3076 = vmatpush1.msra.mxu0 %v214
    %3077 = vmatprep.subr.mxu0 %v219
    %3078 = vmatpush1.msra.mxu0 %v218
    %3079 = vmatprep.subr.mxu0 %v223
    %3080 = vmatpush1.msra.mxu0 %v222
    %3081 = vmatprep.subr.mxu0 %v227
    %3082 = vmatpush1.msra.mxu0 %v226
    %3083 = vmatprep.subr.mxu0 %v231
    %3084 = vmatpush1.msra.mxu0 %v230
    %3085 = vmatprep.subr.mxu0 %v235
    %3086 = vmatpush1.msra.mxu0 %v234
    %3087 = vmatprep.subr.mxu0 %v239
    %3088 = vmatpush1.msra.mxu0 %v238
    %3089 = vmatprep.subr.mxu0 %v243
    %3090 = vmatpush1.msra.mxu0 %v242
    %3091 = vmatprep.subr.mxu0 %v247
    %3092 = vmatpush1.msra.mxu0 %v246
    %3093 = vmatprep.subr.mxu0 %v251
    %3094 = vmatpush1.msra.mxu0 %v250
    %3095 = vmatprep.mubr.f32.mxu0 %v2789
    %3096 = vmatmul.mubr.f32.gmra.mrb[0].mxu0 %v2959
    %v3097 = vpop.f32.mrb[0].mxu0
    %v3098 = vadd.f32 %v287, %v3097
    %v3099 = vpop.f32.mrb[0].mxu0
    %v3100 = vadd.f32 %v291, %v3099
    %3101 = vdwg.mxu0
    %v3102 = vxor.u32 %v3027, 2147483648
    %v3103 = vxor.u32 %v3029, 2147483648
    %v3104 = vxor.u32 %v3098, 2147483648
    %v3105 = vmul.f32 %v3102, 1.442695
    %v3106 = vpow.pop %v3105
    %v3107 = vmul.f32 %v3103, 1.442695
    %v3108 = vpow.pop %v3107
    %v3109 = vmul.f32 %v3104, 1.442695
    %v3110 = vpow.pop %v3109
    %v3111 = vadd.f32 %v3106, 1.0
    %v3112 = vadd.f32 %v3108, 1.0
    %v3113 = vadd.f32 %v3110, 1.0
    %v3114 = vrcp.pop %v3111
    %v3115 = vmul.f32 1.0, %v3114
    %v3116 = vrcp.pop %v3112
    %v3117 = vmul.f32 1.0, %v3116
    %v3118 = vrcp.pop %v3113
    %v3119 = vmul.f32 1.0, %v3118
    %v3120 = vtanh.pop %v3100
    %v3121 = vmul.f32 %v3117, %v2787
    %v3122 = vmul.f32 %v3115, %v3120
    %v3123 = vadd.f32 %v3121, %v3122
    %v3124 = vtanh.pop %v3123
    %v3125 = vmul.f32 %v3119, %v3124
    %v3127 = vlaneseq
    %v3128 = vshrl.u32 %v3127, 7
    %v3129 = vsub.s32 0, %v3128
    %v3130 = vrot.slane %v296, %v3129
    %v3132 = vmul.f32 %v3125, %v3130
    %vm3133 = vcmask 1043456
    %v3134 = vsel %vm3133, %v3132, 0.0
    %3135 = vadd.xlane.f32.xlu0 %v3134
    %v3136 = vpop.xlane.xlu0 %3135
    %v3138 = vlaneseq
    %v3139 = vshrl.u32 %v3138, 7
    %v3140 = vsub.s32 0, %v3139
    %v3141 = vrot.slane %v297, %v3140
    %v3143 = vadd.f32 %v3136, %v3141
    %vm3144 = vcmask 3072
    %3145 = vst.msk [vmem:[%s8] sm:$0xf] %vm3144, %v3143
    // Predicated region
    $region42: #{tpu_custom_call.1} parent=1 // pred_check
      _
    $region43: #{tpu_custom_call.1} parent=1 // pred_check_branch
      %3147 = sbr.rel (0) target = $region45
    $region44: #{tpu_custom_call.1} parent=1 // pred_region
      _
    $region45: #{tpu_custom_call.1} parent=1 // pred_fallthru
      _
    // Predicated region
    $region46: #{tpu_custom_call.1} parent=1 // pred_check
      _
    $region47: #{tpu_custom_call.1} parent=1 // pred_check_branch
      %3149 = sbr.rel (0) target = $region49
    $region48: #{tpu_custom_call.1} parent=1 // pred_region
      _
    $region49: #{tpu_custom_call.1} parent=1 // pred_fallthru
      _
    %3150 = vsyncpa [#allocation4], 1
    %3151 = vsyncpa [#allocation6], 1

</llo_original>
